<compile_context>
chip_gen: v7x
topology: tpu7x:2x2x1
jax: 0.10.0
libtpu: 0.0.40
codegen_flags: <defaults>
</compile_context>

<pallas_src>
import math
from functools import partial

import numpy as np
import jax
import jax.numpy as jnp
from jax import lax
from jax.experimental import pallas as pl
from jax.experimental.pallas import tpu as pltpu


# ----------------------------------------------------------------------------
# Fused kernel: dual edge-MLP + initial LayerNorm + (nb-1) attention blocks +
# final attention / readout, for all batches, in a single invocation.
# ----------------------------------------------------------------------------
def _ms_loss_kernel(xy_ref, g_ref, beta_ref, wqk_ref, bqk_ref,
                    edge_ref, w1_ref, b1_ref, w2_ref, b2_ref, w3_ref, b3_ref,
                    out_ref, wout_ref,
                    *, B, d, nb, r, dk, scale, inv_sqrt_dk, slope):
    I = xy_ref.shape[-1]
    L = 2 * d

    # ---- dual DenseNet([4,32,64,1], LeakyReLU), lane-dense orientation ------
    # Edge positions (d*d = 256) live on lanes, features/channels on sublanes;
    # layers 2/3 are block-diagonal so both chains are 3 wider matmuls.
    h = jnp.dot(w1_ref[...], edge_ref[...], preferred_element_type=jnp.float32) + b1_ref[...]
    h = jnp.where(h >= 0, h, slope * h)
    h = jnp.dot(w2_ref[...], h, preferred_element_type=jnp.float32) + b2_ref[...]
    h = jnp.where(h >= 0, h, slope * h)
    o = jnp.dot(w3_ref[...], h, preferred_element_type=jnp.float32) + b3_ref[...]   # (2, d*d)

    # Relayout (2, d*d) -> (d, 2d) = [wu^T | wf^T] via static slab stores into a
    # VMEM scratch (cheap layout plumbing; avoids a lane->sublane reshape).
    for c in range(d):
        wout_ref[c:c + 1, 0:d] = o[0:1, c * d:(c + 1) * d]
        wout_ref[c:c + 1, d:2 * d] = o[1:2, c * d:(c + 1) * d]
    wout = wout_ref[...]                                        # (d, 2d)

    def ln(v, g, b, eps=1e-5):
        # torch.nn.LayerNorm([2d, I]): normalize over the whole (2d, I) slice.
        mu = jnp.mean(v)
        var = jnp.mean((v - mu) ** 2)
        return (v - mu) * lax.rsqrt(var + eps) * g + b

    s_mid = scale * inv_sqrt_dk
    s_out = scale * scale * inv_sqrt_dk

    for b in range(B):                                          # unrolled batch loop
        xy_b = xy_ref[b]                                        # (2d, I)
        vin = ln(xy_b, g_ref[0], beta_ref[0])

        # nb-1 middle attention blocks.  Q/K of all heads come from one matmul;
        # the r attention matrices are summed (VPU) so each block costs a single
        # (2d,2d)@(2d,I) matmul.
        for j in range(nb - 1):
            qk = jnp.dot(vin, wqk_ref[j], preferred_element_type=jnp.float32) + bqk_ref[j]
            attn = None
            for i in range(r):
                q = qk[:, 2 * dk * i: 2 * dk * i + dk]
                k = qk[:, 2 * dk * i + dk: 2 * dk * (i + 1)]
                a = lax.dot_general(q, k, (((1,), (1,)), ((), ())),
                                    preferred_element_type=jnp.float32)
                attn = a if attn is None else attn + a
            mid = s_mid * jnp.dot(attn, vin, preferred_element_type=jnp.float32)
            vin = ln(mid, g_ref[j + 1], beta_ref[j + 1]) + vin

        # Final block + readout: only columns [:d] of Attn are needed; the head
        # sum and both dx*dy scales fold into two matmuls per batch.
        qk = jnp.dot(vin, wqk_ref[nb - 1], preferred_element_type=jnp.float32) + bqk_ref[nb - 1]
        attn = None
        for i in range(r):
            q = qk[:, 2 * dk * i: 2 * dk * i + dk]               # (2d, dk)
            kd = qk[:d, 2 * dk * i + dk: 2 * dk * (i + 1)]       # (d, dk)
            a = lax.dot_general(q, kd, (((1,), (1,)), ((), ())),
                                preferred_element_type=jnp.float32)  # (2d, d)
            attn = a if attn is None else attn + a
        v = jnp.dot(attn, xy_b[:d, :], preferred_element_type=jnp.float32)    # (2d, I)
        acc = s_out * jnp.dot(wout, v, preferred_element_type=jnp.float32)    # (d, I)

        # Lane-dense output: row b of out_ref is the row-major flatten of acc
        # (d*I = 128 lanes exactly), written with static slab stores.
        for c in range(d):
            out_ref[b:b + 1, c * I:(c + 1) * I] = acc[c:c + 1, :]


# ----------------------------------------------------------------------------
# One-time parameter packing (hoisted out of the per-call path).
# ----------------------------------------------------------------------------
def pack_params(params):
    """Pack module parameters for the fused kernel.

    * Q and K projections of all r heads are stacked per block -> one
      (I, r*2*dk) weight, so Q/K is a single matmul per block.
    * The two DenseNets are merged: layer-1 weights concatenated, layers 2/3
      block-diagonal, and everything transposed to (out, in) so the kernel
      computes lane-dense h = W @ X with the d*d edge positions on lanes.
    * Edge features are pre-transposed to (4, d*d).
    """
    r = params["Wq"].shape[1]
    wqk = jnp.concatenate(
        [jnp.concatenate([params["Wq"][:, i], params["Wk"][:, i]], axis=-1)
         for i in range(r)], axis=-1)                            # (nb, I, r*2*dk)
    bqk = jnp.concatenate(
        [jnp.concatenate([params["bq"][:, i], params["bk"][:, i]], axis=-1)
         for i in range(r)], axis=-1)                            # (nb, 1, r*2*dk)

    (w1u, b1u), (w2u, b2u), (w3u, b3u) = params["kernel"]
    (w1f, b1f), (w2f, b2f), (w3f, b3f) = params["kernelf"]
    z2 = jnp.zeros_like(w2u)
    z3 = jnp.zeros_like(w3u)
    w1 = jnp.concatenate([w1u, w1f], axis=1).T                   # (64, 4)
    b1 = jnp.concatenate([b1u, b1f], axis=1).T                   # (64, 1)
    w2 = jnp.block([[w2u, z2], [z2, w2f]]).T                     # (128, 64)
    b2 = jnp.concatenate([b2u, b2f], axis=1).T                   # (128, 1)
    w3 = jnp.block([[w3u, z3], [z3, w3f]]).T                     # (2, 128)
    b3 = jnp.concatenate([b3u, b3f], axis=1).T                   # (2, 1)

    return dict(ln_gamma=params["ln_gamma"], ln_beta=params["ln_beta"],
                wqk=wqk, bqk=bqk, edgeT_T=params["edgeT"].T,     # (4, d*d)
                w1=w1, b1=b1, w2=w2, b2=b2, w3=w3, b3=b3)


# ----------------------------------------------------------------------------
# Forward wrapper: one pallas_call, no grid (everything fits in VMEM).
# ----------------------------------------------------------------------------
def ms_loss_forward(x, xy, P, packed, *, d, nb, r, dk, scale):
    del x, P  # unused by the reference forward
    B, L, I = xy.shape
    rc = packed["wqk"].shape[-1]
    n_edge = packed["edgeT_T"].shape[1]                          # d*d

    mlp_flops = 2 * n_edge * (packed["w1"].size + packed["w2"].size + packed["w3"].size)
    attn_flops = (B * nb * 2 * L * I * rc
                  + B * (nb - 1) * (2 * r * L * dk * L + 2 * L * L * I)
                  + B * (2 * r * L * dk * d + 2 * L * d * I + 2 * d * L * I))
    bytes_acc = 4 * (xy.size + sum(int(v.size) for v in packed.values()) + B * d * I)

    out_flat = pl.pallas_call(
        partial(_ms_loss_kernel, B=B, d=d, nb=nb, r=r, dk=dk, scale=scale,
                inv_sqrt_dk=1.0 / math.sqrt(dk), slope=0.01),
        out_shape=jax.ShapeDtypeStruct((B, d * I), jnp.float32),
        scratch_shapes=[pltpu.VMEM((d, 2 * d), jnp.float32)],
        cost_estimate=pl.CostEstimate(flops=int(mlp_flops + attn_flops),
                                      transcendentals=int(2 * B * nb),
                                      bytes_accessed=int(bytes_acc)),
    )(xy, packed["ln_gamma"], packed["ln_beta"], packed["wqk"], packed["bqk"],
      packed["edgeT_T"], packed["w1"], packed["b1"], packed["w2"], packed["b2"],
      packed["w3"], packed["b3"])
    return out_flat.reshape(B, d, I)                             # free (contiguous)


# ------------------------- pure-JAX reference -------------------------

def layer_norm(x, gamma, beta, eps=1e-5):
    mean = jnp.mean(x, axis=(-2, -1), keepdims=True)
    var = jnp.mean((x - mean) ** 2, axis=(-2, -1), keepdims=True)
    return (x - mean) / jnp.sqrt(var + eps) * gamma + beta


def reference_forward(x, xy, P, params, *, d, nb, dk, scale):
    """Pure-JAX mirror of the PyTorch forward, for correctness checking."""
    del x, P

    def mlp(h, ps):
        for idx, (w, b) in enumerate(ps):
            h = h @ w + b
            if idx < len(ps) - 1:
                h = jnp.where(h >= 0, h, 0.01 * h)
        return h

    wu = mlp(params["edge"], params["kernel"]).reshape(d, d)
    wf = mlp(params["edge"], params["kernelf"]).reshape(d, d)
    inv = 1.0 / math.sqrt(dk)
    r = params["Wq"].shape[1]
    B, _, I = xy.shape
    vin = layer_norm(xy, params["ln_gamma"][0], params["ln_beta"][0])
    for j in range(nb - 1):
        mid = jnp.zeros_like(vin)
        for i in range(r):
            q = vin @ params["Wq"][j, i] + params["bq"][j, i]
            k = vin @ params["Wk"][j, i] + params["bk"][j, i]
            a = (q @ jnp.swapaxes(k, 1, 2)) * inv
            mid = mid + scale * (a @ vin)
        vin = layer_norm(mid, params["ln_gamma"][j + 1], params["ln_beta"][j + 1]) + vin
    out = jnp.zeros((B, I, d), jnp.float32)
    for i in range(r):
        q = vin @ params["Wq"][nb - 1, i] + params["bq"][nb - 1, i]
        k = vin @ params["Wk"][nb - 1, i] + params["bk"][nb - 1, i]
        a = (q @ jnp.swapaxes(k, 1, 2)) * inv
        vu = scale * (a[:, :d, :d] @ xy[:, :d, :])
        vf = scale * (a[:, d:, :d] @ xy[:, :d, :])
        out = out + scale * (jnp.swapaxes(vu, 1, 2) @ wu
                             + jnp.swapaxes(vf, 1, 2) @ wf)
    return jnp.transpose(out, (0, 2, 1))


# ------------------------- main -------------------------

if __name__ == "__main__":
    S = 4
    d = S * S                 # 16 (module requires d == S*S for grid.reshape(d, 2))
    input_dim = 8
    dk = 8
    r = 2
    nb = 2
    batch = 2
    # out_dim = d (only value for which the reference forward's += type-checks)

    # ---- grid / edge / dx,dy (same as MS_Loss.__init__ / get_grid) ----
    lin = np.linspace(-1.0, 1.0, S)
    gx = np.tile(lin.reshape(S, 1, 1), (1, S, 1))
    gy = np.tile(lin.reshape(1, S, 1), (S, 1, 1))
    grid = np.concatenate([gx, gy], axis=2).astype(np.float32)       # (S, S, 2)
    dx = float(grid[1, 0, 0] - grid[0, 0, 0])
    dy = float(grid[0, 1, 1] - grid[0, 0, 1])
    scale = dx * dy
    g2 = grid.reshape(d, 2)
    gT2 = np.transpose(grid, (1, 0, 2)).reshape(d, 2)
    edge = np.concatenate([np.broadcast_to(g2[:, None, :], (d, d, 2)),
                           np.broadcast_to(gT2[None, :, :], (d, d, 2))],
                          axis=2).astype(np.float32)                 # (d, d, 4)
    edge_flat = jnp.asarray(edge.reshape(d * d, 4))
    edgeT_flat = jnp.asarray(np.transpose(edge, (1, 0, 2)).reshape(d * d, 4))

    # ---- deterministic parameter init ----
    key = jax.random.PRNGKey(0)
    keys = jax.random.split(key, 24)
    nrm = lambda k, shape: 0.1 * jax.random.normal(k, shape, dtype=jnp.float32)

    kernel_params = [(nrm(keys[0], (4, 32)), nrm(keys[1], (1, 32))),
                     (nrm(keys[2], (32, 64)), nrm(keys[3], (1, 64))),
                     (nrm(keys[4], (64, 1)), nrm(keys[5], (1, 1)))]
    kernelf_params = [(nrm(keys[6], (4, 32)), nrm(keys[7], (1, 32))),
                      (nrm(keys[8], (32, 64)), nrm(keys[9], (1, 64))),
                      (nrm(keys[10], (64, 1)), nrm(keys[11], (1, 1)))]

    params = dict(
        edge=edge_flat,
        edgeT=edgeT_flat,
        kernel=kernel_params,
        kernelf=kernelf_params,
        Wq=nrm(keys[12], (nb, r, input_dim, dk)),
        bq=nrm(keys[13], (nb, r, 1, dk)),
        Wk=nrm(keys[14], (nb, r, input_dim, dk)),
        bk=nrm(keys[15], (nb, r, 1, dk)),
        ln_gamma=1.0 + 0.05 * jax.random.normal(keys[18], (nb, 2 * d, input_dim),
                                                dtype=jnp.float32),
        ln_beta=0.05 * jax.random.normal(keys[19], (nb, 2 * d, input_dim),
                                         dtype=jnp.float32),
    )

    # One-time packing (NOT in the per-call path).
    packed = pack_params(params)

    xy = jax.random.normal(keys[16], (batch, 2 * d, input_dim), dtype=jnp.float32)
    x = jax.random.normal(keys[17], (batch, d, 1), dtype=jnp.float32)  # unused by forward
    P = jnp.float32(1.0)                                               # unused by forward

    fwd = jax.jit(lambda x_, xy_, P_, pk: ms_loss_forward(
        x_, xy_, P_, pk, d=d, nb=nb, r=r, dk=dk, scale=scale))
    out = jax.block_until_ready(fwd(x, xy, P, packed))

    ref = jax.block_until_ready(
        reference_forward(x, xy, P, params, d=d, nb=nb, dk=dk, scale=scale))

    assert out.shape == (batch, d, input_dim), out.shape
    np.testing.assert_allclose(np.asarray(out), np.asarray(ref), rtol=2e-2, atol=5e-3)
    print("KERNEL_OK")
</pallas_src>

<mosaic_0001>
module attributes {stable_mosaic.version = 11 : i64} {
  func.func @_ms_loss_kernel(%arg0: memref<2x32x8xf32, #tpu.memory_space<vmem>>, %arg1: memref<2x32x8xf32, #tpu.memory_space<vmem>>, %arg2: memref<2x32x8xf32, #tpu.memory_space<vmem>>, %arg3: memref<2x8x32xf32, #tpu.memory_space<vmem>>, %arg4: memref<2x1x32xf32, #tpu.memory_space<vmem>>, %arg5: memref<4x256xf32, #tpu.memory_space<vmem>>, %arg6: memref<64x4xf32, #tpu.memory_space<vmem>>, %arg7: memref<64x1xf32, #tpu.memory_space<vmem>>, %arg8: memref<128x64xf32, #tpu.memory_space<vmem>>, %arg9: memref<128x1xf32, #tpu.memory_space<vmem>>, %arg10: memref<2x128xf32, #tpu.memory_space<vmem>>, %arg11: memref<2x1xf32, #tpu.memory_space<vmem>>, %arg12: memref<2x128xf32, #tpu.memory_space<vmem>>, %arg13: memref<16x32xf32, #tpu.memory_space<vmem>>) attributes {dimension_semantics = [], scalar_prefetch = 0 : i64, scratch_operands = 1 : i64, tpu.core_type = #tpu.core_type<tc>} {
    %c0 = arith.constant 0 : index
    %c0_0 = arith.constant 0 : index
    %0 = vector.load %arg6[%c0, %c0_0] : memref<64x4xf32, #tpu.memory_space<vmem>>, vector<64x4xf32>
    %c0_1 = arith.constant 0 : index
    %c0_2 = arith.constant 0 : index
    %1 = vector.load %arg5[%c0_1, %c0_2] : memref<4x256xf32, #tpu.memory_space<vmem>>, vector<4x256xf32>
    %cst = arith.constant dense<0.000000e+00> : vector<64x256xf32>
    %2 = tpu.matmul %0, %1, %cst {dimension_numbers = #tpu.dot_dimension_numbers<[1], [0], [0], [1], [0, 0, 1, 1], [], []>} : vector<64x4xf32>, vector<4x256xf32>, vector<64x256xf32> -> vector<64x256xf32>
    %c0_3 = arith.constant 0 : index
    %c0_4 = arith.constant 0 : index
    %3 = vector.load %arg7[%c0_3, %c0_4] : memref<64x1xf32, #tpu.memory_space<vmem>>, vector<64x1xf32>
    %4 = vector.broadcast %3 : vector<64x1xf32> to vector<64x256xf32>
    %5 = arith.addf %2, %4 : vector<64x256xf32>
    %cst_5 = arith.constant 0.000000e+00 : f32
    %6 = vector.broadcast %cst_5 : f32 to vector<64x256xf32>
    %7 = arith.cmpf oge, %5, %6 : vector<64x256xf32>
    %cst_6 = arith.constant 0.00999999977 : f32
    %8 = vector.broadcast %cst_6 : f32 to vector<64x256xf32>
    %9 = arith.mulf %8, %5 : vector<64x256xf32>
    %10 = arith.select %7, %5, %9 : vector<64x256xi1>, vector<64x256xf32>
    %c0_7 = arith.constant 0 : index
    %c0_8 = arith.constant 0 : index
    %11 = vector.load %arg8[%c0_7, %c0_8] : memref<128x64xf32, #tpu.memory_space<vmem>>, vector<128x64xf32>
    %cst_9 = arith.constant dense<0.000000e+00> : vector<128x256xf32>
    %12 = tpu.matmul %11, %10, %cst_9 {dimension_numbers = #tpu.dot_dimension_numbers<[1], [0], [0], [1], [0, 0, 1, 1], [], []>} : vector<128x64xf32>, vector<64x256xf32>, vector<128x256xf32> -> vector<128x256xf32>
    %c0_10 = arith.constant 0 : index
    %c0_11 = arith.constant 0 : index
    %13 = vector.load %arg9[%c0_10, %c0_11] : memref<128x1xf32, #tpu.memory_space<vmem>>, vector<128x1xf32>
    %14 = vector.broadcast %13 : vector<128x1xf32> to vector<128x256xf32>
    %15 = arith.addf %12, %14 : vector<128x256xf32>
    %cst_12 = arith.constant 0.000000e+00 : f32
    %16 = vector.broadcast %cst_12 : f32 to vector<128x256xf32>
    %17 = arith.cmpf oge, %15, %16 : vector<128x256xf32>
    %cst_13 = arith.constant 0.00999999977 : f32
    %18 = vector.broadcast %cst_13 : f32 to vector<128x256xf32>
    %19 = arith.mulf %18, %15 : vector<128x256xf32>
    %20 = arith.select %17, %15, %19 : vector<128x256xi1>, vector<128x256xf32>
    %c0_14 = arith.constant 0 : index
    %c0_15 = arith.constant 0 : index
    %21 = vector.load %arg10[%c0_14, %c0_15] : memref<2x128xf32, #tpu.memory_space<vmem>>, vector<2x128xf32>
    %cst_16 = arith.constant dense<0.000000e+00> : vector<2x256xf32>
    %22 = tpu.matmul %21, %20, %cst_16 {dimension_numbers = #tpu.dot_dimension_numbers<[1], [0], [0], [1], [0, 0, 1, 1], [], []>} : vector<2x128xf32>, vector<128x256xf32>, vector<2x256xf32> -> vector<2x256xf32>
    %c0_17 = arith.constant 0 : index
    %c0_18 = arith.constant 0 : index
    %23 = vector.load %arg11[%c0_17, %c0_18] : memref<2x1xf32, #tpu.memory_space<vmem>>, vector<2x1xf32>
    %24 = vector.broadcast %23 : vector<2x1xf32> to vector<2x256xf32>
    %25 = arith.addf %22, %24 : vector<2x256xf32>
    %26 = vector.extract_strided_slice %25 {offsets = [0, 0], sizes = [1, 16], strides = [1, 1]} : vector<2x256xf32> to vector<1x16xf32>
    %c0_19 = arith.constant 0 : index
    %c0_20 = arith.constant 0 : index
    %27 = vector.load %arg13[%c0_19, %c0_20] : memref<16x32xf32, #tpu.memory_space<vmem>>, vector<1x16xf32>
    tpu.vector_store %arg13[%c0_19, %c0_20], %26 {strides = array<i32>} : memref<16x32xf32, #tpu.memory_space<vmem>>, vector<1x16xf32>,
    %28 = vector.extract_strided_slice %25 {offsets = [1, 0], sizes = [1, 16], strides = [1, 1]} : vector<2x256xf32> to vector<1x16xf32>
    %c0_21 = arith.constant 0 : index
    %c16 = arith.constant 16 : index
    %29 = vector.load %arg13[%c0_21, %c16] : memref<16x32xf32, #tpu.memory_space<vmem>>, vector<1x16xf32>
    tpu.vector_store %arg13[%c0_21, %c16], %28 {strides = array<i32>} : memref<16x32xf32, #tpu.memory_space<vmem>>, vector<1x16xf32>,
    %30 = vector.extract_strided_slice %25 {offsets = [0, 16], sizes = [1, 16], strides = [1, 1]} : vector<2x256xf32> to vector<1x16xf32>
    %c1 = arith.constant 1 : index
    %c0_22 = arith.constant 0 : index
    %31 = vector.load %arg13[%c1, %c0_22] : memref<16x32xf32, #tpu.memory_space<vmem>>, vector<1x16xf32>
    tpu.vector_store %arg13[%c1, %c0_22], %30 {strides = array<i32>} : memref<16x32xf32, #tpu.memory_space<vmem>>, vector<1x16xf32>,
    %32 = vector.extract_strided_slice %25 {offsets = [1, 16], sizes = [1, 16], strides = [1, 1]} : vector<2x256xf32> to vector<1x16xf32>
    %c1_23 = arith.constant 1 : index
    %c16_24 = arith.constant 16 : index
    %33 = vector.load %arg13[%c1_23, %c16_24] : memref<16x32xf32, #tpu.memory_space<vmem>>, vector<1x16xf32>
    tpu.vector_store %arg13[%c1_23, %c16_24], %32 {strides = array<i32>} : memref<16x32xf32, #tpu.memory_space<vmem>>, vector<1x16xf32>,
    %34 = vector.extract_strided_slice %25 {offsets = [0, 32], sizes = [1, 16], strides = [1, 1]} : vector<2x256xf32> to vector<1x16xf32>
    %c2 = arith.constant 2 : index
    %c0_25 = arith.constant 0 : index
    %35 = vector.load %arg13[%c2, %c0_25] : memref<16x32xf32, #tpu.memory_space<vmem>>, vector<1x16xf32>
    tpu.vector_store %arg13[%c2, %c0_25], %34 {strides = array<i32>} : memref<16x32xf32, #tpu.memory_space<vmem>>, vector<1x16xf32>,
    %36 = vector.extract_strided_slice %25 {offsets = [1, 32], sizes = [1, 16], strides = [1, 1]} : vector<2x256xf32> to vector<1x16xf32>
    %c2_26 = arith.constant 2 : index
    %c16_27 = arith.constant 16 : index
    %37 = vector.load %arg13[%c2_26, %c16_27] : memref<16x32xf32, #tpu.memory_space<vmem>>, vector<1x16xf32>
    tpu.vector_store %arg13[%c2_26, %c16_27], %36 {strides = array<i32>} : memref<16x32xf32, #tpu.memory_space<vmem>>, vector<1x16xf32>,
    %38 = vector.extract_strided_slice %25 {offsets = [0, 48], sizes = [1, 16], strides = [1, 1]} : vector<2x256xf32> to vector<1x16xf32>
    %c3 = arith.constant 3 : index
    %c0_28 = arith.constant 0 : index
    %39 = vector.load %arg13[%c3, %c0_28] : memref<16x32xf32, #tpu.memory_space<vmem>>, vector<1x16xf32>
    tpu.vector_store %arg13[%c3, %c0_28], %38 {strides = array<i32>} : memref<16x32xf32, #tpu.memory_space<vmem>>, vector<1x16xf32>,
    %40 = vector.extract_strided_slice %25 {offsets = [1, 48], sizes = [1, 16], strides = [1, 1]} : vector<2x256xf32> to vector<1x16xf32>
    %c3_29 = arith.constant 3 : index
    %c16_30 = arith.constant 16 : index
    %41 = vector.load %arg13[%c3_29, %c16_30] : memref<16x32xf32, #tpu.memory_space<vmem>>, vector<1x16xf32>
    tpu.vector_store %arg13[%c3_29, %c16_30], %40 {strides = array<i32>} : memref<16x32xf32, #tpu.memory_space<vmem>>, vector<1x16xf32>,
    %42 = vector.extract_strided_slice %25 {offsets = [0, 64], sizes = [1, 16], strides = [1, 1]} : vector<2x256xf32> to vector<1x16xf32>
    %c4 = arith.constant 4 : index
    %c0_31 = arith.constant 0 : index
    %43 = vector.load %arg13[%c4, %c0_31] : memref<16x32xf32, #tpu.memory_space<vmem>>, vector<1x16xf32>
    tpu.vector_store %arg13[%c4, %c0_31], %42 {strides = array<i32>} : memref<16x32xf32, #tpu.memory_space<vmem>>, vector<1x16xf32>,
    %44 = vector.extract_strided_slice %25 {offsets = [1, 64], sizes = [1, 16], strides = [1, 1]} : vector<2x256xf32> to vector<1x16xf32>
    %c4_32 = arith.constant 4 : index
    %c16_33 = arith.constant 16 : index
    %45 = vector.load %arg13[%c4_32, %c16_33] : memref<16x32xf32, #tpu.memory_space<vmem>>, vector<1x16xf32>
    tpu.vector_store %arg13[%c4_32, %c16_33], %44 {strides = array<i32>} : memref<16x32xf32, #tpu.memory_space<vmem>>, vector<1x16xf32>,
    %46 = vector.extract_strided_slice %25 {offsets = [0, 80], sizes = [1, 16], strides = [1, 1]} : vector<2x256xf32> to vector<1x16xf32>
    %c5 = arith.constant 5 : index
    %c0_34 = arith.constant 0 : index
    %47 = vector.load %arg13[%c5, %c0_34] : memref<16x32xf32, #tpu.memory_space<vmem>>, vector<1x16xf32>
    tpu.vector_store %arg13[%c5, %c0_34], %46 {strides = array<i32>} : memref<16x32xf32, #tpu.memory_space<vmem>>, vector<1x16xf32>,
    %48 = vector.extract_strided_slice %25 {offsets = [1, 80], sizes = [1, 16], strides = [1, 1]} : vector<2x256xf32> to vector<1x16xf32>
    %c5_35 = arith.constant 5 : index
    %c16_36 = arith.constant 16 : index
    %49 = vector.load %arg13[%c5_35, %c16_36] : memref<16x32xf32, #tpu.memory_space<vmem>>, vector<1x16xf32>
    tpu.vector_store %arg13[%c5_35, %c16_36], %48 {strides = array<i32>} : memref<16x32xf32, #tpu.memory_space<vmem>>, vector<1x16xf32>,
    %50 = vector.extract_strided_slice %25 {offsets = [0, 96], sizes = [1, 16], strides = [1, 1]} : vector<2x256xf32> to vector<1x16xf32>
    %c6 = arith.constant 6 : index
    %c0_37 = arith.constant 0 : index
    %51 = vector.load %arg13[%c6, %c0_37] : memref<16x32xf32, #tpu.memory_space<vmem>>, vector<1x16xf32>
    tpu.vector_store %arg13[%c6, %c0_37], %50 {strides = array<i32>} : memref<16x32xf32, #tpu.memory_space<vmem>>, vector<1x16xf32>,
    %52 = vector.extract_strided_slice %25 {offsets = [1, 96], sizes = [1, 16], strides = [1, 1]} : vector<2x256xf32> to vector<1x16xf32>
    %c6_38 = arith.constant 6 : index
    %c16_39 = arith.constant 16 : index
    %53 = vector.load %arg13[%c6_38, %c16_39] : memref<16x32xf32, #tpu.memory_space<vmem>>, vector<1x16xf32>
    tpu.vector_store %arg13[%c6_38, %c16_39], %52 {strides = array<i32>} : memref<16x32xf32, #tpu.memory_space<vmem>>, vector<1x16xf32>,
    %54 = vector.extract_strided_slice %25 {offsets = [0, 112], sizes = [1, 16], strides = [1, 1]} : vector<2x256xf32> to vector<1x16xf32>
    %c7 = arith.constant 7 : index
    %c0_40 = arith.constant 0 : index
    %55 = vector.load %arg13[%c7, %c0_40] : memref<16x32xf32, #tpu.memory_space<vmem>>, vector<1x16xf32>
    tpu.vector_store %arg13[%c7, %c0_40], %54 {strides = array<i32>} : memref<16x32xf32, #tpu.memory_space<vmem>>, vector<1x16xf32>,
    %56 = vector.extract_strided_slice %25 {offsets = [1, 112], sizes = [1, 16], strides = [1, 1]} : vector<2x256xf32> to vector<1x16xf32>
    %c7_41 = arith.constant 7 : index
    %c16_42 = arith.constant 16 : index
    %57 = vector.load %arg13[%c7_41, %c16_42] : memref<16x32xf32, #tpu.memory_space<vmem>>, vector<1x16xf32>
    tpu.vector_store %arg13[%c7_41, %c16_42], %56 {strides = array<i32>} : memref<16x32xf32, #tpu.memory_space<vmem>>, vector<1x16xf32>,
    %58 = vector.extract_strided_slice %25 {offsets = [0, 128], sizes = [1, 16], strides = [1, 1]} : vector<2x256xf32> to vector<1x16xf32>
    %c8 = arith.constant 8 : index
    %c0_43 = arith.constant 0 : index
    %59 = vector.load %arg13[%c8, %c0_43] : memref<16x32xf32, #tpu.memory_space<vmem>>, vector<1x16xf32>
    tpu.vector_store %arg13[%c8, %c0_43], %58 {strides = array<i32>} : memref<16x32xf32, #tpu.memory_space<vmem>>, vector<1x16xf32>,
    %60 = vector.extract_strided_slice %25 {offsets = [1, 128], sizes = [1, 16], strides = [1, 1]} : vector<2x256xf32> to vector<1x16xf32>
    %c8_44 = arith.constant 8 : index
    %c16_45 = arith.constant 16 : index
    %61 = vector.load %arg13[%c8_44, %c16_45] : memref<16x32xf32, #tpu.memory_space<vmem>>, vector<1x16xf32>
    tpu.vector_store %arg13[%c8_44, %c16_45], %60 {strides = array<i32>} : memref<16x32xf32, #tpu.memory_space<vmem>>, vector<1x16xf32>,
    %62 = vector.extract_strided_slice %25 {offsets = [0, 144], sizes = [1, 16], strides = [1, 1]} : vector<2x256xf32> to vector<1x16xf32>
    %c9 = arith.constant 9 : index
    %c0_46 = arith.constant 0 : index
    %63 = vector.load %arg13[%c9, %c0_46] : memref<16x32xf32, #tpu.memory_space<vmem>>, vector<1x16xf32>
    tpu.vector_store %arg13[%c9, %c0_46], %62 {strides = array<i32>} : memref<16x32xf32, #tpu.memory_space<vmem>>, vector<1x16xf32>,
    %64 = vector.extract_strided_slice %25 {offsets = [1, 144], sizes = [1, 16], strides = [1, 1]} : vector<2x256xf32> to vector<1x16xf32>
    %c9_47 = arith.constant 9 : index
    %c16_48 = arith.constant 16 : index
    %65 = vector.load %arg13[%c9_47, %c16_48] : memref<16x32xf32, #tpu.memory_space<vmem>>, vector<1x16xf32>
    tpu.vector_store %arg13[%c9_47, %c16_48], %64 {strides = array<i32>} : memref<16x32xf32, #tpu.memory_space<vmem>>, vector<1x16xf32>,
    %66 = vector.extract_strided_slice %25 {offsets = [0, 160], sizes = [1, 16], strides = [1, 1]} : vector<2x256xf32> to vector<1x16xf32>
    %c10 = arith.constant 10 : index
    %c0_49 = arith.constant 0 : index
    %67 = vector.load %arg13[%c10, %c0_49] : memref<16x32xf32, #tpu.memory_space<vmem>>, vector<1x16xf32>
    tpu.vector_store %arg13[%c10, %c0_49], %66 {strides = array<i32>} : memref<16x32xf32, #tpu.memory_space<vmem>>, vector<1x16xf32>,
    %68 = vector.extract_strided_slice %25 {offsets = [1, 160], sizes = [1, 16], strides = [1, 1]} : vector<2x256xf32> to vector<1x16xf32>
    %c10_50 = arith.constant 10 : index
    %c16_51 = arith.constant 16 : index
    %69 = vector.load %arg13[%c10_50, %c16_51] : memref<16x32xf32, #tpu.memory_space<vmem>>, vector<1x16xf32>
    tpu.vector_store %arg13[%c10_50, %c16_51], %68 {strides = array<i32>} : memref<16x32xf32, #tpu.memory_space<vmem>>, vector<1x16xf32>,
    %70 = vector.extract_strided_slice %25 {offsets = [0, 176], sizes = [1, 16], strides = [1, 1]} : vector<2x256xf32> to vector<1x16xf32>
    %c11 = arith.constant 11 : index
    %c0_52 = arith.constant 0 : index
    %71 = vector.load %arg13[%c11, %c0_52] : memref<16x32xf32, #tpu.memory_space<vmem>>, vector<1x16xf32>
    tpu.vector_store %arg13[%c11, %c0_52], %70 {strides = array<i32>} : memref<16x32xf32, #tpu.memory_space<vmem>>, vector<1x16xf32>,
    %72 = vector.extract_strided_slice %25 {offsets = [1, 176], sizes = [1, 16], strides = [1, 1]} : vector<2x256xf32> to vector<1x16xf32>
    %c11_53 = arith.constant 11 : index
    %c16_54 = arith.constant 16 : index
    %73 = vector.load %arg13[%c11_53, %c16_54] : memref<16x32xf32, #tpu.memory_space<vmem>>, vector<1x16xf32>
    tpu.vector_store %arg13[%c11_53, %c16_54], %72 {strides = array<i32>} : memref<16x32xf32, #tpu.memory_space<vmem>>, vector<1x16xf32>,
    %74 = vector.extract_strided_slice %25 {offsets = [0, 192], sizes = [1, 16], strides = [1, 1]} : vector<2x256xf32> to vector<1x16xf32>
    %c12 = arith.constant 12 : index
    %c0_55 = arith.constant 0 : index
    %75 = vector.load %arg13[%c12, %c0_55] : memref<16x32xf32, #tpu.memory_space<vmem>>, vector<1x16xf32>
    tpu.vector_store %arg13[%c12, %c0_55], %74 {strides = array<i32>} : memref<16x32xf32, #tpu.memory_space<vmem>>, vector<1x16xf32>,
    %76 = vector.extract_strided_slice %25 {offsets = [1, 192], sizes = [1, 16], strides = [1, 1]} : vector<2x256xf32> to vector<1x16xf32>
    %c12_56 = arith.constant 12 : index
    %c16_57 = arith.constant 16 : index
    %77 = vector.load %arg13[%c12_56, %c16_57] : memref<16x32xf32, #tpu.memory_space<vmem>>, vector<1x16xf32>
    tpu.vector_store %arg13[%c12_56, %c16_57], %76 {strides = array<i32>} : memref<16x32xf32, #tpu.memory_space<vmem>>, vector<1x16xf32>,
    %78 = vector.extract_strided_slice %25 {offsets = [0, 208], sizes = [1, 16], strides = [1, 1]} : vector<2x256xf32> to vector<1x16xf32>
    %c13 = arith.constant 13 : index
    %c0_58 = arith.constant 0 : index
    %79 = vector.load %arg13[%c13, %c0_58] : memref<16x32xf32, #tpu.memory_space<vmem>>, vector<1x16xf32>
    tpu.vector_store %arg13[%c13, %c0_58], %78 {strides = array<i32>} : memref<16x32xf32, #tpu.memory_space<vmem>>, vector<1x16xf32>,
    %80 = vector.extract_strided_slice %25 {offsets = [1, 208], sizes = [1, 16], strides = [1, 1]} : vector<2x256xf32> to vector<1x16xf32>
    %c13_59 = arith.constant 13 : index
    %c16_60 = arith.constant 16 : index
    %81 = vector.load %arg13[%c13_59, %c16_60] : memref<16x32xf32, #tpu.memory_space<vmem>>, vector<1x16xf32>
    tpu.vector_store %arg13[%c13_59, %c16_60], %80 {strides = array<i32>} : memref<16x32xf32, #tpu.memory_space<vmem>>, vector<1x16xf32>,
    %82 = vector.extract_strided_slice %25 {offsets = [0, 224], sizes = [1, 16], strides = [1, 1]} : vector<2x256xf32> to vector<1x16xf32>
    %c14 = arith.constant 14 : index
    %c0_61 = arith.constant 0 : index
    %83 = vector.load %arg13[%c14, %c0_61] : memref<16x32xf32, #tpu.memory_space<vmem>>, vector<1x16xf32>
    tpu.vector_store %arg13[%c14, %c0_61], %82 {strides = array<i32>} : memref<16x32xf32, #tpu.memory_space<vmem>>, vector<1x16xf32>,
    %84 = vector.extract_strided_slice %25 {offsets = [1, 224], sizes = [1, 16], strides = [1, 1]} : vector<2x256xf32> to vector<1x16xf32>
    %c14_62 = arith.constant 14 : index
    %c16_63 = arith.constant 16 : index
    %85 = vector.load %arg13[%c14_62, %c16_63] : memref<16x32xf32, #tpu.memory_space<vmem>>, vector<1x16xf32>
    tpu.vector_store %arg13[%c14_62, %c16_63], %84 {strides = array<i32>} : memref<16x32xf32, #tpu.memory_space<vmem>>, vector<1x16xf32>,
    %86 = vector.extract_strided_slice %25 {offsets = [0, 240], sizes = [1, 16], strides = [1, 1]} : vector<2x256xf32> to vector<1x16xf32>
    %c15 = arith.constant 15 : index
    %c0_64 = arith.constant 0 : index
    %87 = vector.load %arg13[%c15, %c0_64] : memref<16x32xf32, #tpu.memory_space<vmem>>, vector<1x16xf32>
    tpu.vector_store %arg13[%c15, %c0_64], %86 {strides = array<i32>} : memref<16x32xf32, #tpu.memory_space<vmem>>, vector<1x16xf32>,
    %88 = vector.extract_strided_slice %25 {offsets = [1, 240], sizes = [1, 16], strides = [1, 1]} : vector<2x256xf32> to vector<1x16xf32>
    %c15_65 = arith.constant 15 : index
    %c16_66 = arith.constant 16 : index
    %89 = vector.load %arg13[%c15_65, %c16_66] : memref<16x32xf32, #tpu.memory_space<vmem>>, vector<1x16xf32>
    tpu.vector_store %arg13[%c15_65, %c16_66], %88 {strides = array<i32>} : memref<16x32xf32, #tpu.memory_space<vmem>>, vector<1x16xf32>,
    %c0_67 = arith.constant 0 : index
    %c0_68 = arith.constant 0 : index
    %90 = vector.load %arg13[%c0_67, %c0_68] : memref<16x32xf32, #tpu.memory_space<vmem>>, vector<16x32xf32>
    %c0_69 = arith.constant 0 : index
    %c0_70 = arith.constant 0 : index
    %c0_71 = arith.constant 0 : index
    %91 = vector.load %arg0[%c0_69, %c0_70, %c0_71] : memref<2x32x8xf32, #tpu.memory_space<vmem>>, vector<1x32x8xf32>
    %92 = vector.shape_cast %91 : vector<1x32x8xf32> to vector<32x8xf32>
    %c0_72 = arith.constant 0 : index
    %c0_73 = arith.constant 0 : index
    %c0_74 = arith.constant 0 : index
    %93 = vector.load %arg1[%c0_72, %c0_73, %c0_74] : memref<2x32x8xf32, #tpu.memory_space<vmem>>, vector<1x32x8xf32>
    %94 = vector.shape_cast %93 : vector<1x32x8xf32> to vector<32x8xf32>
    %c0_75 = arith.constant 0 : index
    %c0_76 = arith.constant 0 : index
    %c0_77 = arith.constant 0 : index
    %95 = vector.load %arg2[%c0_75, %c0_76, %c0_77] : memref<2x32x8xf32, #tpu.memory_space<vmem>>, vector<1x32x8xf32>
    %96 = vector.shape_cast %95 : vector<1x32x8xf32> to vector<32x8xf32>
    %97 = vector.shape_cast %92 : vector<32x8xf32> to vector<1x32x8xf32>
    %cst_78 = arith.constant dense<0.000000e+00> : vector<1xf32>
    %98 = vector.multi_reduction <add>, %97, %cst_78 [1, 2] : vector<1x32x8xf32> to vector<1xf32>
    %99 = vector.shape_cast %98 : vector<1xf32> to vector<1x1x1xf32>
    %100 = vector.extract %99[0, 0, 0] : f32 from vector<1x1x1xf32>
    %cst_79 = arith.constant 2.560000e+02 : f32
    %101 = arith.divf %100, %cst_79 : f32
    %102 = vector.broadcast %101 : f32 to vector<32x8xf32>
    %103 = arith.subf %92, %102 : vector<32x8xf32>
    %104 = arith.mulf %103, %103 : vector<32x8xf32>
    %105 = vector.shape_cast %104 : vector<32x8xf32> to vector<1x32x8xf32>
    %cst_80 = arith.constant dense<0.000000e+00> : vector<1xf32>
    %106 = vector.multi_reduction <add>, %105, %cst_80 [1, 2] : vector<1x32x8xf32> to vector<1xf32>
    %107 = vector.shape_cast %106 : vector<1xf32> to vector<1x1x1xf32>
    %108 = vector.extract %107[0, 0, 0] : f32 from vector<1x1x1xf32>
    %cst_81 = arith.constant 2.560000e+02 : f32
    %109 = arith.divf %108, %cst_81 : f32
    %110 = vector.broadcast %101 : f32 to vector<32x8xf32>
    %111 = arith.subf %92, %110 : vector<32x8xf32>
    %cst_82 = arith.constant 9.99999974E-6 : f32
    %112 = arith.addf %109, %cst_82 : f32
    %113 = math.rsqrt %112 : f32
    %114 = vector.broadcast %113 : f32 to vector<32x8xf32>
    %115 = arith.mulf %111, %114 : vector<32x8xf32>
    %116 = arith.mulf %115, %94 : vector<32x8xf32>
    %117 = arith.addf %116, %96 : vector<32x8xf32>
    %c0_83 = arith.constant 0 : index
    %c0_84 = arith.constant 0 : index
    %c0_85 = arith.constant 0 : index
    %118 = vector.load %arg3[%c0_83, %c0_84, %c0_85] : memref<2x8x32xf32, #tpu.memory_space<vmem>>, vector<1x8x32xf32>
    %119 = vector.shape_cast %118 : vector<1x8x32xf32> to vector<8x32xf32>
    %cst_86 = arith.constant dense<0.000000e+00> : vector<32x32xf32>
    %120 = tpu.matmul %117, %119, %cst_86 {dimension_numbers = #tpu.dot_dimension_numbers<[1], [0], [0], [1], [0, 0, 1, 1], [], []>} : vector<32x8xf32>, vector<8x32xf32>, vector<32x32xf32> -> vector<32x32xf32>
    %c0_87 = arith.constant 0 : index
    %c0_88 = arith.constant 0 : index
    %c0_89 = arith.constant 0 : index
    %121 = vector.load %arg4[%c0_87, %c0_88, %c0_89] : memref<2x1x32xf32, #tpu.memory_space<vmem>>, vector<1x1x32xf32>
    %122 = vector.shape_cast %121 : vector<1x1x32xf32> to vector<1x32xf32>
    %123 = vector.broadcast %122 : vector<1x32xf32> to vector<32x32xf32>
    %124 = arith.addf %120, %123 : vector<32x32xf32>
    %125 = vector.extract_strided_slice %124 {offsets = [0, 0], sizes = [32, 8], strides = [1, 1]} : vector<32x32xf32> to vector<32x8xf32>
    %126 = vector.extract_strided_slice %124 {offsets = [0, 8], sizes = [32, 8], strides = [1, 1]} : vector<32x32xf32> to vector<32x8xf32>
    %cst_90 = arith.constant dense<0.000000e+00> : vector<32x32xf32>
    %127 = tpu.matmul %125, %126, %cst_90 {dimension_numbers = #tpu.dot_dimension_numbers<[1], [1], [0], [0], [0, 0, 1, 0], [], []>} : vector<32x8xf32>, vector<32x8xf32>, vector<32x32xf32> -> vector<32x32xf32>
    %128 = vector.extract_strided_slice %124 {offsets = [0, 16], sizes = [32, 8], strides = [1, 1]} : vector<32x32xf32> to vector<32x8xf32>
    %129 = vector.extract_strided_slice %124 {offsets = [0, 24], sizes = [32, 8], strides = [1, 1]} : vector<32x32xf32> to vector<32x8xf32>
    %cst_91 = arith.constant dense<0.000000e+00> : vector<32x32xf32>
    %130 = tpu.matmul %128, %129, %cst_91 {dimension_numbers = #tpu.dot_dimension_numbers<[1], [1], [0], [0], [0, 0, 1, 0], [], []>} : vector<32x8xf32>, vector<32x8xf32>, vector<32x32xf32> -> vector<32x32xf32>
    %131 = arith.addf %127, %130 : vector<32x32xf32>
    %cst_92 = arith.constant dense<0.000000e+00> : vector<32x8xf32>
    %132 = tpu.matmul %131, %117, %cst_92 {dimension_numbers = #tpu.dot_dimension_numbers<[1], [0], [0], [1], [0, 0, 1, 1], [], []>} : vector<32x32xf32>, vector<32x8xf32>, vector<32x8xf32> -> vector<32x8xf32>
    %cst_93 = arith.constant 0.157134816 : f32
    %133 = vector.broadcast %cst_93 : f32 to vector<32x8xf32>
    %134 = arith.mulf %133, %132 : vector<32x8xf32>
    %c1_94 = arith.constant 1 : index
    %c0_95 = arith.constant 0 : index
    %c0_96 = arith.constant 0 : index
    %135 = vector.load %arg1[%c1_94, %c0_95, %c0_96] : memref<2x32x8xf32, #tpu.memory_space<vmem>>, vector<1x32x8xf32>
    %136 = vector.shape_cast %135 : vector<1x32x8xf32> to vector<32x8xf32>
    %c1_97 = arith.constant 1 : index
    %c0_98 = arith.constant 0 : index
    %c0_99 = arith.constant 0 : index
    %137 = vector.load %arg2[%c1_97, %c0_98, %c0_99] : memref<2x32x8xf32, #tpu.memory_space<vmem>>, vector<1x32x8xf32>
    %138 = vector.shape_cast %137 : vector<1x32x8xf32> to vector<32x8xf32>
    %139 = vector.shape_cast %134 : vector<32x8xf32> to vector<1x32x8xf32>
    %cst_100 = arith.constant dense<0.000000e+00> : vector<1xf32>
    %140 = vector.multi_reduction <add>, %139, %cst_100 [1, 2] : vector<1x32x8xf32> to vector<1xf32>
    %141 = vector.shape_cast %140 : vector<1xf32> to vector<1x1x1xf32>
    %142 = vector.extract %141[0, 0, 0] : f32 from vector<1x1x1xf32>
    %cst_101 = arith.constant 2.560000e+02 : f32
    %143 = arith.divf %142, %cst_101 : f32
    %144 = vector.broadcast %143 : f32 to vector<32x8xf32>
    %145 = arith.subf %134, %144 : vector<32x8xf32>
    %146 = arith.mulf %145, %145 : vector<32x8xf32>
    %147 = vector.shape_cast %146 : vector<32x8xf32> to vector<1x32x8xf32>
    %cst_102 = arith.constant dense<0.000000e+00> : vector<1xf32>
    %148 = vector.multi_reduction <add>, %147, %cst_102 [1, 2] : vector<1x32x8xf32> to vector<1xf32>
    %149 = vector.shape_cast %148 : vector<1xf32> to vector<1x1x1xf32>
    %150 = vector.extract %149[0, 0, 0] : f32 from vector<1x1x1xf32>
    %cst_103 = arith.constant 2.560000e+02 : f32
    %151 = arith.divf %150, %cst_103 : f32
    %152 = vector.broadcast %143 : f32 to vector<32x8xf32>
    %153 = arith.subf %134, %152 : vector<32x8xf32>
    %cst_104 = arith.constant 9.99999974E-6 : f32
    %154 = arith.addf %151, %cst_104 : f32
    %155 = math.rsqrt %154 : f32
    %156 = vector.broadcast %155 : f32 to vector<32x8xf32>
    %157 = arith.mulf %153, %156 : vector<32x8xf32>
    %158 = arith.mulf %157, %136 : vector<32x8xf32>
    %159 = arith.addf %158, %138 : vector<32x8xf32>
    %160 = arith.addf %159, %117 : vector<32x8xf32>
    %c1_105 = arith.constant 1 : index
    %c0_106 = arith.constant 0 : index
    %c0_107 = arith.constant 0 : index
    %161 = vector.load %arg3[%c1_105, %c0_106, %c0_107] : memref<2x8x32xf32, #tpu.memory_space<vmem>>, vector<1x8x32xf32>
    %162 = vector.shape_cast %161 : vector<1x8x32xf32> to vector<8x32xf32>
    %cst_108 = arith.constant dense<0.000000e+00> : vector<32x32xf32>
    %163 = tpu.matmul %160, %162, %cst_108 {dimension_numbers = #tpu.dot_dimension_numbers<[1], [0], [0], [1], [0, 0, 1, 1], [], []>} : vector<32x8xf32>, vector<8x32xf32>, vector<32x32xf32> -> vector<32x32xf32>
    %c1_109 = arith.constant 1 : index
    %c0_110 = arith.constant 0 : index
    %c0_111 = arith.constant 0 : index
    %164 = vector.load %arg4[%c1_109, %c0_110, %c0_111] : memref<2x1x32xf32, #tpu.memory_space<vmem>>, vector<1x1x32xf32>
    %165 = vector.shape_cast %164 : vector<1x1x32xf32> to vector<1x32xf32>
    %166 = vector.broadcast %165 : vector<1x32xf32> to vector<32x32xf32>
    %167 = arith.addf %163, %166 : vector<32x32xf32>
    %168 = vector.extract_strided_slice %167 {offsets = [0, 0], sizes = [32, 8], strides = [1, 1]} : vector<32x32xf32> to vector<32x8xf32>
    %169 = vector.extract_strided_slice %167 {offsets = [0, 8], sizes = [16, 8], strides = [1, 1]} : vector<32x32xf32> to vector<16x8xf32>
    %cst_112 = arith.constant dense<0.000000e+00> : vector<32x16xf32>
    %170 = tpu.matmul %168, %169, %cst_112 {dimension_numbers = #tpu.dot_dimension_numbers<[1], [1], [0], [0], [0, 0, 1, 0], [], []>} : vector<32x8xf32>, vector<16x8xf32>, vector<32x16xf32> -> vector<32x16xf32>
    %171 = vector.extract_strided_slice %167 {offsets = [0, 16], sizes = [32, 8], strides = [1, 1]} : vector<32x32xf32> to vector<32x8xf32>
    %172 = vector.extract_strided_slice %167 {offsets = [0, 24], sizes = [16, 8], strides = [1, 1]} : vector<32x32xf32> to vector<16x8xf32>
    %cst_113 = arith.constant dense<0.000000e+00> : vector<32x16xf32>
    %173 = tpu.matmul %171, %172, %cst_113 {dimension_numbers = #tpu.dot_dimension_numbers<[1], [1], [0], [0], [0, 0, 1, 0], [], []>} : vector<32x8xf32>, vector<16x8xf32>, vector<32x16xf32> -> vector<32x16xf32>
    %174 = arith.addf %170, %173 : vector<32x16xf32>
    %175 = vector.extract_strided_slice %92 {offsets = [0, 0], sizes = [16, 8], strides = [1, 1]} : vector<32x8xf32> to vector<16x8xf32>
    %cst_114 = arith.constant dense<0.000000e+00> : vector<32x8xf32>
    %176 = tpu.matmul %174, %175, %cst_114 {dimension_numbers = #tpu.dot_dimension_numbers<[1], [0], [0], [1], [0, 0, 1, 1], [], []>} : vector<32x16xf32>, vector<16x8xf32>, vector<32x8xf32> -> vector<32x8xf32>
    %cst_115 = arith.constant dense<0.000000e+00> : vector<16x8xf32>
    %177 = tpu.matmul %90, %176, %cst_115 {dimension_numbers = #tpu.dot_dimension_numbers<[1], [0], [0], [1], [0, 0, 1, 1], [], []>} : vector<16x32xf32>, vector<32x8xf32>, vector<16x8xf32> -> vector<16x8xf32>
    %cst_116 = arith.constant 0.0698376894 : f32
    %178 = vector.broadcast %cst_116 : f32 to vector<16x8xf32>
    %179 = arith.mulf %178, %177 : vector<16x8xf32>
    %180 = vector.extract_strided_slice %179 {offsets = [0, 0], sizes = [1, 8], strides = [1, 1]} : vector<16x8xf32> to vector<1x8xf32>
    %c0_117 = arith.constant 0 : index
    %c0_118 = arith.constant 0 : index
    %181 = vector.load %arg12[%c0_117, %c0_118] : memref<2x128xf32, #tpu.memory_space<vmem>>, vector<1x8xf32>
    tpu.vector_store %arg12[%c0_117, %c0_118], %180 {strides = array<i32>} : memref<2x128xf32, #tpu.memory_space<vmem>>, vector<1x8xf32>,
    %182 = vector.extract_strided_slice %179 {offsets = [1, 0], sizes = [1, 8], strides = [1, 1]} : vector<16x8xf32> to vector<1x8xf32>
    %c0_119 = arith.constant 0 : index
    %c8_120 = arith.constant 8 : index
    %183 = vector.load %arg12[%c0_119, %c8_120] : memref<2x128xf32, #tpu.memory_space<vmem>>, vector<1x8xf32>
    tpu.vector_store %arg12[%c0_119, %c8_120], %182 {strides = array<i32>} : memref<2x128xf32, #tpu.memory_space<vmem>>, vector<1x8xf32>,
    %184 = vector.extract_strided_slice %179 {offsets = [2, 0], sizes = [1, 8], strides = [1, 1]} : vector<16x8xf32> to vector<1x8xf32>
    %c0_121 = arith.constant 0 : index
    %c16_122 = arith.constant 16 : index
    %185 = vector.load %arg12[%c0_121, %c16_122] : memref<2x128xf32, #tpu.memory_space<vmem>>, vector<1x8xf32>
    tpu.vector_store %arg12[%c0_121, %c16_122], %184 {strides = array<i32>} : memref<2x128xf32, #tpu.memory_space<vmem>>, vector<1x8xf32>,
    %186 = vector.extract_strided_slice %179 {offsets = [3, 0], sizes = [1, 8], strides = [1, 1]} : vector<16x8xf32> to vector<1x8xf32>
    %c0_123 = arith.constant 0 : index
    %c24 = arith.constant 24 : index
    %187 = vector.load %arg12[%c0_123, %c24] : memref<2x128xf32, #tpu.memory_space<vmem>>, vector<1x8xf32>
    tpu.vector_store %arg12[%c0_123, %c24], %186 {strides = array<i32>} : memref<2x128xf32, #tpu.memory_space<vmem>>, vector<1x8xf32>,
    %188 = vector.extract_strided_slice %179 {offsets = [4, 0], sizes = [1, 8], strides = [1, 1]} : vector<16x8xf32> to vector<1x8xf32>
    %c0_124 = arith.constant 0 : index
    %c32 = arith.constant 32 : index
    %189 = vector.load %arg12[%c0_124, %c32] : memref<2x128xf32, #tpu.memory_space<vmem>>, vector<1x8xf32>
    tpu.vector_store %arg12[%c0_124, %c32], %188 {strides = array<i32>} : memref<2x128xf32, #tpu.memory_space<vmem>>, vector<1x8xf32>,
    %190 = vector.extract_strided_slice %179 {offsets = [5, 0], sizes = [1, 8], strides = [1, 1]} : vector<16x8xf32> to vector<1x8xf32>
    %c0_125 = arith.constant 0 : index
    %c40 = arith.constant 40 : index
    %191 = vector.load %arg12[%c0_125, %c40] : memref<2x128xf32, #tpu.memory_space<vmem>>, vector<1x8xf32>
    tpu.vector_store %arg12[%c0_125, %c40], %190 {strides = array<i32>} : memref<2x128xf32, #tpu.memory_space<vmem>>, vector<1x8xf32>,
    %192 = vector.extract_strided_slice %179 {offsets = [6, 0], sizes = [1, 8], strides = [1, 1]} : vector<16x8xf32> to vector<1x8xf32>
    %c0_126 = arith.constant 0 : index
    %c48 = arith.constant 48 : index
    %193 = vector.load %arg12[%c0_126, %c48] : memref<2x128xf32, #tpu.memory_space<vmem>>, vector<1x8xf32>
    tpu.vector_store %arg12[%c0_126, %c48], %192 {strides = array<i32>} : memref<2x128xf32, #tpu.memory_space<vmem>>, vector<1x8xf32>,
    %194 = vector.extract_strided_slice %179 {offsets = [7, 0], sizes = [1, 8], strides = [1, 1]} : vector<16x8xf32> to vector<1x8xf32>
    %c0_127 = arith.constant 0 : index
    %c56 = arith.constant 56 : index
    %195 = vector.load %arg12[%c0_127, %c56] : memref<2x128xf32, #tpu.memory_space<vmem>>, vector<1x8xf32>
    tpu.vector_store %arg12[%c0_127, %c56], %194 {strides = array<i32>} : memref<2x128xf32, #tpu.memory_space<vmem>>, vector<1x8xf32>,
    %196 = vector.extract_strided_slice %179 {offsets = [8, 0], sizes = [1, 8], strides = [1, 1]} : vector<16x8xf32> to vector<1x8xf32>
    %c0_128 = arith.constant 0 : index
    %c64 = arith.constant 64 : index
    %197 = vector.load %arg12[%c0_128, %c64] : memref<2x128xf32, #tpu.memory_space<vmem>>, vector<1x8xf32>
    tpu.vector_store %arg12[%c0_128, %c64], %196 {strides = array<i32>} : memref<2x128xf32, #tpu.memory_space<vmem>>, vector<1x8xf32>,
    %198 = vector.extract_strided_slice %179 {offsets = [9, 0], sizes = [1, 8], strides = [1, 1]} : vector<16x8xf32> to vector<1x8xf32>
    %c0_129 = arith.constant 0 : index
    %c72 = arith.constant 72 : index
    %199 = vector.load %arg12[%c0_129, %c72] : memref<2x128xf32, #tpu.memory_space<vmem>>, vector<1x8xf32>
    tpu.vector_store %arg12[%c0_129, %c72], %198 {strides = array<i32>} : memref<2x128xf32, #tpu.memory_space<vmem>>, vector<1x8xf32>,
    %200 = vector.extract_strided_slice %179 {offsets = [10, 0], sizes = [1, 8], strides = [1, 1]} : vector<16x8xf32> to vector<1x8xf32>
    %c0_130 = arith.constant 0 : index
    %c80 = arith.constant 80 : index
    %201 = vector.load %arg12[%c0_130, %c80] : memref<2x128xf32, #tpu.memory_space<vmem>>, vector<1x8xf32>
    tpu.vector_store %arg12[%c0_130, %c80], %200 {strides = array<i32>} : memref<2x128xf32, #tpu.memory_space<vmem>>, vector<1x8xf32>,
    %202 = vector.extract_strided_slice %179 {offsets = [11, 0], sizes = [1, 8], strides = [1, 1]} : vector<16x8xf32> to vector<1x8xf32>
    %c0_131 = arith.constant 0 : index
    %c88 = arith.constant 88 : index
    %203 = vector.load %arg12[%c0_131, %c88] : memref<2x128xf32, #tpu.memory_space<vmem>>, vector<1x8xf32>
    tpu.vector_store %arg12[%c0_131, %c88], %202 {strides = array<i32>} : memref<2x128xf32, #tpu.memory_space<vmem>>, vector<1x8xf32>,
    %204 = vector.extract_strided_slice %179 {offsets = [12, 0], sizes = [1, 8], strides = [1, 1]} : vector<16x8xf32> to vector<1x8xf32>
    %c0_132 = arith.constant 0 : index
    %c96 = arith.constant 96 : index
    %205 = vector.load %arg12[%c0_132, %c96] : memref<2x128xf32, #tpu.memory_space<vmem>>, vector<1x8xf32>
    tpu.vector_store %arg12[%c0_132, %c96], %204 {strides = array<i32>} : memref<2x128xf32, #tpu.memory_space<vmem>>, vector<1x8xf32>,
    %206 = vector.extract_strided_slice %179 {offsets = [13, 0], sizes = [1, 8], strides = [1, 1]} : vector<16x8xf32> to vector<1x8xf32>
    %c0_133 = arith.constant 0 : index
    %c104 = arith.constant 104 : index
    %207 = vector.load %arg12[%c0_133, %c104] : memref<2x128xf32, #tpu.memory_space<vmem>>, vector<1x8xf32>
    tpu.vector_store %arg12[%c0_133, %c104], %206 {strides = array<i32>} : memref<2x128xf32, #tpu.memory_space<vmem>>, vector<1x8xf32>,
    %208 = vector.extract_strided_slice %179 {offsets = [14, 0], sizes = [1, 8], strides = [1, 1]} : vector<16x8xf32> to vector<1x8xf32>
    %c0_134 = arith.constant 0 : index
    %c112 = arith.constant 112 : index
    %209 = vector.load %arg12[%c0_134, %c112] : memref<2x128xf32, #tpu.memory_space<vmem>>, vector<1x8xf32>
    tpu.vector_store %arg12[%c0_134, %c112], %208 {strides = array<i32>} : memref<2x128xf32, #tpu.memory_space<vmem>>, vector<1x8xf32>,
    %210 = vector.extract_strided_slice %179 {offsets = [15, 0], sizes = [1, 8], strides = [1, 1]} : vector<16x8xf32> to vector<1x8xf32>
    %c0_135 = arith.constant 0 : index
    %c120 = arith.constant 120 : index
    %211 = vector.load %arg12[%c0_135, %c120] : memref<2x128xf32, #tpu.memory_space<vmem>>, vector<1x8xf32>
    tpu.vector_store %arg12[%c0_135, %c120], %210 {strides = array<i32>} : memref<2x128xf32, #tpu.memory_space<vmem>>, vector<1x8xf32>,
    %c1_136 = arith.constant 1 : index
    %c0_137 = arith.constant 0 : index
    %c0_138 = arith.constant 0 : index
    %212 = vector.load %arg0[%c1_136, %c0_137, %c0_138] : memref<2x32x8xf32, #tpu.memory_space<vmem>>, vector<1x32x8xf32>
    %213 = vector.shape_cast %212 : vector<1x32x8xf32> to vector<32x8xf32>
    %c0_139 = arith.constant 0 : index
    %c0_140 = arith.constant 0 : index
    %c0_141 = arith.constant 0 : index
    %214 = vector.load %arg1[%c0_139, %c0_140, %c0_141] : memref<2x32x8xf32, #tpu.memory_space<vmem>>, vector<1x32x8xf32>
    %215 = vector.shape_cast %214 : vector<1x32x8xf32> to vector<32x8xf32>
    %c0_142 = arith.constant 0 : index
    %c0_143 = arith.constant 0 : index
    %c0_144 = arith.constant 0 : index
    %216 = vector.load %arg2[%c0_142, %c0_143, %c0_144] : memref<2x32x8xf32, #tpu.memory_space<vmem>>, vector<1x32x8xf32>
    %217 = vector.shape_cast %216 : vector<1x32x8xf32> to vector<32x8xf32>
    %218 = vector.shape_cast %213 : vector<32x8xf32> to vector<1x32x8xf32>
    %cst_145 = arith.constant dense<0.000000e+00> : vector<1xf32>
    %219 = vector.multi_reduction <add>, %218, %cst_145 [1, 2] : vector<1x32x8xf32> to vector<1xf32>
    %220 = vector.shape_cast %219 : vector<1xf32> to vector<1x1x1xf32>
    %221 = vector.extract %220[0, 0, 0] : f32 from vector<1x1x1xf32>
    %cst_146 = arith.constant 2.560000e+02 : f32
    %222 = arith.divf %221, %cst_146 : f32
    %223 = vector.broadcast %222 : f32 to vector<32x8xf32>
    %224 = arith.subf %213, %223 : vector<32x8xf32>
    %225 = arith.mulf %224, %224 : vector<32x8xf32>
    %226 = vector.shape_cast %225 : vector<32x8xf32> to vector<1x32x8xf32>
    %cst_147 = arith.constant dense<0.000000e+00> : vector<1xf32>
    %227 = vector.multi_reduction <add>, %226, %cst_147 [1, 2] : vector<1x32x8xf32> to vector<1xf32>
    %228 = vector.shape_cast %227 : vector<1xf32> to vector<1x1x1xf32>
    %229 = vector.extract %228[0, 0, 0] : f32 from vector<1x1x1xf32>
    %cst_148 = arith.constant 2.560000e+02 : f32
    %230 = arith.divf %229, %cst_148 : f32
    %231 = vector.broadcast %222 : f32 to vector<32x8xf32>
    %232 = arith.subf %213, %231 : vector<32x8xf32>
    %cst_149 = arith.constant 9.99999974E-6 : f32
    %233 = arith.addf %230, %cst_149 : f32
    %234 = math.rsqrt %233 : f32
    %235 = vector.broadcast %234 : f32 to vector<32x8xf32>
    %236 = arith.mulf %232, %235 : vector<32x8xf32>
    %237 = arith.mulf %236, %215 : vector<32x8xf32>
    %238 = arith.addf %237, %217 : vector<32x8xf32>
    %c0_150 = arith.constant 0 : index
    %c0_151 = arith.constant 0 : index
    %c0_152 = arith.constant 0 : index
    %239 = vector.load %arg3[%c0_150, %c0_151, %c0_152] : memref<2x8x32xf32, #tpu.memory_space<vmem>>, vector<1x8x32xf32>
    %240 = vector.shape_cast %239 : vector<1x8x32xf32> to vector<8x32xf32>
    %cst_153 = arith.constant dense<0.000000e+00> : vector<32x32xf32>
    %241 = tpu.matmul %238, %240, %cst_153 {dimension_numbers = #tpu.dot_dimension_numbers<[1], [0], [0], [1], [0, 0, 1, 1], [], []>} : vector<32x8xf32>, vector<8x32xf32>, vector<32x32xf32> -> vector<32x32xf32>
    %c0_154 = arith.constant 0 : index
    %c0_155 = arith.constant 0 : index
    %c0_156 = arith.constant 0 : index
    %242 = vector.load %arg4[%c0_154, %c0_155, %c0_156] : memref<2x1x32xf32, #tpu.memory_space<vmem>>, vector<1x1x32xf32>
    %243 = vector.shape_cast %242 : vector<1x1x32xf32> to vector<1x32xf32>
    %244 = vector.broadcast %243 : vector<1x32xf32> to vector<32x32xf32>
    %245 = arith.addf %241, %244 : vector<32x32xf32>
    %246 = vector.extract_strided_slice %245 {offsets = [0, 0], sizes = [32, 8], strides = [1, 1]} : vector<32x32xf32> to vector<32x8xf32>
    %247 = vector.extract_strided_slice %245 {offsets = [0, 8], sizes = [32, 8], strides = [1, 1]} : vector<32x32xf32> to vector<32x8xf32>
    %cst_157 = arith.constant dense<0.000000e+00> : vector<32x32xf32>
    %248 = tpu.matmul %246, %247, %cst_157 {dimension_numbers = #tpu.dot_dimension_numbers<[1], [1], [0], [0], [0, 0, 1, 0], [], []>} : vector<32x8xf32>, vector<32x8xf32>, vector<32x32xf32> -> vector<32x32xf32>
    %249 = vector.extract_strided_slice %245 {offsets = [0, 16], sizes = [32, 8], strides = [1, 1]} : vector<32x32xf32> to vector<32x8xf32>
    %250 = vector.extract_strided_slice %245 {offsets = [0, 24], sizes = [32, 8], strides = [1, 1]} : vector<32x32xf32> to vector<32x8xf32>
    %cst_158 = arith.constant dense<0.000000e+00> : vector<32x32xf32>
    %251 = tpu.matmul %249, %250, %cst_158 {dimension_numbers = #tpu.dot_dimension_numbers<[1], [1], [0], [0], [0, 0, 1, 0], [], []>} : vector<32x8xf32>, vector<32x8xf32>, vector<32x32xf32> -> vector<32x32xf32>
    %252 = arith.addf %248, %251 : vector<32x32xf32>
    %cst_159 = arith.constant dense<0.000000e+00> : vector<32x8xf32>
    %253 = tpu.matmul %252, %238, %cst_159 {dimension_numbers = #tpu.dot_dimension_numbers<[1], [0], [0], [1], [0, 0, 1, 1], [], []>} : vector<32x32xf32>, vector<32x8xf32>, vector<32x8xf32> -> vector<32x8xf32>
    %cst_160 = arith.constant 0.157134816 : f32
    %254 = vector.broadcast %cst_160 : f32 to vector<32x8xf32>
    %255 = arith.mulf %254, %253 : vector<32x8xf32>
    %c1_161 = arith.constant 1 : index
    %c0_162 = arith.constant 0 : index
    %c0_163 = arith.constant 0 : index
    %256 = vector.load %arg1[%c1_161, %c0_162, %c0_163] : memref<2x32x8xf32, #tpu.memory_space<vmem>>, vector<1x32x8xf32>
    %257 = vector.shape_cast %256 : vector<1x32x8xf32> to vector<32x8xf32>
    %c1_164 = arith.constant 1 : index
    %c0_165 = arith.constant 0 : index
    %c0_166 = arith.constant 0 : index
    %258 = vector.load %arg2[%c1_164, %c0_165, %c0_166] : memref<2x32x8xf32, #tpu.memory_space<vmem>>, vector<1x32x8xf32>
    %259 = vector.shape_cast %258 : vector<1x32x8xf32> to vector<32x8xf32>
    %260 = vector.shape_cast %255 : vector<32x8xf32> to vector<1x32x8xf32>
    %cst_167 = arith.constant dense<0.000000e+00> : vector<1xf32>
    %261 = vector.multi_reduction <add>, %260, %cst_167 [1, 2] : vector<1x32x8xf32> to vector<1xf32>
    %262 = vector.shape_cast %261 : vector<1xf32> to vector<1x1x1xf32>
    %263 = vector.extract %262[0, 0, 0] : f32 from vector<1x1x1xf32>
    %cst_168 = arith.constant 2.560000e+02 : f32
    %264 = arith.divf %263, %cst_168 : f32
    %265 = vector.broadcast %264 : f32 to vector<32x8xf32>
    %266 = arith.subf %255, %265 : vector<32x8xf32>
    %267 = arith.mulf %266, %266 : vector<32x8xf32>
    %268 = vector.shape_cast %267 : vector<32x8xf32> to vector<1x32x8xf32>
    %cst_169 = arith.constant dense<0.000000e+00> : vector<1xf32>
    %269 = vector.multi_reduction <add>, %268, %cst_169 [1, 2] : vector<1x32x8xf32> to vector<1xf32>
    %270 = vector.shape_cast %269 : vector<1xf32> to vector<1x1x1xf32>
    %271 = vector.extract %270[0, 0, 0] : f32 from vector<1x1x1xf32>
    %cst_170 = arith.constant 2.560000e+02 : f32
    %272 = arith.divf %271, %cst_170 : f32
    %273 = vector.broadcast %264 : f32 to vector<32x8xf32>
    %274 = arith.subf %255, %273 : vector<32x8xf32>
    %cst_171 = arith.constant 9.99999974E-6 : f32
    %275 = arith.addf %272, %cst_171 : f32
    %276 = math.rsqrt %275 : f32
    %277 = vector.broadcast %276 : f32 to vector<32x8xf32>
    %278 = arith.mulf %274, %277 : vector<32x8xf32>
    %279 = arith.mulf %278, %257 : vector<32x8xf32>
    %280 = arith.addf %279, %259 : vector<32x8xf32>
    %281 = arith.addf %280, %238 : vector<32x8xf32>
    %c1_172 = arith.constant 1 : index
    %c0_173 = arith.constant 0 : index
    %c0_174 = arith.constant 0 : index
    %282 = vector.load %arg3[%c1_172, %c0_173, %c0_174] : memref<2x8x32xf32, #tpu.memory_space<vmem>>, vector<1x8x32xf32>
    %283 = vector.shape_cast %282 : vector<1x8x32xf32> to vector<8x32xf32>
    %cst_175 = arith.constant dense<0.000000e+00> : vector<32x32xf32>
    %284 = tpu.matmul %281, %283, %cst_175 {dimension_numbers = #tpu.dot_dimension_numbers<[1], [0], [0], [1], [0, 0, 1, 1], [], []>} : vector<32x8xf32>, vector<8x32xf32>, vector<32x32xf32> -> vector<32x32xf32>
    %c1_176 = arith.constant 1 : index
    %c0_177 = arith.constant 0 : index
    %c0_178 = arith.constant 0 : index
    %285 = vector.load %arg4[%c1_176, %c0_177, %c0_178] : memref<2x1x32xf32, #tpu.memory_space<vmem>>, vector<1x1x32xf32>
    %286 = vector.shape_cast %285 : vector<1x1x32xf32> to vector<1x32xf32>
    %287 = vector.broadcast %286 : vector<1x32xf32> to vector<32x32xf32>
    %288 = arith.addf %284, %287 : vector<32x32xf32>
    %289 = vector.extract_strided_slice %288 {offsets = [0, 0], sizes = [32, 8], strides = [1, 1]} : vector<32x32xf32> to vector<32x8xf32>
    %290 = vector.extract_strided_slice %288 {offsets = [0, 8], sizes = [16, 8], strides = [1, 1]} : vector<32x32xf32> to vector<16x8xf32>
    %cst_179 = arith.constant dense<0.000000e+00> : vector<32x16xf32>
    %291 = tpu.matmul %289, %290, %cst_179 {dimension_numbers = #tpu.dot_dimension_numbers<[1], [1], [0], [0], [0, 0, 1, 0], [], []>} : vector<32x8xf32>, vector<16x8xf32>, vector<32x16xf32> -> vector<32x16xf32>
    %292 = vector.extract_strided_slice %288 {offsets = [0, 16], sizes = [32, 8], strides = [1, 1]} : vector<32x32xf32> to vector<32x8xf32>
    %293 = vector.extract_strided_slice %288 {offsets = [0, 24], sizes = [16, 8], strides = [1, 1]} : vector<32x32xf32> to vector<16x8xf32>
    %cst_180 = arith.constant dense<0.000000e+00> : vector<32x16xf32>
    %294 = tpu.matmul %292, %293, %cst_180 {dimension_numbers = #tpu.dot_dimension_numbers<[1], [1], [0], [0], [0, 0, 1, 0], [], []>} : vector<32x8xf32>, vector<16x8xf32>, vector<32x16xf32> -> vector<32x16xf32>
    %295 = arith.addf %291, %294 : vector<32x16xf32>
    %296 = vector.extract_strided_slice %213 {offsets = [0, 0], sizes = [16, 8], strides = [1, 1]} : vector<32x8xf32> to vector<16x8xf32>
    %cst_181 = arith.constant dense<0.000000e+00> : vector<32x8xf32>
    %297 = tpu.matmul %295, %296, %cst_181 {dimension_numbers = #tpu.dot_dimension_numbers<[1], [0], [0], [1], [0, 0, 1, 1], [], []>} : vector<32x16xf32>, vector<16x8xf32>, vector<32x8xf32> -> vector<32x8xf32>
    %cst_182 = arith.constant dense<0.000000e+00> : vector<16x8xf32>
    %298 = tpu.matmul %90, %297, %cst_182 {dimension_numbers = #tpu.dot_dimension_numbers<[1], [0], [0], [1], [0, 0, 1, 1], [], []>} : vector<16x32xf32>, vector<32x8xf32>, vector<16x8xf32> -> vector<16x8xf32>
    %cst_183 = arith.constant 0.0698376894 : f32
    %299 = vector.broadcast %cst_183 : f32 to vector<16x8xf32>
    %300 = arith.mulf %299, %298 : vector<16x8xf32>
    %301 = vector.extract_strided_slice %300 {offsets = [0, 0], sizes = [1, 8], strides = [1, 1]} : vector<16x8xf32> to vector<1x8xf32>
    %c1_184 = arith.constant 1 : index
    %c0_185 = arith.constant 0 : index
    %302 = vector.load %arg12[%c1_184, %c0_185] : memref<2x128xf32, #tpu.memory_space<vmem>>, vector<1x8xf32>
    tpu.vector_store %arg12[%c1_184, %c0_185], %301 {strides = array<i32>} : memref<2x128xf32, #tpu.memory_space<vmem>>, vector<1x8xf32>,
    %303 = vector.extract_strided_slice %300 {offsets = [1, 0], sizes = [1, 8], strides = [1, 1]} : vector<16x8xf32> to vector<1x8xf32>
    %c1_186 = arith.constant 1 : index
    %c8_187 = arith.constant 8 : index
    %304 = vector.load %arg12[%c1_186, %c8_187] : memref<2x128xf32, #tpu.memory_space<vmem>>, vector<1x8xf32>
    tpu.vector_store %arg12[%c1_186, %c8_187], %303 {strides = array<i32>} : memref<2x128xf32, #tpu.memory_space<vmem>>, vector<1x8xf32>,
    %305 = vector.extract_strided_slice %300 {offsets = [2, 0], sizes = [1, 8], strides = [1, 1]} : vector<16x8xf32> to vector<1x8xf32>
    %c1_188 = arith.constant 1 : index
    %c16_189 = arith.constant 16 : index
    %306 = vector.load %arg12[%c1_188, %c16_189] : memref<2x128xf32, #tpu.memory_space<vmem>>, vector<1x8xf32>
    tpu.vector_store %arg12[%c1_188, %c16_189], %305 {strides = array<i32>} : memref<2x128xf32, #tpu.memory_space<vmem>>, vector<1x8xf32>,
    %307 = vector.extract_strided_slice %300 {offsets = [3, 0], sizes = [1, 8], strides = [1, 1]} : vector<16x8xf32> to vector<1x8xf32>
    %c1_190 = arith.constant 1 : index
    %c24_191 = arith.constant 24 : index
    %308 = vector.load %arg12[%c1_190, %c24_191] : memref<2x128xf32, #tpu.memory_space<vmem>>, vector<1x8xf32>
    tpu.vector_store %arg12[%c1_190, %c24_191], %307 {strides = array<i32>} : memref<2x128xf32, #tpu.memory_space<vmem>>, vector<1x8xf32>,
    %309 = vector.extract_strided_slice %300 {offsets = [4, 0], sizes = [1, 8], strides = [1, 1]} : vector<16x8xf32> to vector<1x8xf32>
    %c1_192 = arith.constant 1 : index
    %c32_193 = arith.constant 32 : index
    %310 = vector.load %arg12[%c1_192, %c32_193] : memref<2x128xf32, #tpu.memory_space<vmem>>, vector<1x8xf32>
    tpu.vector_store %arg12[%c1_192, %c32_193], %309 {strides = array<i32>} : memref<2x128xf32, #tpu.memory_space<vmem>>, vector<1x8xf32>,
    %311 = vector.extract_strided_slice %300 {offsets = [5, 0], sizes = [1, 8], strides = [1, 1]} : vector<16x8xf32> to vector<1x8xf32>
    %c1_194 = arith.constant 1 : index
    %c40_195 = arith.constant 40 : index
    %312 = vector.load %arg12[%c1_194, %c40_195] : memref<2x128xf32, #tpu.memory_space<vmem>>, vector<1x8xf32>
    tpu.vector_store %arg12[%c1_194, %c40_195], %311 {strides = array<i32>} : memref<2x128xf32, #tpu.memory_space<vmem>>, vector<1x8xf32>,
    %313 = vector.extract_strided_slice %300 {offsets = [6, 0], sizes = [1, 8], strides = [1, 1]} : vector<16x8xf32> to vector<1x8xf32>
    %c1_196 = arith.constant 1 : index
    %c48_197 = arith.constant 48 : index
    %314 = vector.load %arg12[%c1_196, %c48_197] : memref<2x128xf32, #tpu.memory_space<vmem>>, vector<1x8xf32>
    tpu.vector_store %arg12[%c1_196, %c48_197], %313 {strides = array<i32>} : memref<2x128xf32, #tpu.memory_space<vmem>>, vector<1x8xf32>,
    %315 = vector.extract_strided_slice %300 {offsets = [7, 0], sizes = [1, 8], strides = [1, 1]} : vector<16x8xf32> to vector<1x8xf32>
    %c1_198 = arith.constant 1 : index
    %c56_199 = arith.constant 56 : index
    %316 = vector.load %arg12[%c1_198, %c56_199] : memref<2x128xf32, #tpu.memory_space<vmem>>, vector<1x8xf32>
    tpu.vector_store %arg12[%c1_198, %c56_199], %315 {strides = array<i32>} : memref<2x128xf32, #tpu.memory_space<vmem>>, vector<1x8xf32>,
    %317 = vector.extract_strided_slice %300 {offsets = [8, 0], sizes = [1, 8], strides = [1, 1]} : vector<16x8xf32> to vector<1x8xf32>
    %c1_200 = arith.constant 1 : index
    %c64_201 = arith.constant 64 : index
    %318 = vector.load %arg12[%c1_200, %c64_201] : memref<2x128xf32, #tpu.memory_space<vmem>>, vector<1x8xf32>
    tpu.vector_store %arg12[%c1_200, %c64_201], %317 {strides = array<i32>} : memref<2x128xf32, #tpu.memory_space<vmem>>, vector<1x8xf32>,
    %319 = vector.extract_strided_slice %300 {offsets = [9, 0], sizes = [1, 8], strides = [1, 1]} : vector<16x8xf32> to vector<1x8xf32>
    %c1_202 = arith.constant 1 : index
    %c72_203 = arith.constant 72 : index
    %320 = vector.load %arg12[%c1_202, %c72_203] : memref<2x128xf32, #tpu.memory_space<vmem>>, vector<1x8xf32>
    tpu.vector_store %arg12[%c1_202, %c72_203], %319 {strides = array<i32>} : memref<2x128xf32, #tpu.memory_space<vmem>>, vector<1x8xf32>,
    %321 = vector.extract_strided_slice %300 {offsets = [10, 0], sizes = [1, 8], strides = [1, 1]} : vector<16x8xf32> to vector<1x8xf32>
    %c1_204 = arith.constant 1 : index
    %c80_205 = arith.constant 80 : index
    %322 = vector.load %arg12[%c1_204, %c80_205] : memref<2x128xf32, #tpu.memory_space<vmem>>, vector<1x8xf32>
    tpu.vector_store %arg12[%c1_204, %c80_205], %321 {strides = array<i32>} : memref<2x128xf32, #tpu.memory_space<vmem>>, vector<1x8xf32>,
    %323 = vector.extract_strided_slice %300 {offsets = [11, 0], sizes = [1, 8], strides = [1, 1]} : vector<16x8xf32> to vector<1x8xf32>
    %c1_206 = arith.constant 1 : index
    %c88_207 = arith.constant 88 : index
    %324 = vector.load %arg12[%c1_206, %c88_207] : memref<2x128xf32, #tpu.memory_space<vmem>>, vector<1x8xf32>
    tpu.vector_store %arg12[%c1_206, %c88_207], %323 {strides = array<i32>} : memref<2x128xf32, #tpu.memory_space<vmem>>, vector<1x8xf32>,
    %325 = vector.extract_strided_slice %300 {offsets = [12, 0], sizes = [1, 8], strides = [1, 1]} : vector<16x8xf32> to vector<1x8xf32>
    %c1_208 = arith.constant 1 : index
    %c96_209 = arith.constant 96 : index
    %326 = vector.load %arg12[%c1_208, %c96_209] : memref<2x128xf32, #tpu.memory_space<vmem>>, vector<1x8xf32>
    tpu.vector_store %arg12[%c1_208, %c96_209], %325 {strides = array<i32>} : memref<2x128xf32, #tpu.memory_space<vmem>>, vector<1x8xf32>,
    %327 = vector.extract_strided_slice %300 {offsets = [13, 0], sizes = [1, 8], strides = [1, 1]} : vector<16x8xf32> to vector<1x8xf32>
    %c1_210 = arith.constant 1 : index
    %c104_211 = arith.constant 104 : index
    %328 = vector.load %arg12[%c1_210, %c104_211] : memref<2x128xf32, #tpu.memory_space<vmem>>, vector<1x8xf32>
    tpu.vector_store %arg12[%c1_210, %c104_211], %327 {strides = array<i32>} : memref<2x128xf32, #tpu.memory_space<vmem>>, vector<1x8xf32>,
    %329 = vector.extract_strided_slice %300 {offsets = [14, 0], sizes = [1, 8], strides = [1, 1]} : vector<16x8xf32> to vector<1x8xf32>
    %c1_212 = arith.constant 1 : index
    %c112_213 = arith.constant 112 : index
    %330 = vector.load %arg12[%c1_212, %c112_213] : memref<2x128xf32, #tpu.memory_space<vmem>>, vector<1x8xf32>
    tpu.vector_store %arg12[%c1_212, %c112_213], %329 {strides = array<i32>} : memref<2x128xf32, #tpu.memory_space<vmem>>, vector<1x8xf32>,
    %331 = vector.extract_strided_slice %300 {offsets = [15, 0], sizes = [1, 8], strides = [1, 1]} : vector<16x8xf32> to vector<1x8xf32>
    %c1_214 = arith.constant 1 : index
    %c120_215 = arith.constant 120 : index
    %332 = vector.load %arg12[%c1_214, %c120_215] : memref<2x128xf32, #tpu.memory_space<vmem>>, vector<1x8xf32>
    tpu.vector_store %arg12[%c1_214, %c120_215], %331 {strides = array<i32>} : memref<2x128xf32, #tpu.memory_space<vmem>>, vector<1x8xf32>,
    return
  }
}

</mosaic_0001>

<llo_original>
// kernel: _lambda_.1
$region0: #{_lambda_.1}
  #allocation0 [shape = 'u32[]', space=smem, size = 0x4, offset = 0x4, fixed_abs, tag = 'smem constant byte address 0x4 - core index']
  #allocation1 [shape = 'u32[144,128]{1,0:T(1,128)}', space=vmem, size = 0x12000, scoped, tag = 'internal scratch']
  #allocation2 [shape = 'f32[16,32]{1,0:T(8,128)}', space=vmem, size = 0x2000, scoped, tag = 'scratch operand']
  %s0 = inlined_call_operand.vmem [shape: f32[2,32,8], index: 0, kind: input, shape index: {}]
  %s1 = inlined_call_operand.vmem [shape: f32[2,32,8], index: 1, kind: input, shape index: {}]
  %s2 = inlined_call_operand.vmem [shape: f32[2,32,8], index: 2, kind: input, shape index: {}]
  %s3 = inlined_call_operand.vmem [shape: f32[2,8,32], index: 3, kind: input, shape index: {}]
  %s4 = inlined_call_operand.vmem [shape: f32[2,1,32], index: 4, kind: input, shape index: {}]
  %s5 = inlined_call_operand.vmem [shape: f32[4,256], index: 5, kind: input, shape index: {}]
  %s6 = inlined_call_operand.vmem [shape: f32[64,4], index: 6, kind: input, shape index: {}]
  %s7 = inlined_call_operand.vmem [shape: f32[64,1], index: 7, kind: input, shape index: {}]
  %s8 = inlined_call_operand.vmem [shape: f32[128,64], index: 8, kind: input, shape index: {}]
  %s9 = inlined_call_operand.vmem [shape: f32[128,1], index: 9, kind: input, shape index: {}]
  %s10 = inlined_call_operand.vmem [shape: f32[2,128], index: 10, kind: input, shape index: {}]
  %s11 = inlined_call_operand.vmem [shape: f32[2,1], index: 11, kind: input, shape index: {}]
  %s12 = inlined_call_operand.vmem [shape: f32[2,128], index: 12, kind: output, shape index: {}]
  %s13 = sld [smem:[#allocation0]]
  $region58: #{_lambda_.1} parent=0
    _
  %s15 = ssub.s32 1, %s13
  %s16 = scalar_select 0, %s15, %s13
  // Predicated region
  $region2: #{_lambda_.1} parent=0 // pred_check
    _
  $region3: #{_lambda_.1} parent=0 // pred_check_branch
    %18 = sbr.rel (0) target = $region5
  $region4: #{_lambda_.1} parent=0 // pred_region
    _
  $region5: #{_lambda_.1} parent=0 // pred_fallthru
    _
  // Predicated region
  $region6: #{_lambda_.1} parent=0 // pred_check
    _
  $region7: #{_lambda_.1} parent=0 // pred_check_branch
    %20 = sbr.rel (0) target = $region9
  $region8: #{_lambda_.1} parent=0 // pred_region
    _
  $region9: #{_lambda_.1} parent=0 // pred_fallthru
    _
  // Predicated region
  $region10: #{_lambda_.1} parent=0 // pred_check
    _
  $region11: #{_lambda_.1} parent=0 // pred_check_branch
    %22 = sbr.rel (0) target = $region13
  $region12: #{_lambda_.1} parent=0 // pred_region
    _
  $region13: #{_lambda_.1} parent=0 // pred_fallthru
    _
  // Predicated region
  $region14: #{_lambda_.1} parent=0 // pred_check
    _
  $region15: #{_lambda_.1} parent=0 // pred_check_branch
    %24 = sbr.rel (0) target = $region17
  $region16: #{_lambda_.1} parent=0 // pred_region
    _
  $region17: #{_lambda_.1} parent=0 // pred_fallthru
    _
  // Predicated region
  $region18: #{_lambda_.1} parent=0 // pred_check
    _
  $region19: #{_lambda_.1} parent=0 // pred_check_branch
    %26 = sbr.rel (0) target = $region21
  $region20: #{_lambda_.1} parent=0 // pred_region
    _
  $region21: #{_lambda_.1} parent=0 // pred_fallthru
    _
  // Predicated region
  $region22: #{_lambda_.1} parent=0 // pred_check
    _
  $region23: #{_lambda_.1} parent=0 // pred_check_branch
    %28 = sbr.rel (0) target = $region25
  $region24: #{_lambda_.1} parent=0 // pred_region
    _
  $region25: #{_lambda_.1} parent=0 // pred_fallthru
    _
  // Predicated region
  $region26: #{_lambda_.1} parent=0 // pred_check
    _
  $region27: #{_lambda_.1} parent=0 // pred_check_branch
    %30 = sbr.rel (0) target = $region29
  $region28: #{_lambda_.1} parent=0 // pred_region
    _
  $region29: #{_lambda_.1} parent=0 // pred_fallthru
    _
  // Predicated region
  $region30: #{_lambda_.1} parent=0 // pred_check
    _
  $region31: #{_lambda_.1} parent=0 // pred_check_branch
    %32 = sbr.rel (0) target = $region33
  $region32: #{_lambda_.1} parent=0 // pred_region
    _
  $region33: #{_lambda_.1} parent=0 // pred_fallthru
    _
  // Predicated region
  $region34: #{_lambda_.1} parent=0 // pred_check
    _
  $region35: #{_lambda_.1} parent=0 // pred_check_branch
    %34 = sbr.rel (0) target = $region37
  $region36: #{_lambda_.1} parent=0 // pred_region
    _
  $region37: #{_lambda_.1} parent=0 // pred_fallthru
    _
  // Predicated region
  $region38: #{_lambda_.1} parent=0 // pred_check
    _
  $region39: #{_lambda_.1} parent=0 // pred_check_branch
    %36 = sbr.rel (0) target = $region41
  $region40: #{_lambda_.1} parent=0 // pred_region
    _
  $region41: #{_lambda_.1} parent=0 // pred_fallthru
    _
  // Predicated region
  $region42: #{_lambda_.1} parent=0 // pred_check
    _
  $region43: #{_lambda_.1} parent=0 // pred_check_branch
    %38 = sbr.rel (0) target = $region45
  $region44: #{_lambda_.1} parent=0 // pred_region
    _
  $region45: #{_lambda_.1} parent=0 // pred_fallthru
    _
  // Predicated region
  $region46: #{_lambda_.1} parent=0 // pred_check
    _
  $region47: #{_lambda_.1} parent=0 // pred_check_branch
    %40 = sbr.rel (0) target = $region49
  $region48: #{_lambda_.1} parent=0 // pred_region
    _
  $region49: #{_lambda_.1} parent=0 // pred_fallthru
    _
  %v41 = vld [vmem:[%s6] sm:$0xff]
  %v42 = vld [vmem:[%s6 + $0x8] sm:$0xff]
  %v43 = vld [vmem:[%s6 + $0x10] sm:$0xff]
  %v44 = vld [vmem:[%s6 + $0x18] sm:$0xff]
  %v45 = vld [vmem:[%s6 + $0x20] sm:$0xff]
  %v46 = vld [vmem:[%s6 + $0x28] sm:$0xff]
  %v47 = vld [vmem:[%s6 + $0x30] sm:$0xff]
  %v48 = vld [vmem:[%s6 + $0x38] sm:$0xff]
  %v49 = vld [vmem:[%s5] sm:$0xff]
  %v50 = vld [vmem:[%s7] sm:$0xff]
  %v51 = vld [vmem:[%s7 + $0x8] sm:$0xff]
  %v52 = vld [vmem:[%s7 + $0x10] sm:$0xff]
  %v53 = vld [vmem:[%s7 + $0x18] sm:$0xff]
  %v54 = vld [vmem:[%s7 + $0x20] sm:$0xff]
  %v55 = vld [vmem:[%s7 + $0x28] sm:$0xff]
  %v56 = vld [vmem:[%s7 + $0x30] sm:$0xff]
  %v57 = vld [vmem:[%s7 + $0x38] sm:$0xff]
  %59 = vset.pattern.permute.xlu0 0
  %60 = vperm.xlu0 %59, %v50
  %v61 = vpop.permute.xlu0 %60
  %64 = vset.pattern.permute.xlu0 0
  %65 = vperm.xlu0 %64, %v51
  %v66 = vpop.permute.xlu0 %65
  %69 = vset.pattern.permute.xlu0 0
  %70 = vperm.xlu0 %69, %v52
  %v71 = vpop.permute.xlu0 %70
  %74 = vset.pattern.permute.xlu0 0
  %75 = vperm.xlu0 %74, %v53
  %v76 = vpop.permute.xlu0 %75
  %79 = vset.pattern.permute.xlu0 0
  %80 = vperm.xlu0 %79, %v54
  %v81 = vpop.permute.xlu0 %80
  %84 = vset.pattern.permute.xlu0 0
  %85 = vperm.xlu0 %84, %v55
  %v86 = vpop.permute.xlu0 %85
  %89 = vset.pattern.permute.xlu0 0
  %90 = vperm.xlu0 %89, %v56
  %v91 = vpop.permute.xlu0 %90
  %94 = vset.pattern.permute.xlu0 0
  %95 = vperm.xlu0 %94, %v57
  %v96 = vpop.permute.xlu0 %95
  %v99 = vcombine.high %v49, %v49
  %vm100 = vcmask 31744
  %v102 = vsel %vm100, %v41, 0
  %v105 = vsel %vm100, %v42, 0
  %v108 = vsel %vm100, %v43, 0
  %v111 = vsel %vm100, %v44, 0
  %v114 = vsel %vm100, %v45, 0
  %v117 = vsel %vm100, %v46, 0
  %v120 = vsel %vm100, %v47, 0
  %v123 = vsel %vm100, %v48, 0
  %vm125 = vcmask 1043456
  %v126 = vsel %vm125, %v49, 0
  %v128 = vsel %vm125, %v99, 0
  %130 = vmatprep.subr.mxu0 %v128
  %131 = vmatpush1.msra.mxu0 %v126
  %132 = vmatprep.subr.mxu0 0.0
  %133 = vmatpush1.msra.mxu0 0.0
  %134 = vmatprep.subr.mxu0 0.0
  %135 = vmatpush1.msra.mxu0 0.0
  %136 = vmatprep.subr.mxu0 0.0
  %137 = vmatpush1.msra.mxu0 0.0
  %138 = vmatprep.subr.mxu0 0.0
  %139 = vmatpush1.msra.mxu0 0.0
  %140 = vmatprep.subr.mxu0 0.0
  %141 = vmatpush1.msra.mxu0 0.0
  %142 = vmatprep.subr.mxu0 0.0
  %143 = vmatpush1.msra.mxu0 0.0
  %144 = vmatprep.subr.mxu0 0.0
  %145 = vmatpush1.msra.mxu0 0.0
  %146 = vmatprep.subr.mxu0 0.0
  %147 = vmatpush1.msra.mxu0 0.0
  %148 = vmatprep.subr.mxu0 0.0
  %149 = vmatpush1.msra.mxu0 0.0
  %150 = vmatprep.subr.mxu0 0.0
  %151 = vmatpush1.msra.mxu0 0.0
  %152 = vmatprep.subr.mxu0 0.0
  %153 = vmatpush1.msra.mxu0 0.0
  %154 = vmatprep.subr.mxu0 0.0
  %155 = vmatpush1.msra.mxu0 0.0
  %156 = vmatprep.subr.mxu0 0.0
  %157 = vmatpush1.msra.mxu0 0.0
  %158 = vmatprep.subr.mxu0 0.0
  %159 = vmatpush1.msra.mxu0 0.0
  %160 = vmatprep.subr.mxu0 0.0
  %161 = vmatpush1.msra.mxu0 0.0
  %162 = vmatprep.subr.mxu0 0.0
  %163 = vmatpush1.msra.mxu0 0.0
  %164 = vmatprep.subr.mxu0 0.0
  %165 = vmatpush1.msra.mxu0 0.0
  %166 = vmatprep.subr.mxu0 0.0
  %167 = vmatpush1.msra.mxu0 0.0
  %168 = vmatprep.subr.mxu0 0.0
  %169 = vmatpush1.msra.mxu0 0.0
  %170 = vmatprep.subr.mxu0 0.0
  %171 = vmatpush1.msra.mxu0 0.0
  %172 = vmatprep.subr.mxu0 0.0
  %173 = vmatpush1.msra.mxu0 0.0
  %174 = vmatprep.subr.mxu0 0.0
  %175 = vmatpush1.msra.mxu0 0.0
  %176 = vmatprep.subr.mxu0 0.0
  %177 = vmatpush1.msra.mxu0 0.0
  %178 = vmatprep.subr.mxu0 0.0
  %179 = vmatpush1.msra.mxu0 0.0
  %180 = vmatprep.subr.mxu0 0.0
  %181 = vmatpush1.msra.mxu0 0.0
  %182 = vmatprep.subr.mxu0 0.0
  %183 = vmatpush1.msra.mxu0 0.0
  %184 = vmatprep.subr.mxu0 0.0
  %185 = vmatpush1.msra.mxu0 0.0
  %186 = vmatprep.subr.mxu0 0.0
  %187 = vmatpush1.msra.mxu0 0.0
  %188 = vmatprep.subr.mxu0 0.0
  %189 = vmatpush1.msra.mxu0 0.0
  %190 = vmatprep.subr.mxu0 0.0
  %191 = vmatpush1.msra.mxu0 0.0
  %192 = vmatprep.subr.mxu0 0.0
  %193 = vmatpush1.msra.mxu0 0.0
  %194 = vmatprep.mubr.f32.mxu0 0.0
  %195 = vmatmul.mubr.f32.gmra.mrb[0].mxu0 %v102
  %v196 = vpop.f32.mrb[0].mxu0
  %v197 = vadd.f32 %v61, %v196
  %v198 = vpop.f32.mrb[0].mxu0
  %v199 = vadd.f32 %v61, %v198
  %200 = vmatprep.mubr.f32.mxu0 0.0
  %201 = vmatmul.mubr.f32.gmra.mrb[0].mxu0 %v105
  %v202 = vpop.f32.mrb[0].mxu0
  %v203 = vadd.f32 %v66, %v202
  %v204 = vpop.f32.mrb[0].mxu0
  %v205 = vadd.f32 %v66, %v204
  %206 = vmatprep.mubr.f32.mxu0 0.0
  %207 = vmatmul.mubr.f32.gmra.mrb[0].mxu0 %v108
  %v208 = vpop.f32.mrb[0].mxu0
  %v209 = vadd.f32 %v71, %v208
  %v210 = vpop.f32.mrb[0].mxu0
  %v211 = vadd.f32 %v71, %v210
  %212 = vmatprep.mubr.f32.mxu0 0.0
  %213 = vmatmul.mubr.f32.gmra.mrb[0].mxu0 %v111
  %v214 = vpop.f32.mrb[0].mxu0
  %v215 = vadd.f32 %v76, %v214
  %v216 = vpop.f32.mrb[0].mxu0
  %v217 = vadd.f32 %v76, %v216
  %218 = vmatprep.mubr.f32.mxu0 0.0
  %219 = vmatmul.mubr.f32.gmra.mrb[0].mxu0 %v114
  %v220 = vpop.f32.mrb[0].mxu0
  %v221 = vadd.f32 %v81, %v220
  %v222 = vpop.f32.mrb[0].mxu0
  %v223 = vadd.f32 %v81, %v222
  %224 = vmatprep.mubr.f32.mxu0 0.0
  %225 = vmatmul.mubr.f32.gmra.mrb[0].mxu0 %v117
  %v226 = vpop.f32.mrb[0].mxu0
  %v227 = vadd.f32 %v86, %v226
  %v228 = vpop.f32.mrb[0].mxu0
  %v229 = vadd.f32 %v86, %v228
  %230 = vmatprep.mubr.f32.mxu0 0.0
  %231 = vmatmul.mubr.f32.gmra.mrb[0].mxu0 %v120
  %v232 = vpop.f32.mrb[0].mxu0
  %v233 = vadd.f32 %v91, %v232
  %v234 = vpop.f32.mrb[0].mxu0
  %v235 = vadd.f32 %v91, %v234
  %236 = vmatprep.mubr.f32.mxu0 0.0
  %237 = vmatmul.mubr.f32.gmra.mrb[0].mxu0 %v123
  %v238 = vpop.f32.mrb[0].mxu0
  %v239 = vadd.f32 %v96, %v238
  %v240 = vpop.f32.mrb[0].mxu0
  %v241 = vadd.f32 %v96, %v240
  %242 = vdwg.mxu0
  %vm243 = vcmp.ge.f32.partialorder %v197, 0.0
  %vm244 = vcmp.ge.f32.partialorder %v199, 0.0
  %vm245 = vcmp.ge.f32.partialorder %v203, 0.0
  %vm246 = vcmp.ge.f32.partialorder %v205, 0.0
  %vm247 = vcmp.ge.f32.partialorder %v209, 0.0
  %vm248 = vcmp.ge.f32.partialorder %v211, 0.0
  %vm249 = vcmp.ge.f32.partialorder %v215, 0.0
  %vm250 = vcmp.ge.f32.partialorder %v217, 0.0
  %vm251 = vcmp.ge.f32.partialorder %v221, 0.0
  %vm252 = vcmp.ge.f32.partialorder %v223, 0.0
  %vm253 = vcmp.ge.f32.partialorder %v227, 0.0
  %vm254 = vcmp.ge.f32.partialorder %v229, 0.0
  %vm255 = vcmp.ge.f32.partialorder %v233, 0.0
  %vm256 = vcmp.ge.f32.partialorder %v235, 0.0
  %vm257 = vcmp.ge.f32.partialorder %v239, 0.0
  %vm258 = vcmp.ge.f32.partialorder %v241, 0.0
  %v259 = vmul.f32 %v197, 0.01
  %v260 = vmul.f32 %v199, 0.01
  %v261 = vmul.f32 %v203, 0.01
  %v262 = vmul.f32 %v205, 0.01
  %v263 = vmul.f32 %v209, 0.01
  %v264 = vmul.f32 %v211, 0.01
  %v265 = vmul.f32 %v215, 0.01
  %v266 = vmul.f32 %v217, 0.01
  %v267 = vmul.f32 %v221, 0.01
  %v268 = vmul.f32 %v223, 0.01
  %v269 = vmul.f32 %v227, 0.01
  %v270 = vmul.f32 %v229, 0.01
  %v271 = vmul.f32 %v233, 0.01
  %v272 = vmul.f32 %v235, 0.01
  %v273 = vmul.f32 %v239, 0.01
  %v274 = vmul.f32 %v241, 0.01
  %v275 = vsel %vm243, %v197, %v259
  %v276 = vsel %vm244, %v199, %v260
  %v277 = vsel %vm245, %v203, %v261
  %v278 = vsel %vm246, %v205, %v262
  %v279 = vsel %vm247, %v209, %v263
  %v280 = vsel %vm248, %v211, %v264
  %v281 = vsel %vm249, %v215, %v265
  %v282 = vsel %vm250, %v217, %v266
  %v283 = vsel %vm251, %v221, %v267
  %v284 = vsel %vm252, %v223, %v268
  %v285 = vsel %vm253, %v227, %v269
  %v286 = vsel %vm254, %v229, %v270
  %v287 = vsel %vm255, %v233, %v271
  %v288 = vsel %vm256, %v235, %v272
  %v289 = vsel %vm257, %v239, %v273
  %v290 = vsel %vm258, %v241, %v274
  %v291 = vld [vmem:[%s8] sm:$0xff]
  %v292 = vld [vmem:[%s8 + $0x8] sm:$0xff]
  %v293 = vld [vmem:[%s8 + $0x10] sm:$0xff]
  %v294 = vld [vmem:[%s8 + $0x18] sm:$0xff]
  %v295 = vld [vmem:[%s8 + $0x20] sm:$0xff]
  %v296 = vld [vmem:[%s8 + $0x28] sm:$0xff]
  %v297 = vld [vmem:[%s8 + $0x30] sm:$0xff]
  %v298 = vld [vmem:[%s8 + $0x38] sm:$0xff]
  %v299 = vld [vmem:[%s8 + $0x40] sm:$0xff]
  %v300 = vld [vmem:[%s8 + $0x48] sm:$0xff]
  %v301 = vld [vmem:[%s8 + $0x50] sm:$0xff]
  %v302 = vld [vmem:[%s8 + $0x58] sm:$0xff]
  %v303 = vld [vmem:[%s8 + $0x60] sm:$0xff]
  %v304 = vld [vmem:[%s8 + $0x68] sm:$0xff]
  %v305 = vld [vmem:[%s8 + $0x70] sm:$0xff]
  %v306 = vld [vmem:[%s8 + $0x78] sm:$0xff]
  %v307 = vld [vmem:[%s9] sm:$0xff]
  %v308 = vld [vmem:[%s9 + $0x8] sm:$0xff]
  %v309 = vld [vmem:[%s9 + $0x10] sm:$0xff]
  %v310 = vld [vmem:[%s9 + $0x18] sm:$0xff]
  %v311 = vld [vmem:[%s9 + $0x20] sm:$0xff]
  %v312 = vld [vmem:[%s9 + $0x28] sm:$0xff]
  %v313 = vld [vmem:[%s9 + $0x30] sm:$0xff]
  %v314 = vld [vmem:[%s9 + $0x38] sm:$0xff]
  %v315 = vld [vmem:[%s9 + $0x40] sm:$0xff]
  %v316 = vld [vmem:[%s9 + $0x48] sm:$0xff]
  %v317 = vld [vmem:[%s9 + $0x50] sm:$0xff]
  %v318 = vld [vmem:[%s9 + $0x58] sm:$0xff]
  %v319 = vld [vmem:[%s9 + $0x60] sm:$0xff]
  %v320 = vld [vmem:[%s9 + $0x68] sm:$0xff]
  %v321 = vld [vmem:[%s9 + $0x70] sm:$0xff]
  %v322 = vld [vmem:[%s9 + $0x78] sm:$0xff]
  %324 = vset.pattern.permute.xlu0 0
  %325 = vperm.xlu0 %324, %v307
  %v326 = vpop.permute.xlu0 %325
  %329 = vset.pattern.permute.xlu0 0
  %330 = vperm.xlu0 %329, %v308
  %v331 = vpop.permute.xlu0 %330
  %334 = vset.pattern.permute.xlu0 0
  %335 = vperm.xlu0 %334, %v309
  %v336 = vpop.permute.xlu0 %335
  %339 = vset.pattern.permute.xlu0 0
  %340 = vperm.xlu0 %339, %v310
  %v341 = vpop.permute.xlu0 %340
  %344 = vset.pattern.permute.xlu0 0
  %345 = vperm.xlu0 %344, %v311
  %v346 = vpop.permute.xlu0 %345
  %349 = vset.pattern.permute.xlu0 0
  %350 = vperm.xlu0 %349, %v312
  %v351 = vpop.permute.xlu0 %350
  %354 = vset.pattern.permute.xlu0 0
  %355 = vperm.xlu0 %354, %v313
  %v356 = vpop.permute.xlu0 %355
  %359 = vset.pattern.permute.xlu0 0
  %360 = vperm.xlu0 %359, %v314
  %v361 = vpop.permute.xlu0 %360
  %364 = vset.pattern.permute.xlu0 0
  %365 = vperm.xlu0 %364, %v315
  %v366 = vpop.permute.xlu0 %365
  %369 = vset.pattern.permute.xlu0 0
  %370 = vperm.xlu0 %369, %v316
  %v371 = vpop.permute.xlu0 %370
  %374 = vset.pattern.permute.xlu0 0
  %375 = vperm.xlu0 %374, %v317
  %v376 = vpop.permute.xlu0 %375
  %379 = vset.pattern.permute.xlu0 0
  %380 = vperm.xlu0 %379, %v318
  %v381 = vpop.permute.xlu0 %380
  %384 = vset.pattern.permute.xlu0 0
  %385 = vperm.xlu0 %384, %v319
  %v386 = vpop.permute.xlu0 %385
  %389 = vset.pattern.permute.xlu0 0
  %390 = vperm.xlu0 %389, %v320
  %v391 = vpop.permute.xlu0 %390
  %394 = vset.pattern.permute.xlu0 0
  %395 = vperm.xlu0 %394, %v321
  %v396 = vpop.permute.xlu0 %395
  %399 = vset.pattern.permute.xlu0 0
  %400 = vperm.xlu0 %399, %v322
  %v401 = vpop.permute.xlu0 %400
  %vm403 = vcmask 523264
  %v405 = vsel %vm403, %v291, 0
  %v408 = vsel %vm403, %v292, 0
  %v411 = vsel %vm403, %v293, 0
  %v414 = vsel %vm403, %v294, 0
  %v417 = vsel %vm403, %v295, 0
  %v420 = vsel %vm403, %v296, 0
  %v423 = vsel %vm403, %v297, 0
  %v426 = vsel %vm403, %v298, 0
  %v429 = vsel %vm403, %v299, 0
  %v432 = vsel %vm403, %v300, 0
  %v435 = vsel %vm403, %v301, 0
  %v438 = vsel %vm403, %v302, 0
  %v441 = vsel %vm403, %v303, 0
  %v444 = vsel %vm403, %v304, 0
  %v447 = vsel %vm403, %v305, 0
  %v450 = vsel %vm403, %v306, 0
  %452 = vmatprep.subr.mxu0 %v276
  %453 = vmatpush1.msra.mxu0 %v275
  %454 = vmatprep.subr.mxu0 %v278
  %455 = vmatpush1.msra.mxu0 %v277
  %456 = vmatprep.subr.mxu0 %v280
  %457 = vmatpush1.msra.mxu0 %v279
  %458 = vmatprep.subr.mxu0 %v282
  %459 = vmatpush1.msra.mxu0 %v281
  %460 = vmatprep.subr.mxu0 %v284
  %461 = vmatpush1.msra.mxu0 %v283
  %462 = vmatprep.subr.mxu0 %v286
  %463 = vmatpush1.msra.mxu0 %v285
  %464 = vmatprep.subr.mxu0 %v288
  %465 = vmatpush1.msra.mxu0 %v287
  %466 = vmatprep.subr.mxu0 %v290
  %467 = vmatpush1.msra.mxu0 %v289
  %468 = vmatprep.subr.mxu0 0.0
  %469 = vmatpush1.msra.mxu0 0.0
  %470 = vmatprep.subr.mxu0 0.0
  %471 = vmatpush1.msra.mxu0 0.0
  %472 = vmatprep.subr.mxu0 0.0
  %473 = vmatpush1.msra.mxu0 0.0
  %474 = vmatprep.subr.mxu0 0.0
  %475 = vmatpush1.msra.mxu0 0.0
  %476 = vmatprep.subr.mxu0 0.0
  %477 = vmatpush1.msra.mxu0 0.0
  %478 = vmatprep.subr.mxu0 0.0
  %479 = vmatpush1.msra.mxu0 0.0
  %480 = vmatprep.subr.mxu0 0.0
  %481 = vmatpush1.msra.mxu0 0.0
  %482 = vmatprep.subr.mxu0 0.0
  %483 = vmatpush1.msra.mxu0 0.0
  %484 = vmatprep.subr.mxu0 0.0
  %485 = vmatpush1.msra.mxu0 0.0
  %486 = vmatprep.subr.mxu0 0.0
  %487 = vmatpush1.msra.mxu0 0.0
  %488 = vmatprep.subr.mxu0 0.0
  %489 = vmatpush1.msra.mxu0 0.0
  %490 = vmatprep.subr.mxu0 0.0
  %491 = vmatpush1.msra.mxu0 0.0
  %492 = vmatprep.subr.mxu0 0.0
  %493 = vmatpush1.msra.mxu0 0.0
  %494 = vmatprep.subr.mxu0 0.0
  %495 = vmatpush1.msra.mxu0 0.0
  %496 = vmatprep.subr.mxu0 0.0
  %497 = vmatpush1.msra.mxu0 0.0
  %498 = vmatprep.subr.mxu0 0.0
  %499 = vmatpush1.msra.mxu0 0.0
  %500 = vmatprep.subr.mxu0 0.0
  %501 = vmatpush1.msra.mxu0 0.0
  %502 = vmatprep.subr.mxu0 0.0
  %503 = vmatpush1.msra.mxu0 0.0
  %504 = vmatprep.subr.mxu0 0.0
  %505 = vmatpush1.msra.mxu0 0.0
  %506 = vmatprep.subr.mxu0 0.0
  %507 = vmatpush1.msra.mxu0 0.0
  %508 = vmatprep.subr.mxu0 0.0
  %509 = vmatpush1.msra.mxu0 0.0
  %510 = vmatprep.subr.mxu0 0.0
  %511 = vmatpush1.msra.mxu0 0.0
  %512 = vmatprep.subr.mxu0 0.0
  %513 = vmatpush1.msra.mxu0 0.0
  %514 = vmatprep.subr.mxu0 0.0
  %515 = vmatpush1.msra.mxu0 0.0
  %516 = vmatprep.mubr.f32.mxu0 0.0
  %517 = vmatmul.mubr.f32.gmra.mrb[0].mxu0 %v405
  %v518 = vpop.f32.mrb[0].mxu0
  %v519 = vadd.f32 %v326, %v518
  %v520 = vpop.f32.mrb[0].mxu0
  %v521 = vadd.f32 %v326, %v520
  %522 = vmatprep.mubr.f32.mxu0 0.0
  %523 = vmatmul.mubr.f32.gmra.mrb[0].mxu0 %v408
  %v524 = vpop.f32.mrb[0].mxu0
  %v525 = vadd.f32 %v331, %v524
  %v526 = vpop.f32.mrb[0].mxu0
  %v527 = vadd.f32 %v331, %v526
  %528 = vmatprep.mubr.f32.mxu0 0.0
  %529 = vmatmul.mubr.f32.gmra.mrb[0].mxu0 %v411
  %v530 = vpop.f32.mrb[0].mxu0
  %v531 = vadd.f32 %v336, %v530
  %v532 = vpop.f32.mrb[0].mxu0
  %v533 = vadd.f32 %v336, %v532
  %534 = vmatprep.mubr.f32.mxu0 0.0
  %535 = vmatmul.mubr.f32.gmra.mrb[0].mxu0 %v414
  %v536 = vpop.f32.mrb[0].mxu0
  %v537 = vadd.f32 %v341, %v536
  %v538 = vpop.f32.mrb[0].mxu0
  %v539 = vadd.f32 %v341, %v538
  %540 = vmatprep.mubr.f32.mxu0 0.0
  %541 = vmatmul.mubr.f32.gmra.mrb[0].mxu0 %v417
  %v542 = vpop.f32.mrb[0].mxu0
  %v543 = vadd.f32 %v346, %v542
  %v544 = vpop.f32.mrb[0].mxu0
  %v545 = vadd.f32 %v346, %v544
  %546 = vmatprep.mubr.f32.mxu0 0.0
  %547 = vmatmul.mubr.f32.gmra.mrb[0].mxu0 %v420
  %v548 = vpop.f32.mrb[0].mxu0
  %v549 = vadd.f32 %v351, %v548
  %v550 = vpop.f32.mrb[0].mxu0
  %v551 = vadd.f32 %v351, %v550
  %552 = vmatprep.mubr.f32.mxu0 0.0
  %553 = vmatmul.mubr.f32.gmra.mrb[0].mxu0 %v423
  %v554 = vpop.f32.mrb[0].mxu0
  %v555 = vadd.f32 %v356, %v554
  %v556 = vpop.f32.mrb[0].mxu0
  %v557 = vadd.f32 %v356, %v556
  %558 = vmatprep.mubr.f32.mxu0 0.0
  %559 = vmatmul.mubr.f32.gmra.mrb[0].mxu0 %v426
  %v560 = vpop.f32.mrb[0].mxu0
  %v561 = vadd.f32 %v361, %v560
  %v562 = vpop.f32.mrb[0].mxu0
  %v563 = vadd.f32 %v361, %v562
  %564 = vmatprep.mubr.f32.mxu0 0.0
  %565 = vmatmul.mubr.f32.gmra.mrb[0].mxu0 %v429
  %v566 = vpop.f32.mrb[0].mxu0
  %v567 = vadd.f32 %v366, %v566
  %v568 = vpop.f32.mrb[0].mxu0
  %v569 = vadd.f32 %v366, %v568
  %570 = vmatprep.mubr.f32.mxu0 0.0
  %571 = vmatmul.mubr.f32.gmra.mrb[0].mxu0 %v432
  %v572 = vpop.f32.mrb[0].mxu0
  %v573 = vadd.f32 %v371, %v572
  %v574 = vpop.f32.mrb[0].mxu0
  %v575 = vadd.f32 %v371, %v574
  %576 = vmatprep.mubr.f32.mxu0 0.0
  %577 = vmatmul.mubr.f32.gmra.mrb[0].mxu0 %v435
  %v578 = vpop.f32.mrb[0].mxu0
  %v579 = vadd.f32 %v376, %v578
  %v580 = vpop.f32.mrb[0].mxu0
  %v581 = vadd.f32 %v376, %v580
  %582 = vmatprep.mubr.f32.mxu0 0.0
  %583 = vmatmul.mubr.f32.gmra.mrb[0].mxu0 %v438
  %v584 = vpop.f32.mrb[0].mxu0
  %v585 = vadd.f32 %v381, %v584
  %v586 = vpop.f32.mrb[0].mxu0
  %v587 = vadd.f32 %v381, %v586
  %588 = vmatprep.mubr.f32.mxu0 0.0
  %589 = vmatmul.mubr.f32.gmra.mrb[0].mxu0 %v441
  %v590 = vpop.f32.mrb[0].mxu0
  %v591 = vadd.f32 %v386, %v590
  %v592 = vpop.f32.mrb[0].mxu0
  %v593 = vadd.f32 %v386, %v592
  %594 = vmatprep.mubr.f32.mxu0 0.0
  %595 = vmatmul.mubr.f32.gmra.mrb[0].mxu0 %v444
  %v596 = vpop.f32.mrb[0].mxu0
  %v597 = vadd.f32 %v391, %v596
  %v598 = vpop.f32.mrb[0].mxu0
  %v599 = vadd.f32 %v391, %v598
  %600 = vmatprep.mubr.f32.mxu0 0.0
  %601 = vmatmul.mubr.f32.gmra.mrb[0].mxu0 %v447
  %v602 = vpop.f32.mrb[0].mxu0
  %v603 = vadd.f32 %v396, %v602
  %v604 = vpop.f32.mrb[0].mxu0
  %v605 = vadd.f32 %v396, %v604
  %606 = vmatprep.mubr.f32.mxu0 0.0
  %607 = vmatmul.mubr.f32.gmra.mrb[0].mxu0 %v450
  %v608 = vpop.f32.mrb[0].mxu0
  %v609 = vadd.f32 %v401, %v608
  %v610 = vpop.f32.mrb[0].mxu0
  %v611 = vadd.f32 %v401, %v610
  %612 = vdwg.mxu0
  %vm613 = vcmp.ge.f32.partialorder %v519, 0.0
  %vm614 = vcmp.ge.f32.partialorder %v521, 0.0
  %vm615 = vcmp.ge.f32.partialorder %v525, 0.0
  %vm616 = vcmp.ge.f32.partialorder %v527, 0.0
  %vm617 = vcmp.ge.f32.partialorder %v531, 0.0
  %vm618 = vcmp.ge.f32.partialorder %v533, 0.0
  %vm619 = vcmp.ge.f32.partialorder %v537, 0.0
  %vm620 = vcmp.ge.f32.partialorder %v539, 0.0
  %vm621 = vcmp.ge.f32.partialorder %v543, 0.0
  %vm622 = vcmp.ge.f32.partialorder %v545, 0.0
  %vm623 = vcmp.ge.f32.partialorder %v549, 0.0
  %vm624 = vcmp.ge.f32.partialorder %v551, 0.0
  %vm625 = vcmp.ge.f32.partialorder %v555, 0.0
  %vm626 = vcmp.ge.f32.partialorder %v557, 0.0
  %vm627 = vcmp.ge.f32.partialorder %v561, 0.0
  %vm628 = vcmp.ge.f32.partialorder %v563, 0.0
  %vm629 = vcmp.ge.f32.partialorder %v567, 0.0
  %vm630 = vcmp.ge.f32.partialorder %v569, 0.0
  %vm631 = vcmp.ge.f32.partialorder %v573, 0.0
  %vm632 = vcmp.ge.f32.partialorder %v575, 0.0
  %vm633 = vcmp.ge.f32.partialorder %v579, 0.0
  %vm634 = vcmp.ge.f32.partialorder %v581, 0.0
  %vm635 = vcmp.ge.f32.partialorder %v585, 0.0
  %vm636 = vcmp.ge.f32.partialorder %v587, 0.0
  %vm637 = vcmp.ge.f32.partialorder %v591, 0.0
  %vm638 = vcmp.ge.f32.partialorder %v593, 0.0
  %vm639 = vcmp.ge.f32.partialorder %v597, 0.0
  %vm640 = vcmp.ge.f32.partialorder %v599, 0.0
  %vm641 = vcmp.ge.f32.partialorder %v603, 0.0
  %vm642 = vcmp.ge.f32.partialorder %v605, 0.0
  %vm643 = vcmp.ge.f32.partialorder %v609, 0.0
  %vm644 = vcmp.ge.f32.partialorder %v611, 0.0
  %v645 = vmul.f32 %v519, 0.01
  %v646 = vmul.f32 %v521, 0.01
  %v647 = vmul.f32 %v525, 0.01
  %v648 = vmul.f32 %v527, 0.01
  %v649 = vmul.f32 %v531, 0.01
  %v650 = vmul.f32 %v533, 0.01
  %v651 = vmul.f32 %v537, 0.01
  %v652 = vmul.f32 %v539, 0.01
  %v653 = vmul.f32 %v543, 0.01
  %v654 = vmul.f32 %v545, 0.01
  %v655 = vmul.f32 %v549, 0.01
  %v656 = vmul.f32 %v551, 0.01
  %v657 = vmul.f32 %v555, 0.01
  %v658 = vmul.f32 %v557, 0.01
  %v659 = vmul.f32 %v561, 0.01
  %v660 = vmul.f32 %v563, 0.01
  %v661 = vmul.f32 %v567, 0.01
  %v662 = vmul.f32 %v569, 0.01
  %v663 = vmul.f32 %v573, 0.01
  %v664 = vmul.f32 %v575, 0.01
  %v665 = vmul.f32 %v579, 0.01
  %v666 = vmul.f32 %v581, 0.01
  %v667 = vmul.f32 %v585, 0.01
  %v668 = vmul.f32 %v587, 0.01
  %v669 = vmul.f32 %v591, 0.01
  %v670 = vmul.f32 %v593, 0.01
  %v671 = vmul.f32 %v597, 0.01
  %v672 = vmul.f32 %v599, 0.01
  %v673 = vmul.f32 %v603, 0.01
  %v674 = vmul.f32 %v605, 0.01
  %v675 = vmul.f32 %v609, 0.01
  %v676 = vmul.f32 %v611, 0.01
  %v677 = vsel %vm613, %v519, %v645
  %v678 = vsel %vm614, %v521, %v646
  %v679 = vsel %vm615, %v525, %v647
  %v680 = vsel %vm616, %v527, %v648
  %v681 = vsel %vm617, %v531, %v649
  %v682 = vsel %vm618, %v533, %v650
  %v683 = vsel %vm619, %v537, %v651
  %v684 = vsel %vm620, %v539, %v652
  %v685 = vsel %vm621, %v543, %v653
  %v686 = vsel %vm622, %v545, %v654
  %v687 = vsel %vm623, %v549, %v655
  %v688 = vsel %vm624, %v551, %v656
  %v689 = vsel %vm625, %v555, %v657
  %v690 = vsel %vm626, %v557, %v658
  %v691 = vsel %vm627, %v561, %v659
  %v692 = vsel %vm628, %v563, %v660
  %v693 = vsel %vm629, %v567, %v661
  %v694 = vsel %vm630, %v569, %v662
  %v695 = vsel %vm631, %v573, %v663
  %v696 = vsel %vm632, %v575, %v664
  %v697 = vsel %vm633, %v579, %v665
  %v698 = vsel %vm634, %v581, %v666
  %v699 = vsel %vm635, %v585, %v667
  %v700 = vsel %vm636, %v587, %v668
  %v701 = vsel %vm637, %v591, %v669
  %v702 = vsel %vm638, %v593, %v670
  %v703 = vsel %vm639, %v597, %v671
  %v704 = vsel %vm640, %v599, %v672
  %v705 = vsel %vm641, %v603, %v673
  %v706 = vsel %vm642, %v605, %v674
  %v707 = vsel %vm643, %v609, %v675
  %v708 = vsel %vm644, %v611, %v676
  %v709 = vld [vmem:[%s10] sm:$0x3]
  %v710 = vld [vmem:[%s11] sm:$0x3]
  %712 = vset.pattern.permute.xlu0 0
  %713 = vperm.xlu0 %712, %v710
  %v714 = vpop.permute.xlu0 %713
  %716 = vmatprep.subr.mxu0 %v678
  %717 = vmatpush1.msra.mxu0 %v677
  %718 = vmatprep.subr.mxu0 %v680
  %719 = vmatpush1.msra.mxu0 %v679
  %720 = vmatprep.subr.mxu0 %v682
  %721 = vmatpush1.msra.mxu0 %v681
  %722 = vmatprep.subr.mxu0 %v684
  %723 = vmatpush1.msra.mxu0 %v683
  %724 = vmatprep.subr.mxu0 %v686
  %725 = vmatpush1.msra.mxu0 %v685
  %726 = vmatprep.subr.mxu0 %v688
  %727 = vmatpush1.msra.mxu0 %v687
  %728 = vmatprep.subr.mxu0 %v690
  %729 = vmatpush1.msra.mxu0 %v689
  %730 = vmatprep.subr.mxu0 %v692
  %731 = vmatpush1.msra.mxu0 %v691
  %732 = vmatprep.subr.mxu0 %v694
  %733 = vmatpush1.msra.mxu0 %v693
  %734 = vmatprep.subr.mxu0 %v696
  %735 = vmatpush1.msra.mxu0 %v695
  %736 = vmatprep.subr.mxu0 %v698
  %737 = vmatpush1.msra.mxu0 %v697
  %738 = vmatprep.subr.mxu0 %v700
  %739 = vmatpush1.msra.mxu0 %v699
  %740 = vmatprep.subr.mxu0 %v702
  %741 = vmatpush1.msra.mxu0 %v701
  %742 = vmatprep.subr.mxu0 %v704
  %743 = vmatpush1.msra.mxu0 %v703
  %744 = vmatprep.subr.mxu0 %v706
  %745 = vmatpush1.msra.mxu0 %v705
  %746 = vmatprep.subr.mxu0 %v708
  %747 = vmatpush1.msra.mxu0 %v707
  %748 = vmatprep.subr.mxu0 0.0
  %749 = vmatpush1.msra.mxu0 0.0
  %750 = vmatprep.subr.mxu0 0.0
  %751 = vmatpush1.msra.mxu0 0.0
  %752 = vmatprep.subr.mxu0 0.0
  %753 = vmatpush1.msra.mxu0 0.0
  %754 = vmatprep.subr.mxu0 0.0
  %755 = vmatpush1.msra.mxu0 0.0
  %756 = vmatprep.subr.mxu0 0.0
  %757 = vmatpush1.msra.mxu0 0.0
  %758 = vmatprep.subr.mxu0 0.0
  %759 = vmatpush1.msra.mxu0 0.0
  %760 = vmatprep.subr.mxu0 0.0
  %761 = vmatpush1.msra.mxu0 0.0
  %762 = vmatprep.subr.mxu0 0.0
  %763 = vmatpush1.msra.mxu0 0.0
  %764 = vmatprep.subr.mxu0 0.0
  %765 = vmatpush1.msra.mxu0 0.0
  %766 = vmatprep.subr.mxu0 0.0
  %767 = vmatpush1.msra.mxu0 0.0
  %768 = vmatprep.subr.mxu0 0.0
  %769 = vmatpush1.msra.mxu0 0.0
  %770 = vmatprep.subr.mxu0 0.0
  %771 = vmatpush1.msra.mxu0 0.0
  %772 = vmatprep.subr.mxu0 0.0
  %773 = vmatpush1.msra.mxu0 0.0
  %774 = vmatprep.subr.mxu0 0.0
  %775 = vmatpush1.msra.mxu0 0.0
  %776 = vmatprep.subr.mxu0 0.0
  %777 = vmatpush1.msra.mxu0 0.0
  %778 = vmatprep.subr.mxu0 0.0
  %779 = vmatpush1.msra.mxu0 0.0
  %780 = vmatprep.mubr.f32.mxu0 0.0
  %781 = vmatmul.mubr.f32.gmra.mrb[0].mxu0 %v709
  %v782 = vpop.f32.mrb[0].mxu0
  %v783 = vadd.f32 %v714, %v782
  %v784 = vpop.f32.mrb[0].mxu0
  %v785 = vadd.f32 %v714, %v784
  %786 = vdwg.mxu0
  %vm787 = vcmask 122880
  %788 = vst.msk [vmem:[#allocation2] sm:$0x1] %vm787, %v783
  %790 = vrot.lane.b32.xlu0 %v783, 16
  %v791 = vpop.permute.xlu0 %790
  %vm793 = vcmask 255105
  %794 = vst.msk [vmem:[#allocation2 - $0x1] sm:$0x2] %vm793, %v791
  %795 = vrot.lane.b32.xlu0 %v783, 112
  %v796 = vpop.permute.xlu0 %795
  %798 = vst.msk [vmem:[#allocation2 + $0x1] sm:$0x1] %vm787, %v796
  %799 = vst.msk [vmem:[#allocation2] sm:$0x2] %vm793, %v783
  %800 = vrot.lane.b32.xlu0 %v783, 96
  %v801 = vpop.permute.xlu0 %800
  %803 = vst.msk [vmem:[#allocation2 + $0x2] sm:$0x1] %vm787, %v801
  %804 = vst.msk [vmem:[#allocation2 + $0x1] sm:$0x2] %vm793, %v796
  %805 = vrot.lane.b32.xlu0 %v783, 80
  %v806 = vpop.permute.xlu0 %805
  %808 = vst.msk [vmem:[#allocation2 + $0x3] sm:$0x1] %vm787, %v806
  %809 = vst.msk [vmem:[#allocation2 + $0x2] sm:$0x2] %vm793, %v801
  %810 = vrot.lane.b32.xlu0 %v783, 64
  %v811 = vpop.permute.xlu0 %810
  %813 = vst.msk [vmem:[#allocation2 + $0x4] sm:$0x1] %vm787, %v811
  %814 = vst.msk [vmem:[#allocation2 + $0x3] sm:$0x2] %vm793, %v806
  %815 = vrot.lane.b32.xlu0 %v783, 48
  %v816 = vpop.permute.xlu0 %815
  %818 = vst.msk [vmem:[#allocation2 + $0x5] sm:$0x1] %vm787, %v816
  %819 = vst.msk [vmem:[#allocation2 + $0x4] sm:$0x2] %vm793, %v811
  %820 = vrot.lane.b32.xlu0 %v783, 32
  %v821 = vpop.permute.xlu0 %820
  %823 = vst.msk [vmem:[#allocation2 + $0x6] sm:$0x1] %vm787, %v821
  %824 = vst.msk [vmem:[#allocation2 + $0x5] sm:$0x2] %vm793, %v816
  %825 = vst.msk [vmem:[#allocation2 + $0x7] sm:$0x1] %vm787, %v791
  %826 = vst.msk [vmem:[#allocation2 + $0x6] sm:$0x2] %vm793, %v821
  %827 = vst.msk [vmem:[#allocation2 + $0x8] sm:$0x1] %vm787, %v785
  %829 = vrot.lane.b32.xlu0 %v785, 16
  %v830 = vpop.permute.xlu0 %829
  %832 = vst.msk [vmem:[#allocation2 + $0x7] sm:$0x2] %vm793, %v830
  %833 = vrot.lane.b32.xlu0 %v785, 112
  %v834 = vpop.permute.xlu0 %833
  %836 = vst.msk [vmem:[#allocation2 + $0x9] sm:$0x1] %vm787, %v834
  %837 = vst.msk [vmem:[#allocation2 + $0x8] sm:$0x2] %vm793, %v785
  %838 = vrot.lane.b32.xlu0 %v785, 96
  %v839 = vpop.permute.xlu0 %838
  %841 = vst.msk [vmem:[#allocation2 + $0xa] sm:$0x1] %vm787, %v839
  %842 = vst.msk [vmem:[#allocation2 + $0x9] sm:$0x2] %vm793, %v834
  %843 = vrot.lane.b32.xlu0 %v785, 80
  %v844 = vpop.permute.xlu0 %843
  %846 = vst.msk [vmem:[#allocation2 + $0xb] sm:$0x1] %vm787, %v844
  %847 = vst.msk [vmem:[#allocation2 + $0xa] sm:$0x2] %vm793, %v839
  %848 = vrot.lane.b32.xlu0 %v785, 64
  %v849 = vpop.permute.xlu0 %848
  %851 = vst.msk [vmem:[#allocation2 + $0xc] sm:$0x1] %vm787, %v849
  %852 = vst.msk [vmem:[#allocation2 + $0xb] sm:$0x2] %vm793, %v844
  %853 = vrot.lane.b32.xlu0 %v785, 48
  %v854 = vpop.permute.xlu0 %853
  %856 = vst.msk [vmem:[#allocation2 + $0xd] sm:$0x1] %vm787, %v854
  %857 = vst.msk [vmem:[#allocation2 + $0xc] sm:$0x2] %vm793, %v849
  %858 = vrot.lane.b32.xlu0 %v785, 32
  %v859 = vpop.permute.xlu0 %858
  %861 = vst.msk [vmem:[#allocation2 + $0xe] sm:$0x1] %vm787, %v859
  %862 = vst.msk [vmem:[#allocation2 + $0xd] sm:$0x2] %vm793, %v854
  %863 = vst.msk [vmem:[#allocation2 + $0xf] sm:$0x1] %vm787, %v830
  %864 = vst.msk [vmem:[#allocation2 + $0xe] sm:$0x2] %vm793, %v859
  %v865 = vld [vmem:[#allocation2] sm:$0xff]
  %v866 = vld [vmem:[#allocation2 + $0x8] sm:$0xff]
  %v867 = vld [vmem:[%s0] sm:$0xff]
  %v868 = vld [vmem:[%s0 + $0x8] sm:$0xff]
  %v869 = vld [vmem:[%s0 + $0x10] sm:$0xff]
  %v870 = vld [vmem:[%s0 + $0x18] sm:$0xff]
  %v871 = vld [vmem:[%s1] sm:$0xff]
  %v872 = vld [vmem:[%s1 + $0x8] sm:$0xff]
  %v873 = vld [vmem:[%s1 + $0x10] sm:$0xff]
  %v874 = vld [vmem:[%s1 + $0x18] sm:$0xff]
  %v875 = vld [vmem:[%s2] sm:$0xff]
  %v876 = vld [vmem:[%s2 + $0x8] sm:$0xff]
  %v877 = vld [vmem:[%s2 + $0x10] sm:$0xff]
  %v878 = vld [vmem:[%s2 + $0x18] sm:$0xff]
  %vm879 = vcmask 64512
  %v880 = vsel %vm879, %v867, 0.0
  %v881 = vsel %vm879, %v868, 0.0
  %v882 = vadd.f32 %v880, %v881
  %v883 = vsel %vm879, %v869, 0.0
  %v884 = vadd.f32 %v882, %v883
  %v885 = vsel %vm879, %v870, 0.0
  %v886 = vadd.f32 %v884, %v885
  %887 = vadd.xlane.f32.xlu0 %v886
  %v888 = vpop.xlane.xlu0 %887
  %v889 = vrot.slane %v888, 4
  %v890 = vadd.f32 %v888, %v889
  %v891 = vrot.slane %v890, 2
  %v892 = vadd.f32 %v890, %v891
  %v893 = vrot.slane %v892, 1
  %v894 = vadd.f32 %v892, %v893
  %s895 = vtos %v894
  %v896 = vrcp.pop 256.0
  %s897 = vtos %v896
  %s898 = smul.f32 %s895, %s897
  %v899 = vstv %s898
  %v900 = vsub.f32 %v867, %v899
  %v901 = vsub.f32 %v868, %v899
  %v902 = vsub.f32 %v869, %v899
  %v903 = vsub.f32 %v870, %v899
  %v904 = vmul.f32 %v900, %v900
  %v905 = vmul.f32 %v901, %v901
  %v906 = vmul.f32 %v902, %v902
  %v907 = vmul.f32 %v903, %v903
  %v908 = vsel %vm879, %v904, 0.0
  %v909 = vsel %vm879, %v905, 0.0
  %v910 = vadd.f32 %v908, %v909
  %v911 = vsel %vm879, %v906, 0.0
  %v912 = vadd.f32 %v910, %v911
  %v913 = vsel %vm879, %v907, 0.0
  %v914 = vadd.f32 %v912, %v913
  %915 = vadd.xlane.f32.xlu0 %v914
  %v916 = vpop.xlane.xlu0 %915
  %v917 = vrot.slane %v916, 4
  %v918 = vadd.f32 %v916, %v917
  %v919 = vrot.slane %v918, 2
  %v920 = vadd.f32 %v918, %v919
  %v921 = vrot.slane %v920, 1
  %v922 = vadd.f32 %v920, %v921
  %s923 = vtos %v922
  %v924 = vrcp.pop 256.0
  %s925 = vtos %v924
  %s926 = smul.f32 %s923, %s925
  %s927 = sadd.f32 %s926, 1e-05
  %v928 = vstv %s927
  %v929 = vrsqrt.pop %v928
  %s930 = vtos %v929
  %v931 = vstv %s930
  %v932 = vmul.f32 %v900, %v931
  %v933 = vmul.f32 %v901, %v931
  %v934 = vmul.f32 %v902, %v931
  %v935 = vmul.f32 %v903, %v931
  %v936 = vmul.f32 %v932, %v871
  %v937 = vmul.f32 %v933, %v872
  %v938 = vmul.f32 %v934, %v873
  %v939 = vmul.f32 %v935, %v874
  %v940 = vadd.f32 %v936, %v875
  %v941 = vadd.f32 %v937, %v876
  %v942 = vadd.f32 %v938, %v877
  %v943 = vadd.f32 %v939, %v878
  %v944 = vld [vmem:[%s3] sm:$0xff]
  %v945 = vld [vmem:[%s4] sm:$0x1]
  %v947 = vlaneseq
  %v948 = vshrl.u32 %v947, 7
  %v949 = vsub.s32 0, %v948
  %v950 = vrot.slane %v945, %v949
  %v953 = vsel %vm879, %v940, 0
  %v956 = vsel %vm879, %v941, 0
  %v959 = vsel %vm879, %v942, 0
  %v962 = vsel %vm879, %v943, 0
  %964 = vmatprep.subr.mxu0 0.0
  %965 = vmatpush1.msra.mxu0 %v944
  %966 = vmatprep.subr.mxu0 0.0
  %967 = vmatpush1.msra.mxu0 0.0
  %968 = vmatprep.subr.mxu0 0.0
  %969 = vmatpush1.msra.mxu0 0.0
  %970 = vmatprep.subr.mxu0 0.0
  %971 = vmatpush1.msra.mxu0 0.0
  %972 = vmatprep.subr.mxu0 0.0
  %973 = vmatpush1.msra.mxu0 0.0
  %974 = vmatprep.subr.mxu0 0.0
  %975 = vmatpush1.msra.mxu0 0.0
  %976 = vmatprep.subr.mxu0 0.0
  %977 = vmatpush1.msra.mxu0 0.0
  %978 = vmatprep.subr.mxu0 0.0
  %979 = vmatpush1.msra.mxu0 0.0
  %980 = vmatprep.subr.mxu0 0.0
  %981 = vmatpush1.msra.mxu0 0.0
  %982 = vmatprep.subr.mxu0 0.0
  %983 = vmatpush1.msra.mxu0 0.0
  %984 = vmatprep.subr.mxu0 0.0
  %985 = vmatpush1.msra.mxu0 0.0
  %986 = vmatprep.subr.mxu0 0.0
  %987 = vmatpush1.msra.mxu0 0.0
  %988 = vmatprep.subr.mxu0 0.0
  %989 = vmatpush1.msra.mxu0 0.0
  %990 = vmatprep.subr.mxu0 0.0
  %991 = vmatpush1.msra.mxu0 0.0
  %992 = vmatprep.subr.mxu0 0.0
  %993 = vmatpush1.msra.mxu0 0.0
  %994 = vmatprep.subr.mxu0 0.0
  %995 = vmatpush1.msra.mxu0 0.0
  %996 = vmatprep.subr.mxu0 0.0
  %997 = vmatpush1.msra.mxu0 0.0
  %998 = vmatprep.subr.mxu0 0.0
  %999 = vmatpush1.msra.mxu0 0.0
  %1000 = vmatprep.subr.mxu0 0.0
  %1001 = vmatpush1.msra.mxu0 0.0
  %1002 = vmatprep.subr.mxu0 0.0
  %1003 = vmatpush1.msra.mxu0 0.0
  %1004 = vmatprep.subr.mxu0 0.0
  %1005 = vmatpush1.msra.mxu0 0.0
  %1006 = vmatprep.subr.mxu0 0.0
  %1007 = vmatpush1.msra.mxu0 0.0
  %1008 = vmatprep.subr.mxu0 0.0
  %1009 = vmatpush1.msra.mxu0 0.0
  %1010 = vmatprep.subr.mxu0 0.0
  %1011 = vmatpush1.msra.mxu0 0.0
  %1012 = vmatprep.subr.mxu0 0.0
  %1013 = vmatpush1.msra.mxu0 0.0
  %1014 = vmatprep.subr.mxu0 0.0
  %1015 = vmatpush1.msra.mxu0 0.0
  %1016 = vmatprep.subr.mxu0 0.0
  %1017 = vmatpush1.msra.mxu0 0.0
  %1018 = vmatprep.subr.mxu0 0.0
  %1019 = vmatpush1.msra.mxu0 0.0
  %1020 = vmatprep.subr.mxu0 0.0
  %1021 = vmatpush1.msra.mxu0 0.0
  %1022 = vmatprep.subr.mxu0 0.0
  %1023 = vmatpush1.msra.mxu0 0.0
  %1024 = vmatprep.subr.mxu0 0.0
  %1025 = vmatpush1.msra.mxu0 0.0
  %1026 = vmatprep.subr.mxu0 0.0
  %1027 = vmatpush1.msra.mxu0 0.0
  %1028 = vmatprep.mubr.f32.mxu0 0.0
  %1029 = vmatmul.mubr.f32.gmra.mrb[0].mxu0 %v953
  %v1030 = vpop.f32.mrb[0].mxu0
  %v1031 = vadd.f32 %v950, %v1030
  %v1032 = vpop.f32.mrb[0].mxu0
  %1033 = vmatprep.mubr.f32.mxu0 0.0
  %1034 = vmatmul.mubr.f32.gmra.mrb[0].mxu0 %v956
  %v1035 = vpop.f32.mrb[0].mxu0
  %v1036 = vadd.f32 %v950, %v1035
  %v1037 = vpop.f32.mrb[0].mxu0
  %1038 = vmatprep.mubr.f32.mxu0 0.0
  %1039 = vmatmul.mubr.f32.gmra.mrb[0].mxu0 %v959
  %v1040 = vpop.f32.mrb[0].mxu0
  %v1041 = vadd.f32 %v950, %v1040
  %v1042 = vpop.f32.mrb[0].mxu0
  %1043 = vmatprep.mubr.f32.mxu0 0.0
  %1044 = vmatmul.mubr.f32.gmra.mrb[0].mxu0 %v962
  %v1045 = vpop.f32.mrb[0].mxu0
  %v1046 = vadd.f32 %v950, %v1045
  %v1047 = vpop.f32.mrb[0].mxu0
  %1048 = vdwg.mxu0
  %1053 = vrot.lane.b32.xlu0 %v1031, 112
  %v1054 = vpop.permute.xlu0 %1053
  %1055 = vrot.lane.b32.xlu0 %v1036, 112
  %v1056 = vpop.permute.xlu0 %1055
  %1057 = vrot.lane.b32.xlu0 %v1041, 112
  %v1058 = vpop.permute.xlu0 %1057
  %1059 = vrot.lane.b32.xlu0 %v1046, 112
  %v1060 = vpop.permute.xlu0 %1059
  %1061 = vrot.lane.b32.xlu0 %v1031, 104
  %v1062 = vpop.permute.xlu0 %1061
  %1063 = vrot.lane.b32.xlu0 %v1036, 104
  %v1064 = vpop.permute.xlu0 %1063
  %1065 = vrot.lane.b32.xlu0 %v1041, 104
  %v1066 = vpop.permute.xlu0 %1065
  %1067 = vrot.lane.b32.xlu0 %v1046, 104
  %v1068 = vpop.permute.xlu0 %1067
  %v1069 = vsel %vm879, %v1054, 0
  %v1071 = vsel %vm879, %v1056, 0
  %v1073 = vsel %vm879, %v1058, 0
  %v1075 = vsel %vm879, %v1060, 0
  %v1077 = vsel %vm879, %v1062, 0
  %v1079 = vsel %vm879, %v1064, 0
  %v1081 = vsel %vm879, %v1066, 0
  %v1083 = vsel %vm879, %v1068, 0
  %1085 = vmatprep.subr.mxu0 0.0
  %1086 = vmatpush1.xpose.msra.mxu0 %v1077
  %1087 = vmatprep.subr.mxu0 0.0
  %1088 = vmatpush1.xpose.msra.mxu0 %v1079
  %1089 = vmatprep.subr.mxu0 0.0
  %1090 = vmatpush1.xpose.msra.mxu0 %v1081
  %1091 = vmatprep.subr.mxu0 0.0
  %1092 = vmatpush1.xpose.msra.mxu0 %v1083
  %1093 = vmatprep.subr.mxu0 0.0
  %1094 = vmatpush1.xpose.msra.mxu0 0.0
  %1095 = vmatprep.subr.mxu0 0.0
  %1096 = vmatpush1.xpose.msra.mxu0 0.0
  %1097 = vmatprep.subr.mxu0 0.0
  %1098 = vmatpush1.xpose.msra.mxu0 0.0
  %1099 = vmatprep.subr.mxu0 0.0
  %1100 = vmatpush1.xpose.msra.mxu0 0.0
  %1101 = vmatprep.subr.mxu0 0.0
  %1102 = vmatpush1.xpose.msra.mxu0 0.0
  %1103 = vmatprep.subr.mxu0 0.0
  %1104 = vmatpush1.xpose.msra.mxu0 0.0
  %1105 = vmatprep.subr.mxu0 0.0
  %1106 = vmatpush1.xpose.msra.mxu0 0.0
  %1107 = vmatprep.subr.mxu0 0.0
  %1108 = vmatpush1.xpose.msra.mxu0 0.0
  %1109 = vmatprep.subr.mxu0 0.0
  %1110 = vmatpush1.xpose.msra.mxu0 0.0
  %1111 = vmatprep.subr.mxu0 0.0
  %1112 = vmatpush1.xpose.msra.mxu0 0.0
  %1113 = vmatprep.subr.mxu0 0.0
  %1114 = vmatpush1.xpose.msra.mxu0 0.0
  %1115 = vmatprep.subr.mxu0 0.0
  %1116 = vmatpush1.xpose.msra.mxu0 0.0
  %1117 = vmatprep.subr.mxu0 0.0
  %1118 = vmatpush1.xpose.msra.mxu0 0.0
  %1119 = vmatprep.subr.mxu0 0.0
  %1120 = vmatpush1.xpose.msra.mxu0 0.0
  %1121 = vmatprep.subr.mxu0 0.0
  %1122 = vmatpush1.xpose.msra.mxu0 0.0
  %1123 = vmatprep.subr.mxu0 0.0
  %1124 = vmatpush1.xpose.msra.mxu0 0.0
  %1125 = vmatprep.subr.mxu0 0.0
  %1126 = vmatpush1.xpose.msra.mxu0 0.0
  %1127 = vmatprep.subr.mxu0 0.0
  %1128 = vmatpush1.xpose.msra.mxu0 0.0
  %1129 = vmatprep.subr.mxu0 0.0
  %1130 = vmatpush1.xpose.msra.mxu0 0.0
  %1131 = vmatprep.subr.mxu0 0.0
  %1132 = vmatpush1.xpose.msra.mxu0 0.0
  %1133 = vmatprep.subr.mxu0 0.0
  %1134 = vmatpush1.xpose.msra.mxu0 0.0
  %1135 = vmatprep.subr.mxu0 0.0
  %1136 = vmatpush1.xpose.msra.mxu0 0.0
  %1137 = vmatprep.subr.mxu0 0.0
  %1138 = vmatpush1.xpose.msra.mxu0 0.0
  %1139 = vmatprep.subr.mxu0 0.0
  %1140 = vmatpush1.xpose.msra.mxu0 0.0
  %1141 = vmatprep.subr.mxu0 0.0
  %1142 = vmatpush1.xpose.msra.mxu0 0.0
  %1143 = vmatprep.subr.mxu0 0.0
  %1144 = vmatpush1.xpose.msra.mxu0 0.0
  %1145 = vmatprep.subr.mxu0 0.0
  %1146 = vmatpush1.xpose.msra.mxu0 0.0
  %1147 = vmatprep.subr.mxu0 0.0
  %1148 = vmatpush1.xpose.msra.mxu0 0.0
  %1149 = vmatprep.mubr.f32.mxu0 0.0
  %1150 = vmatmul.mubr.f32.gmra.mrb[0].mxu0 %v1069
  %v1151 = vpop.f32.mrb[0].mxu0
  %v1152 = vadd.f32 0.0, %v1151
  %v1153 = vpop.f32.mrb[0].mxu0
  %1154 = vmatprep.mubr.f32.mxu0 0.0
  %1155 = vmatmul.mubr.f32.gmra.mrb[0].mxu0 %v1071
  %v1156 = vpop.f32.mrb[0].mxu0
  %v1157 = vadd.f32 0.0, %v1156
  %v1158 = vpop.f32.mrb[0].mxu0
  %1159 = vmatprep.mubr.f32.mxu0 0.0
  %1160 = vmatmul.mubr.f32.gmra.mrb[0].mxu0 %v1073
  %v1161 = vpop.f32.mrb[0].mxu0
  %v1162 = vadd.f32 0.0, %v1161
  %v1163 = vpop.f32.mrb[0].mxu0
  %1164 = vmatprep.mubr.f32.mxu0 0.0
  %1165 = vmatmul.mubr.f32.gmra.mrb[0].mxu0 %v1075
  %v1166 = vpop.f32.mrb[0].mxu0
  %v1167 = vadd.f32 0.0, %v1166
  %v1168 = vpop.f32.mrb[0].mxu0
  %1169 = vdwg.mxu0
  %1170 = vrot.lane.b32.xlu0 %v1031, 120
  %v1171 = vpop.permute.xlu0 %1170
  %1172 = vrot.lane.b32.xlu0 %v1036, 120
  %v1173 = vpop.permute.xlu0 %1172
  %1174 = vrot.lane.b32.xlu0 %v1041, 120
  %v1175 = vpop.permute.xlu0 %1174
  %1176 = vrot.lane.b32.xlu0 %v1046, 120
  %v1177 = vpop.permute.xlu0 %1176
  %v1178 = vsel %vm879, %v1031, 0
  %v1180 = vsel %vm879, %v1036, 0
  %v1182 = vsel %vm879, %v1041, 0
  %v1184 = vsel %vm879, %v1046, 0
  %v1186 = vsel %vm879, %v1171, 0
  %v1188 = vsel %vm879, %v1173, 0
  %v1190 = vsel %vm879, %v1175, 0
  %v1192 = vsel %vm879, %v1177, 0
  %1194 = vmatprep.subr.mxu0 0.0
  %1195 = vmatpush1.xpose.msra.mxu0 %v1186
  %1196 = vmatprep.subr.mxu0 0.0
  %1197 = vmatpush1.xpose.msra.mxu0 %v1188
  %1198 = vmatprep.subr.mxu0 0.0
  %1199 = vmatpush1.xpose.msra.mxu0 %v1190
  %1200 = vmatprep.subr.mxu0 0.0
  %1201 = vmatpush1.xpose.msra.mxu0 %v1192
  %1202 = vmatprep.subr.mxu0 0.0
  %1203 = vmatpush1.xpose.msra.mxu0 0.0
  %1204 = vmatprep.subr.mxu0 0.0
  %1205 = vmatpush1.xpose.msra.mxu0 0.0
  %1206 = vmatprep.subr.mxu0 0.0
  %1207 = vmatpush1.xpose.msra.mxu0 0.0
  %1208 = vmatprep.subr.mxu0 0.0
  %1209 = vmatpush1.xpose.msra.mxu0 0.0
  %1210 = vmatprep.subr.mxu0 0.0
  %1211 = vmatpush1.xpose.msra.mxu0 0.0
  %1212 = vmatprep.subr.mxu0 0.0
  %1213 = vmatpush1.xpose.msra.mxu0 0.0
  %1214 = vmatprep.subr.mxu0 0.0
  %1215 = vmatpush1.xpose.msra.mxu0 0.0
  %1216 = vmatprep.subr.mxu0 0.0
  %1217 = vmatpush1.xpose.msra.mxu0 0.0
  %1218 = vmatprep.subr.mxu0 0.0
  %1219 = vmatpush1.xpose.msra.mxu0 0.0
  %1220 = vmatprep.subr.mxu0 0.0
  %1221 = vmatpush1.xpose.msra.mxu0 0.0
  %1222 = vmatprep.subr.mxu0 0.0
  %1223 = vmatpush1.xpose.msra.mxu0 0.0
  %1224 = vmatprep.subr.mxu0 0.0
  %1225 = vmatpush1.xpose.msra.mxu0 0.0
  %1226 = vmatprep.subr.mxu0 0.0
  %1227 = vmatpush1.xpose.msra.mxu0 0.0
  %1228 = vmatprep.subr.mxu0 0.0
  %1229 = vmatpush1.xpose.msra.mxu0 0.0
  %1230 = vmatprep.subr.mxu0 0.0
  %1231 = vmatpush1.xpose.msra.mxu0 0.0
  %1232 = vmatprep.subr.mxu0 0.0
  %1233 = vmatpush1.xpose.msra.mxu0 0.0
  %1234 = vmatprep.subr.mxu0 0.0
  %1235 = vmatpush1.xpose.msra.mxu0 0.0
  %1236 = vmatprep.subr.mxu0 0.0
  %1237 = vmatpush1.xpose.msra.mxu0 0.0
  %1238 = vmatprep.subr.mxu0 0.0
  %1239 = vmatpush1.xpose.msra.mxu0 0.0
  %1240 = vmatprep.subr.mxu0 0.0
  %1241 = vmatpush1.xpose.msra.mxu0 0.0
  %1242 = vmatprep.subr.mxu0 0.0
  %1243 = vmatpush1.xpose.msra.mxu0 0.0
  %1244 = vmatprep.subr.mxu0 0.0
  %1245 = vmatpush1.xpose.msra.mxu0 0.0
  %1246 = vmatprep.subr.mxu0 0.0
  %1247 = vmatpush1.xpose.msra.mxu0 0.0
  %1248 = vmatprep.subr.mxu0 0.0
  %1249 = vmatpush1.xpose.msra.mxu0 0.0
  %1250 = vmatprep.subr.mxu0 0.0
  %1251 = vmatpush1.xpose.msra.mxu0 0.0
  %1252 = vmatprep.subr.mxu0 0.0
  %1253 = vmatpush1.xpose.msra.mxu0 0.0
  %1254 = vmatprep.subr.mxu0 0.0
  %1255 = vmatpush1.xpose.msra.mxu0 0.0
  %1256 = vmatprep.subr.mxu0 0.0
  %1257 = vmatpush1.xpose.msra.mxu0 0.0
  %1258 = vmatprep.mubr.f32.mxu0 0.0
  %1259 = vmatmul.mubr.f32.gmra.mrb[0].mxu0 %v1178
  %v1260 = vpop.f32.mrb[0].mxu0
  %v1261 = vadd.f32 %v1152, %v1260
  %v1262 = vpop.f32.mrb[0].mxu0
  %1263 = vmatprep.mubr.f32.mxu0 0.0
  %1264 = vmatmul.mubr.f32.gmra.mrb[0].mxu0 %v1180
  %v1265 = vpop.f32.mrb[0].mxu0
  %v1266 = vadd.f32 %v1157, %v1265
  %v1267 = vpop.f32.mrb[0].mxu0
  %1268 = vmatprep.mubr.f32.mxu0 0.0
  %1269 = vmatmul.mubr.f32.gmra.mrb[0].mxu0 %v1182
  %v1270 = vpop.f32.mrb[0].mxu0
  %v1271 = vadd.f32 %v1162, %v1270
  %v1272 = vpop.f32.mrb[0].mxu0
  %1273 = vmatprep.mubr.f32.mxu0 0.0
  %1274 = vmatmul.mubr.f32.gmra.mrb[0].mxu0 %v1184
  %v1275 = vpop.f32.mrb[0].mxu0
  %v1276 = vadd.f32 %v1167, %v1275
  %v1277 = vpop.f32.mrb[0].mxu0
  %1278 = vdwg.mxu0
  %vm1279 = vcmask 261120
  %v1281 = vsel %vm1279, %v1261, 0
  %v1284 = vsel %vm1279, %v1266, 0
  %v1287 = vsel %vm1279, %v1271, 0
  %v1290 = vsel %vm1279, %v1276, 0
  %1292 = vmatprep.subr.mxu0 0.0
  %1293 = vmatpush1.msra.mxu0 %v940
  %1294 = vmatprep.subr.mxu0 0.0
  %1295 = vmatpush1.msra.mxu0 %v941
  %1296 = vmatprep.subr.mxu0 0.0
  %1297 = vmatpush1.msra.mxu0 %v942
  %1298 = vmatprep.subr.mxu0 0.0
  %1299 = vmatpush1.msra.mxu0 %v943
  %1300 = vmatprep.subr.mxu0 0.0
  %1301 = vmatpush1.msra.mxu0 0.0
  %1302 = vmatprep.subr.mxu0 0.0
  %1303 = vmatpush1.msra.mxu0 0.0
  %1304 = vmatprep.subr.mxu0 0.0
  %1305 = vmatpush1.msra.mxu0 0.0
  %1306 = vmatprep.subr.mxu0 0.0
  %1307 = vmatpush1.msra.mxu0 0.0
  %1308 = vmatprep.subr.mxu0 0.0
  %1309 = vmatpush1.msra.mxu0 0.0
  %1310 = vmatprep.subr.mxu0 0.0
  %1311 = vmatpush1.msra.mxu0 0.0
  %1312 = vmatprep.subr.mxu0 0.0
  %1313 = vmatpush1.msra.mxu0 0.0
  %1314 = vmatprep.subr.mxu0 0.0
  %1315 = vmatpush1.msra.mxu0 0.0
  %1316 = vmatprep.subr.mxu0 0.0
  %1317 = vmatpush1.msra.mxu0 0.0
  %1318 = vmatprep.subr.mxu0 0.0
  %1319 = vmatpush1.msra.mxu0 0.0
  %1320 = vmatprep.subr.mxu0 0.0
  %1321 = vmatpush1.msra.mxu0 0.0
  %1322 = vmatprep.subr.mxu0 0.0
  %1323 = vmatpush1.msra.mxu0 0.0
  %1324 = vmatprep.subr.mxu0 0.0
  %1325 = vmatpush1.msra.mxu0 0.0
  %1326 = vmatprep.subr.mxu0 0.0
  %1327 = vmatpush1.msra.mxu0 0.0
  %1328 = vmatprep.subr.mxu0 0.0
  %1329 = vmatpush1.msra.mxu0 0.0
  %1330 = vmatprep.subr.mxu0 0.0
  %1331 = vmatpush1.msra.mxu0 0.0
  %1332 = vmatprep.subr.mxu0 0.0
  %1333 = vmatpush1.msra.mxu0 0.0
  %1334 = vmatprep.subr.mxu0 0.0
  %1335 = vmatpush1.msra.mxu0 0.0
  %1336 = vmatprep.subr.mxu0 0.0
  %1337 = vmatpush1.msra.mxu0 0.0
  %1338 = vmatprep.subr.mxu0 0.0
  %1339 = vmatpush1.msra.mxu0 0.0
  %1340 = vmatprep.subr.mxu0 0.0
  %1341 = vmatpush1.msra.mxu0 0.0
  %1342 = vmatprep.subr.mxu0 0.0
  %1343 = vmatpush1.msra.mxu0 0.0
  %1344 = vmatprep.subr.mxu0 0.0
  %1345 = vmatpush1.msra.mxu0 0.0
  %1346 = vmatprep.subr.mxu0 0.0
  %1347 = vmatpush1.msra.mxu0 0.0
  %1348 = vmatprep.subr.mxu0 0.0
  %1349 = vmatpush1.msra.mxu0 0.0
  %1350 = vmatprep.subr.mxu0 0.0
  %1351 = vmatpush1.msra.mxu0 0.0
  %1352 = vmatprep.subr.mxu0 0.0
  %1353 = vmatpush1.msra.mxu0 0.0
  %1354 = vmatprep.subr.mxu0 0.0
  %1355 = vmatpush1.msra.mxu0 0.0
  %1356 = vmatprep.mubr.f32.mxu0 0.0
  %1357 = vmatmul.mubr.f32.gmra.mrb[0].mxu0 %v1281
  %v1358 = vpop.f32.mrb[0].mxu0
  %v1359 = vadd.f32 0.0, %v1358
  %v1360 = vpop.f32.mrb[0].mxu0
  %1361 = vmatprep.mubr.f32.mxu0 0.0
  %1362 = vmatmul.mubr.f32.gmra.mrb[0].mxu0 %v1284
  %v1363 = vpop.f32.mrb[0].mxu0
  %v1364 = vadd.f32 0.0, %v1363
  %v1365 = vpop.f32.mrb[0].mxu0
  %1366 = vmatprep.mubr.f32.mxu0 0.0
  %1367 = vmatmul.mubr.f32.gmra.mrb[0].mxu0 %v1287
  %v1368 = vpop.f32.mrb[0].mxu0
  %v1369 = vadd.f32 0.0, %v1368
  %v1370 = vpop.f32.mrb[0].mxu0
  %1371 = vmatprep.mubr.f32.mxu0 0.0
  %1372 = vmatmul.mubr.f32.gmra.mrb[0].mxu0 %v1290
  %v1373 = vpop.f32.mrb[0].mxu0
  %v1374 = vadd.f32 0.0, %v1373
  %v1375 = vpop.f32.mrb[0].mxu0
  %1376 = vdwg.mxu0
  %v1377 = vmul.f32 %v1359, 0.15713482
  %v1378 = vmul.f32 %v1364, 0.15713482
  %v1379 = vmul.f32 %v1369, 0.15713482
  %v1380 = vmul.f32 %v1374, 0.15713482
  %s1381 = scalar_lea.vmem %s1, 32
  %v1382 = vld [vmem:[%s1381] sm:$0xff]
  %v1383 = vld [vmem:[%s1381 + $0x8] sm:$0xff]
  %v1384 = vld [vmem:[%s1381 + $0x10] sm:$0xff]
  %v1385 = vld [vmem:[%s1381 + $0x18] sm:$0xff]
  %s1386 = scalar_lea.vmem %s2, 32
  %v1387 = vld [vmem:[%s1386] sm:$0xff]
  %v1388 = vld [vmem:[%s1386 + $0x8] sm:$0xff]
  %v1389 = vld [vmem:[%s1386 + $0x10] sm:$0xff]
  %v1390 = vld [vmem:[%s1386 + $0x18] sm:$0xff]
  %v1391 = vsel %vm879, %v1377, 0.0
  %v1392 = vsel %vm879, %v1378, 0.0
  %v1393 = vadd.f32 %v1391, %v1392
  %v1394 = vsel %vm879, %v1379, 0.0
  %v1395 = vadd.f32 %v1393, %v1394
  %v1396 = vsel %vm879, %v1380, 0.0
  %v1397 = vadd.f32 %v1395, %v1396
  %1398 = vadd.xlane.f32.xlu0 %v1397
  %v1399 = vpop.xlane.xlu0 %1398
  %v1400 = vrot.slane %v1399, 4
  %v1401 = vadd.f32 %v1399, %v1400
  %v1402 = vrot.slane %v1401, 2
  %v1403 = vadd.f32 %v1401, %v1402
  %v1404 = vrot.slane %v1403, 1
  %v1405 = vadd.f32 %v1403, %v1404
  %s1406 = vtos %v1405
  %v1407 = vrcp.pop 256.0
  %s1408 = vtos %v1407
  %s1409 = smul.f32 %s1406, %s1408
  %v1410 = vstv %s1409
  %v1411 = vsub.f32 %v1377, %v1410
  %v1412 = vsub.f32 %v1378, %v1410
  %v1413 = vsub.f32 %v1379, %v1410
  %v1414 = vsub.f32 %v1380, %v1410
  %v1415 = vmul.f32 %v1411, %v1411
  %v1416 = vmul.f32 %v1412, %v1412
  %v1417 = vmul.f32 %v1413, %v1413
  %v1418 = vmul.f32 %v1414, %v1414
  %v1419 = vsel %vm879, %v1415, 0.0
  %v1420 = vsel %vm879, %v1416, 0.0
  %v1421 = vadd.f32 %v1419, %v1420
  %v1422 = vsel %vm879, %v1417, 0.0
  %v1423 = vadd.f32 %v1421, %v1422
  %v1424 = vsel %vm879, %v1418, 0.0
  %v1425 = vadd.f32 %v1423, %v1424
  %1426 = vadd.xlane.f32.xlu0 %v1425
  %v1427 = vpop.xlane.xlu0 %1426
  %v1428 = vrot.slane %v1427, 4
  %v1429 = vadd.f32 %v1427, %v1428
  %v1430 = vrot.slane %v1429, 2
  %v1431 = vadd.f32 %v1429, %v1430
  %v1432 = vrot.slane %v1431, 1
  %v1433 = vadd.f32 %v1431, %v1432
  %s1434 = vtos %v1433
  %v1435 = vrcp.pop 256.0
  %s1436 = vtos %v1435
  %s1437 = smul.f32 %s1434, %s1436
  %s1438 = sadd.f32 %s1437, 1e-05
  %v1439 = vstv %s1438
  %v1440 = vrsqrt.pop %v1439
  %s1441 = vtos %v1440
  %v1442 = vstv %s1441
  %v1443 = vmul.f32 %v1411, %v1442
  %v1444 = vmul.f32 %v1412, %v1442
  %v1445 = vmul.f32 %v1413, %v1442
  %v1446 = vmul.f32 %v1414, %v1442
  %v1447 = vmul.f32 %v1443, %v1382
  %v1448 = vmul.f32 %v1444, %v1383
  %v1449 = vmul.f32 %v1445, %v1384
  %v1450 = vmul.f32 %v1446, %v1385
  %v1451 = vadd.f32 %v1447, %v1387
  %v1452 = vadd.f32 %v1448, %v1388
  %v1453 = vadd.f32 %v1449, %v1389
  %v1454 = vadd.f32 %v1450, %v1390
  %v1455 = vadd.f32 %v1451, %v940
  %v1456 = vadd.f32 %v1452, %v941
  %v1457 = vadd.f32 %v1453, %v942
  %v1458 = vadd.f32 %v1454, %v943
  %s1459 = scalar_lea.vmem %s3, 8
  %v1460 = vld [vmem:[%s1459] sm:$0xff]
  %s1461 = scalar_lea.vmem %s4, 1
  %v1462 = vld [vmem:[%s1461] sm:$0x1]
  %v1464 = vlaneseq
  %v1465 = vshrl.u32 %v1464, 7
  %v1466 = vsub.s32 0, %v1465
  %v1467 = vrot.slane %v1462, %v1466
  %v1470 = vsel %vm879, %v1455, 0
  %v1473 = vsel %vm879, %v1456, 0
  %v1476 = vsel %vm879, %v1457, 0
  %v1479 = vsel %vm879, %v1458, 0
  %1481 = vmatprep.subr.mxu0 0.0
  %1482 = vmatpush1.msra.mxu0 %v1460
  %1483 = vmatprep.subr.mxu0 0.0
  %1484 = vmatpush1.msra.mxu0 0.0
  %1485 = vmatprep.subr.mxu0 0.0
  %1486 = vmatpush1.msra.mxu0 0.0
  %1487 = vmatprep.subr.mxu0 0.0
  %1488 = vmatpush1.msra.mxu0 0.0
  %1489 = vmatprep.subr.mxu0 0.0
  %1490 = vmatpush1.msra.mxu0 0.0
  %1491 = vmatprep.subr.mxu0 0.0
  %1492 = vmatpush1.msra.mxu0 0.0
  %1493 = vmatprep.subr.mxu0 0.0
  %1494 = vmatpush1.msra.mxu0 0.0
  %1495 = vmatprep.subr.mxu0 0.0
  %1496 = vmatpush1.msra.mxu0 0.0
  %1497 = vmatprep.subr.mxu0 0.0
  %1498 = vmatpush1.msra.mxu0 0.0
  %1499 = vmatprep.subr.mxu0 0.0
  %1500 = vmatpush1.msra.mxu0 0.0
  %1501 = vmatprep.subr.mxu0 0.0
  %1502 = vmatpush1.msra.mxu0 0.0
  %1503 = vmatprep.subr.mxu0 0.0
  %1504 = vmatpush1.msra.mxu0 0.0
  %1505 = vmatprep.subr.mxu0 0.0
  %1506 = vmatpush1.msra.mxu0 0.0
  %1507 = vmatprep.subr.mxu0 0.0
  %1508 = vmatpush1.msra.mxu0 0.0
  %1509 = vmatprep.subr.mxu0 0.0
  %1510 = vmatpush1.msra.mxu0 0.0
  %1511 = vmatprep.subr.mxu0 0.0
  %1512 = vmatpush1.msra.mxu0 0.0
  %1513 = vmatprep.subr.mxu0 0.0
  %1514 = vmatpush1.msra.mxu0 0.0
  %1515 = vmatprep.subr.mxu0 0.0
  %1516 = vmatpush1.msra.mxu0 0.0
  %1517 = vmatprep.subr.mxu0 0.0
  %1518 = vmatpush1.msra.mxu0 0.0
  %1519 = vmatprep.subr.mxu0 0.0
  %1520 = vmatpush1.msra.mxu0 0.0
  %1521 = vmatprep.subr.mxu0 0.0
  %1522 = vmatpush1.msra.mxu0 0.0
  %1523 = vmatprep.subr.mxu0 0.0
  %1524 = vmatpush1.msra.mxu0 0.0
  %1525 = vmatprep.subr.mxu0 0.0
  %1526 = vmatpush1.msra.mxu0 0.0
  %1527 = vmatprep.subr.mxu0 0.0
  %1528 = vmatpush1.msra.mxu0 0.0
  %1529 = vmatprep.subr.mxu0 0.0
  %1530 = vmatpush1.msra.mxu0 0.0
  %1531 = vmatprep.subr.mxu0 0.0
  %1532 = vmatpush1.msra.mxu0 0.0
  %1533 = vmatprep.subr.mxu0 0.0
  %1534 = vmatpush1.msra.mxu0 0.0
  %1535 = vmatprep.subr.mxu0 0.0
  %1536 = vmatpush1.msra.mxu0 0.0
  %1537 = vmatprep.subr.mxu0 0.0
  %1538 = vmatpush1.msra.mxu0 0.0
  %1539 = vmatprep.subr.mxu0 0.0
  %1540 = vmatpush1.msra.mxu0 0.0
  %1541 = vmatprep.subr.mxu0 0.0
  %1542 = vmatpush1.msra.mxu0 0.0
  %1543 = vmatprep.subr.mxu0 0.0
  %1544 = vmatpush1.msra.mxu0 0.0
  %1545 = vmatprep.mubr.f32.mxu0 0.0
  %1546 = vmatmul.mubr.f32.gmra.mrb[0].mxu0 %v1470
  %v1547 = vpop.f32.mrb[0].mxu0
  %v1548 = vadd.f32 %v1467, %v1547
  %v1549 = vpop.f32.mrb[0].mxu0
  %1550 = vmatprep.mubr.f32.mxu0 0.0
  %1551 = vmatmul.mubr.f32.gmra.mrb[0].mxu0 %v1473
  %v1552 = vpop.f32.mrb[0].mxu0
  %v1553 = vadd.f32 %v1467, %v1552
  %v1554 = vpop.f32.mrb[0].mxu0
  %1555 = vmatprep.mubr.f32.mxu0 0.0
  %1556 = vmatmul.mubr.f32.gmra.mrb[0].mxu0 %v1476
  %v1557 = vpop.f32.mrb[0].mxu0
  %v1558 = vadd.f32 %v1467, %v1557
  %v1559 = vpop.f32.mrb[0].mxu0
  %1560 = vmatprep.mubr.f32.mxu0 0.0
  %1561 = vmatmul.mubr.f32.gmra.mrb[0].mxu0 %v1479
  %v1562 = vpop.f32.mrb[0].mxu0
  %v1563 = vadd.f32 %v1467, %v1562
  %v1564 = vpop.f32.mrb[0].mxu0
  %1565 = vdwg.mxu0
  %1570 = vrot.lane.b32.xlu0 %v1548, 112
  %v1571 = vpop.permute.xlu0 %1570
  %1572 = vrot.lane.b32.xlu0 %v1553, 112
  %v1573 = vpop.permute.xlu0 %1572
  %1574 = vrot.lane.b32.xlu0 %v1558, 112
  %v1575 = vpop.permute.xlu0 %1574
  %1576 = vrot.lane.b32.xlu0 %v1563, 112
  %v1577 = vpop.permute.xlu0 %1576
  %1578 = vrot.lane.b32.xlu0 %v1548, 104
  %v1579 = vpop.permute.xlu0 %1578
  %1580 = vrot.lane.b32.xlu0 %v1553, 104
  %v1581 = vpop.permute.xlu0 %1580
  %v1582 = vsel %vm879, %v1571, 0
  %v1584 = vsel %vm879, %v1573, 0
  %v1586 = vsel %vm879, %v1575, 0
  %v1588 = vsel %vm879, %v1577, 0
  %v1590 = vsel %vm879, %v1579, 0
  %v1592 = vsel %vm879, %v1581, 0
  %1594 = vmatprep.subr.mxu0 0.0
  %1595 = vmatpush1.xpose.msra.mxu0 %v1590
  %1596 = vmatprep.subr.mxu0 0.0
  %1597 = vmatpush1.xpose.msra.mxu0 %v1592
  %1598 = vmatprep.subr.mxu0 0.0
  %1599 = vmatpush1.xpose.msra.mxu0 0.0
  %1600 = vmatprep.subr.mxu0 0.0
  %1601 = vmatpush1.xpose.msra.mxu0 0.0
  %1602 = vmatprep.subr.mxu0 0.0
  %1603 = vmatpush1.xpose.msra.mxu0 0.0
  %1604 = vmatprep.subr.mxu0 0.0
  %1605 = vmatpush1.xpose.msra.mxu0 0.0
  %1606 = vmatprep.subr.mxu0 0.0
  %1607 = vmatpush1.xpose.msra.mxu0 0.0
  %1608 = vmatprep.subr.mxu0 0.0
  %1609 = vmatpush1.xpose.msra.mxu0 0.0
  %1610 = vmatprep.subr.mxu0 0.0
  %1611 = vmatpush1.xpose.msra.mxu0 0.0
  %1612 = vmatprep.subr.mxu0 0.0
  %1613 = vmatpush1.xpose.msra.mxu0 0.0
  %1614 = vmatprep.subr.mxu0 0.0
  %1615 = vmatpush1.xpose.msra.mxu0 0.0
  %1616 = vmatprep.subr.mxu0 0.0
  %1617 = vmatpush1.xpose.msra.mxu0 0.0
  %1618 = vmatprep.subr.mxu0 0.0
  %1619 = vmatpush1.xpose.msra.mxu0 0.0
  %1620 = vmatprep.subr.mxu0 0.0
  %1621 = vmatpush1.xpose.msra.mxu0 0.0
  %1622 = vmatprep.subr.mxu0 0.0
  %1623 = vmatpush1.xpose.msra.mxu0 0.0
  %1624 = vmatprep.subr.mxu0 0.0
  %1625 = vmatpush1.xpose.msra.mxu0 0.0
  %1626 = vmatprep.subr.mxu0 0.0
  %1627 = vmatpush1.xpose.msra.mxu0 0.0
  %1628 = vmatprep.subr.mxu0 0.0
  %1629 = vmatpush1.xpose.msra.mxu0 0.0
  %1630 = vmatprep.subr.mxu0 0.0
  %1631 = vmatpush1.xpose.msra.mxu0 0.0
  %1632 = vmatprep.subr.mxu0 0.0
  %1633 = vmatpush1.xpose.msra.mxu0 0.0
  %1634 = vmatprep.subr.mxu0 0.0
  %1635 = vmatpush1.xpose.msra.mxu0 0.0
  %1636 = vmatprep.subr.mxu0 0.0
  %1637 = vmatpush1.xpose.msra.mxu0 0.0
  %1638 = vmatprep.subr.mxu0 0.0
  %1639 = vmatpush1.xpose.msra.mxu0 0.0
  %1640 = vmatprep.subr.mxu0 0.0
  %1641 = vmatpush1.xpose.msra.mxu0 0.0
  %1642 = vmatprep.subr.mxu0 0.0
  %1643 = vmatpush1.xpose.msra.mxu0 0.0
  %1644 = vmatprep.subr.mxu0 0.0
  %1645 = vmatpush1.xpose.msra.mxu0 0.0
  %1646 = vmatprep.subr.mxu0 0.0
  %1647 = vmatpush1.xpose.msra.mxu0 0.0
  %1648 = vmatprep.subr.mxu0 0.0
  %1649 = vmatpush1.xpose.msra.mxu0 0.0
  %1650 = vmatprep.subr.mxu0 0.0
  %1651 = vmatpush1.xpose.msra.mxu0 0.0
  %1652 = vmatprep.subr.mxu0 0.0
  %1653 = vmatpush1.xpose.msra.mxu0 0.0
  %1654 = vmatprep.subr.mxu0 0.0
  %1655 = vmatpush1.xpose.msra.mxu0 0.0
  %1656 = vmatprep.subr.mxu0 0.0
  %1657 = vmatpush1.xpose.msra.mxu0 0.0
  %1658 = vmatprep.mubr.f32.mxu0 0.0
  %1659 = vmatmul.mubr.f32.gmra.mrb[0].mxu0 %v1582
  %v1660 = vpop.f32.mrb[0].mxu0
  %v1661 = vadd.f32 0.0, %v1660
  %v1662 = vpop.f32.mrb[0].mxu0
  %1663 = vmatprep.mubr.f32.mxu0 0.0
  %1664 = vmatmul.mubr.f32.gmra.mrb[0].mxu0 %v1584
  %v1665 = vpop.f32.mrb[0].mxu0
  %v1666 = vadd.f32 0.0, %v1665
  %v1667 = vpop.f32.mrb[0].mxu0
  %1668 = vmatprep.mubr.f32.mxu0 0.0
  %1669 = vmatmul.mubr.f32.gmra.mrb[0].mxu0 %v1586
  %v1670 = vpop.f32.mrb[0].mxu0
  %v1671 = vadd.f32 0.0, %v1670
  %v1672 = vpop.f32.mrb[0].mxu0
  %1673 = vmatprep.mubr.f32.mxu0 0.0
  %1674 = vmatmul.mubr.f32.gmra.mrb[0].mxu0 %v1588
  %v1675 = vpop.f32.mrb[0].mxu0
  %v1676 = vadd.f32 0.0, %v1675
  %v1677 = vpop.f32.mrb[0].mxu0
  %1678 = vdwg.mxu0
  %1679 = vrot.lane.b32.xlu0 %v1548, 120
  %v1680 = vpop.permute.xlu0 %1679
  %1681 = vrot.lane.b32.xlu0 %v1553, 120
  %v1682 = vpop.permute.xlu0 %1681
  %v1683 = vsel %vm879, %v1548, 0
  %v1685 = vsel %vm879, %v1553, 0
  %v1687 = vsel %vm879, %v1558, 0
  %v1689 = vsel %vm879, %v1563, 0
  %v1691 = vsel %vm879, %v1680, 0
  %v1693 = vsel %vm879, %v1682, 0
  %1695 = vmatprep.subr.mxu0 0.0
  %1696 = vmatpush1.xpose.msra.mxu0 %v1691
  %1697 = vmatprep.subr.mxu0 0.0
  %1698 = vmatpush1.xpose.msra.mxu0 %v1693
  %1699 = vmatprep.subr.mxu0 0.0
  %1700 = vmatpush1.xpose.msra.mxu0 0.0
  %1701 = vmatprep.subr.mxu0 0.0
  %1702 = vmatpush1.xpose.msra.mxu0 0.0
  %1703 = vmatprep.subr.mxu0 0.0
  %1704 = vmatpush1.xpose.msra.mxu0 0.0
  %1705 = vmatprep.subr.mxu0 0.0
  %1706 = vmatpush1.xpose.msra.mxu0 0.0
  %1707 = vmatprep.subr.mxu0 0.0
  %1708 = vmatpush1.xpose.msra.mxu0 0.0
  %1709 = vmatprep.subr.mxu0 0.0
  %1710 = vmatpush1.xpose.msra.mxu0 0.0
  %1711 = vmatprep.subr.mxu0 0.0
  %1712 = vmatpush1.xpose.msra.mxu0 0.0
  %1713 = vmatprep.subr.mxu0 0.0
  %1714 = vmatpush1.xpose.msra.mxu0 0.0
  %1715 = vmatprep.subr.mxu0 0.0
  %1716 = vmatpush1.xpose.msra.mxu0 0.0
  %1717 = vmatprep.subr.mxu0 0.0
  %1718 = vmatpush1.xpose.msra.mxu0 0.0
  %1719 = vmatprep.subr.mxu0 0.0
  %1720 = vmatpush1.xpose.msra.mxu0 0.0
  %1721 = vmatprep.subr.mxu0 0.0
  %1722 = vmatpush1.xpose.msra.mxu0 0.0
  %1723 = vmatprep.subr.mxu0 0.0
  %1724 = vmatpush1.xpose.msra.mxu0 0.0
  %1725 = vmatprep.subr.mxu0 0.0
  %1726 = vmatpush1.xpose.msra.mxu0 0.0
  %1727 = vmatprep.subr.mxu0 0.0
  %1728 = vmatpush1.xpose.msra.mxu0 0.0
  %1729 = vmatprep.subr.mxu0 0.0
  %1730 = vmatpush1.xpose.msra.mxu0 0.0
  %1731 = vmatprep.subr.mxu0 0.0
  %1732 = vmatpush1.xpose.msra.mxu0 0.0
  %1733 = vmatprep.subr.mxu0 0.0
  %1734 = vmatpush1.xpose.msra.mxu0 0.0
  %1735 = vmatprep.subr.mxu0 0.0
  %1736 = vmatpush1.xpose.msra.mxu0 0.0
  %1737 = vmatprep.subr.mxu0 0.0
  %1738 = vmatpush1.xpose.msra.mxu0 0.0
  %1739 = vmatprep.subr.mxu0 0.0
  %1740 = vmatpush1.xpose.msra.mxu0 0.0
  %1741 = vmatprep.subr.mxu0 0.0
  %1742 = vmatpush1.xpose.msra.mxu0 0.0
  %1743 = vmatprep.subr.mxu0 0.0
  %1744 = vmatpush1.xpose.msra.mxu0 0.0
  %1745 = vmatprep.subr.mxu0 0.0
  %1746 = vmatpush1.xpose.msra.mxu0 0.0
  %1747 = vmatprep.subr.mxu0 0.0
  %1748 = vmatpush1.xpose.msra.mxu0 0.0
  %1749 = vmatprep.subr.mxu0 0.0
  %1750 = vmatpush1.xpose.msra.mxu0 0.0
  %1751 = vmatprep.subr.mxu0 0.0
  %1752 = vmatpush1.xpose.msra.mxu0 0.0
  %1753 = vmatprep.subr.mxu0 0.0
  %1754 = vmatpush1.xpose.msra.mxu0 0.0
  %1755 = vmatprep.subr.mxu0 0.0
  %1756 = vmatpush1.xpose.msra.mxu0 0.0
  %1757 = vmatprep.subr.mxu0 0.0
  %1758 = vmatpush1.xpose.msra.mxu0 0.0
  %1759 = vmatprep.mubr.f32.mxu0 0.0
  %1760 = vmatmul.mubr.f32.gmra.mrb[0].mxu0 %v1683
  %v1761 = vpop.f32.mrb[0].mxu0
  %v1762 = vadd.f32 %v1661, %v1761
  %v1763 = vpop.f32.mrb[0].mxu0
  %1764 = vmatprep.mubr.f32.mxu0 0.0
  %1765 = vmatmul.mubr.f32.gmra.mrb[0].mxu0 %v1685
  %v1766 = vpop.f32.mrb[0].mxu0
  %v1767 = vadd.f32 %v1666, %v1766
  %v1768 = vpop.f32.mrb[0].mxu0
  %1769 = vmatprep.mubr.f32.mxu0 0.0
  %1770 = vmatmul.mubr.f32.gmra.mrb[0].mxu0 %v1687
  %v1771 = vpop.f32.mrb[0].mxu0
  %v1772 = vadd.f32 %v1671, %v1771
  %v1773 = vpop.f32.mrb[0].mxu0
  %1774 = vmatprep.mubr.f32.mxu0 0.0
  %1775 = vmatmul.mubr.f32.gmra.mrb[0].mxu0 %v1689
  %v1776 = vpop.f32.mrb[0].mxu0
  %v1777 = vadd.f32 %v1676, %v1776
  %v1778 = vpop.f32.mrb[0].mxu0
  %1779 = vdwg.mxu0
  %vm1780 = vcmask 130048
  %v1782 = vsel %vm1780, %v1762, 0
  %v1785 = vsel %vm1780, %v1767, 0
  %v1788 = vsel %vm1780, %v1772, 0
  %v1791 = vsel %vm1780, %v1777, 0
  %1793 = vmatprep.subr.mxu0 0.0
  %1794 = vmatpush1.msra.mxu0 %v867
  %1795 = vmatprep.subr.mxu0 0.0
  %1796 = vmatpush1.msra.mxu0 %v868
  %1797 = vmatprep.subr.mxu0 0.0
  %1798 = vmatpush1.msra.mxu0 0.0
  %1799 = vmatprep.subr.mxu0 0.0
  %1800 = vmatpush1.msra.mxu0 0.0
  %1801 = vmatprep.subr.mxu0 0.0
  %1802 = vmatpush1.msra.mxu0 0.0
  %1803 = vmatprep.subr.mxu0 0.0
  %1804 = vmatpush1.msra.mxu0 0.0
  %1805 = vmatprep.subr.mxu0 0.0
  %1806 = vmatpush1.msra.mxu0 0.0
  %1807 = vmatprep.subr.mxu0 0.0
  %1808 = vmatpush1.msra.mxu0 0.0
  %1809 = vmatprep.subr.mxu0 0.0
  %1810 = vmatpush1.msra.mxu0 0.0
  %1811 = vmatprep.subr.mxu0 0.0
  %1812 = vmatpush1.msra.mxu0 0.0
  %1813 = vmatprep.subr.mxu0 0.0
  %1814 = vmatpush1.msra.mxu0 0.0
  %1815 = vmatprep.subr.mxu0 0.0
  %1816 = vmatpush1.msra.mxu0 0.0
  %1817 = vmatprep.subr.mxu0 0.0
  %1818 = vmatpush1.msra.mxu0 0.0
  %1819 = vmatprep.subr.mxu0 0.0
  %1820 = vmatpush1.msra.mxu0 0.0
  %1821 = vmatprep.subr.mxu0 0.0
  %1822 = vmatpush1.msra.mxu0 0.0
  %1823 = vmatprep.subr.mxu0 0.0
  %1824 = vmatpush1.msra.mxu0 0.0
  %1825 = vmatprep.subr.mxu0 0.0
  %1826 = vmatpush1.msra.mxu0 0.0
  %1827 = vmatprep.subr.mxu0 0.0
  %1828 = vmatpush1.msra.mxu0 0.0
  %1829 = vmatprep.subr.mxu0 0.0
  %1830 = vmatpush1.msra.mxu0 0.0
  %1831 = vmatprep.subr.mxu0 0.0
  %1832 = vmatpush1.msra.mxu0 0.0
  %1833 = vmatprep.subr.mxu0 0.0
  %1834 = vmatpush1.msra.mxu0 0.0
  %1835 = vmatprep.subr.mxu0 0.0
  %1836 = vmatpush1.msra.mxu0 0.0
  %1837 = vmatprep.subr.mxu0 0.0
  %1838 = vmatpush1.msra.mxu0 0.0
  %1839 = vmatprep.subr.mxu0 0.0
  %1840 = vmatpush1.msra.mxu0 0.0
  %1841 = vmatprep.subr.mxu0 0.0
  %1842 = vmatpush1.msra.mxu0 0.0
  %1843 = vmatprep.subr.mxu0 0.0
  %1844 = vmatpush1.msra.mxu0 0.0
  %1845 = vmatprep.subr.mxu0 0.0
  %1846 = vmatpush1.msra.mxu0 0.0
  %1847 = vmatprep.subr.mxu0 0.0
  %1848 = vmatpush1.msra.mxu0 0.0
  %1849 = vmatprep.subr.mxu0 0.0
  %1850 = vmatpush1.msra.mxu0 0.0
  %1851 = vmatprep.subr.mxu0 0.0
  %1852 = vmatpush1.msra.mxu0 0.0
  %1853 = vmatprep.subr.mxu0 0.0
  %1854 = vmatpush1.msra.mxu0 0.0
  %1855 = vmatprep.subr.mxu0 0.0
  %1856 = vmatpush1.msra.mxu0 0.0
  %1857 = vmatprep.mubr.f32.mxu0 0.0
  %1858 = vmatmul.mubr.f32.gmra.mrb[0].mxu0 %v1782
  %v1859 = vpop.f32.mrb[0].mxu0
  %v1860 = vadd.f32 0.0, %v1859
  %v1861 = vpop.f32.mrb[0].mxu0
  %1862 = vmatprep.mubr.f32.mxu0 0.0
  %1863 = vmatmul.mubr.f32.gmra.mrb[0].mxu0 %v1785
  %v1864 = vpop.f32.mrb[0].mxu0
  %v1865 = vadd.f32 0.0, %v1864
  %v1866 = vpop.f32.mrb[0].mxu0
  %1867 = vmatprep.mubr.f32.mxu0 0.0
  %1868 = vmatmul.mubr.f32.gmra.mrb[0].mxu0 %v1788
  %v1869 = vpop.f32.mrb[0].mxu0
  %v1870 = vadd.f32 0.0, %v1869
  %v1871 = vpop.f32.mrb[0].mxu0
  %1872 = vmatprep.mubr.f32.mxu0 0.0
  %1873 = vmatmul.mubr.f32.gmra.mrb[0].mxu0 %v1791
  %v1874 = vpop.f32.mrb[0].mxu0
  %v1875 = vadd.f32 0.0, %v1874
  %v1876 = vpop.f32.mrb[0].mxu0
  %1877 = vdwg.mxu0
  %v1879 = vsel %vm1279, %v865, 0
  %v1882 = vsel %vm1279, %v866, 0
  %1884 = vmatprep.subr.mxu0 0.0
  %1885 = vmatpush1.msra.mxu0 %v1860
  %1886 = vmatprep.subr.mxu0 0.0
  %1887 = vmatpush1.msra.mxu0 %v1865
  %1888 = vmatprep.subr.mxu0 0.0
  %1889 = vmatpush1.msra.mxu0 %v1870
  %1890 = vmatprep.subr.mxu0 0.0
  %1891 = vmatpush1.msra.mxu0 %v1875
  %1892 = vmatprep.subr.mxu0 0.0
  %1893 = vmatpush1.msra.mxu0 0.0
  %1894 = vmatprep.subr.mxu0 0.0
  %1895 = vmatpush1.msra.mxu0 0.0
  %1896 = vmatprep.subr.mxu0 0.0
  %1897 = vmatpush1.msra.mxu0 0.0
  %1898 = vmatprep.subr.mxu0 0.0
  %1899 = vmatpush1.msra.mxu0 0.0
  %1900 = vmatprep.subr.mxu0 0.0
  %1901 = vmatpush1.msra.mxu0 0.0
  %1902 = vmatprep.subr.mxu0 0.0
  %1903 = vmatpush1.msra.mxu0 0.0
  %1904 = vmatprep.subr.mxu0 0.0
  %1905 = vmatpush1.msra.mxu0 0.0
  %1906 = vmatprep.subr.mxu0 0.0
  %1907 = vmatpush1.msra.mxu0 0.0
  %1908 = vmatprep.subr.mxu0 0.0
  %1909 = vmatpush1.msra.mxu0 0.0
  %1910 = vmatprep.subr.mxu0 0.0
  %1911 = vmatpush1.msra.mxu0 0.0
  %1912 = vmatprep.subr.mxu0 0.0
  %1913 = vmatpush1.msra.mxu0 0.0
  %1914 = vmatprep.subr.mxu0 0.0
  %1915 = vmatpush1.msra.mxu0 0.0
  %1916 = vmatprep.subr.mxu0 0.0
  %1917 = vmatpush1.msra.mxu0 0.0
  %1918 = vmatprep.subr.mxu0 0.0
  %1919 = vmatpush1.msra.mxu0 0.0
  %1920 = vmatprep.subr.mxu0 0.0
  %1921 = vmatpush1.msra.mxu0 0.0
  %1922 = vmatprep.subr.mxu0 0.0
  %1923 = vmatpush1.msra.mxu0 0.0
  %1924 = vmatprep.subr.mxu0 0.0
  %1925 = vmatpush1.msra.mxu0 0.0
  %1926 = vmatprep.subr.mxu0 0.0
  %1927 = vmatpush1.msra.mxu0 0.0
  %1928 = vmatprep.subr.mxu0 0.0
  %1929 = vmatpush1.msra.mxu0 0.0
  %1930 = vmatprep.subr.mxu0 0.0
  %1931 = vmatpush1.msra.mxu0 0.0
  %1932 = vmatprep.subr.mxu0 0.0
  %1933 = vmatpush1.msra.mxu0 0.0
  %1934 = vmatprep.subr.mxu0 0.0
  %1935 = vmatpush1.msra.mxu0 0.0
  %1936 = vmatprep.subr.mxu0 0.0
  %1937 = vmatpush1.msra.mxu0 0.0
  %1938 = vmatprep.subr.mxu0 0.0
  %1939 = vmatpush1.msra.mxu0 0.0
  %1940 = vmatprep.subr.mxu0 0.0
  %1941 = vmatpush1.msra.mxu0 0.0
  %1942 = vmatprep.subr.mxu0 0.0
  %1943 = vmatpush1.msra.mxu0 0.0
  %1944 = vmatprep.subr.mxu0 0.0
  %1945 = vmatpush1.msra.mxu0 0.0
  %1946 = vmatprep.subr.mxu0 0.0
  %1947 = vmatpush1.msra.mxu0 0.0
  %1948 = vmatprep.mubr.f32.mxu0 0.0
  %1949 = vmatmul.mubr.f32.gmra.mrb[0].mxu0 %v1879
  %v1950 = vpop.f32.mrb[0].mxu0
  %v1951 = vadd.f32 0.0, %v1950
  %v1952 = vpop.f32.mrb[0].mxu0
  %1953 = vmatprep.mubr.f32.mxu0 0.0
  %1954 = vmatmul.mubr.f32.gmra.mrb[0].mxu0 %v1882
  %v1955 = vpop.f32.mrb[0].mxu0
  %v1956 = vadd.f32 0.0, %v1955
  %v1957 = vpop.f32.mrb[0].mxu0
  %1958 = vdwg.mxu0
  %v1959 = vmul.f32 %v1951, 0.06983769
  %v1960 = vmul.f32 %v1956, 0.06983769
  %vm1961 = vcmask 57344
  %1962 = vst.msk [vmem:[%s12] sm:$0x1] %vm1961, %v1959
  %1964 = vrot.lane.b32.xlu0 %v1959, 8
  %v1965 = vpop.permute.xlu0 %1964
  %vm1967 = vcmask 123969
  %1968 = vst.msk [vmem:[%s12 - $0x1] sm:$0x2] %vm1967, %v1965
  %1969 = vrot.lane.b32.xlu0 %v1959, 16
  %v1970 = vpop.permute.xlu0 %1969
  %vm1972 = vcmask 190594
  %1973 = vst.msk [vmem:[%s12 - $0x2] sm:$0x4] %vm1972, %v1970
  %1974 = vrot.lane.b32.xlu0 %v1959, 24
  %v1975 = vpop.permute.xlu0 %1974
  %vm1977 = vcmask 257219
  %1978 = vst.msk [vmem:[%s12 - $0x3] sm:$0x8] %vm1977, %v1975
  %1979 = vrot.lane.b32.xlu0 %v1959, 32
  %v1980 = vpop.permute.xlu0 %1979
  %vm1982 = vcmask 323844
  %1983 = vst.msk [vmem:[%s12 - $0x4] sm:$0x10] %vm1982, %v1980
  %1984 = vrot.lane.b32.xlu0 %v1959, 40
  %v1985 = vpop.permute.xlu0 %1984
  %vm1987 = vcmask 390469
  %1988 = vst.msk [vmem:[%s12 - $0x5] sm:$0x20] %vm1987, %v1985
  %1989 = vrot.lane.b32.xlu0 %v1959, 48
  %v1990 = vpop.permute.xlu0 %1989
  %vm1992 = vcmask 457094
  %1993 = vst.msk [vmem:[%s12 - $0x6] sm:$0x40] %vm1992, %v1990
  %1994 = vrot.lane.b32.xlu0 %v1959, 56
  %v1995 = vpop.permute.xlu0 %1994
  %vm1997 = vcmask 523719
  %1998 = vst.msk [vmem:[%s12 - $0x7] sm:$0x80] %vm1997, %v1995
  %2000 = vrot.lane.b32.xlu0 %v1960, 64
  %v2001 = vpop.permute.xlu0 %2000
  %vm2003 = vcmask 582144
  %2004 = vst.msk [vmem:[%s12] sm:$0x1] %vm2003, %v2001
  %2005 = vrot.lane.b32.xlu0 %v1960, 72
  %v2006 = vpop.permute.xlu0 %2005
  %vm2008 = vcmask 648769
  %2009 = vst.msk [vmem:[%s12 - $0x1] sm:$0x2] %vm2008, %v2006
  %2010 = vrot.lane.b32.xlu0 %v1960, 80
  %v2011 = vpop.permute.xlu0 %2010
  %vm2013 = vcmask 715394
  %2014 = vst.msk [vmem:[%s12 - $0x2] sm:$0x4] %vm2013, %v2011
  %2015 = vrot.lane.b32.xlu0 %v1960, 88
  %v2016 = vpop.permute.xlu0 %2015
  %vm2018 = vcmask 782019
  %2019 = vst.msk [vmem:[%s12 - $0x3] sm:$0x8] %vm2018, %v2016
  %2020 = vrot.lane.b32.xlu0 %v1960, 96
  %v2021 = vpop.permute.xlu0 %2020
  %vm2023 = vcmask 848644
  %2024 = vst.msk [vmem:[%s12 - $0x4] sm:$0x10] %vm2023, %v2021
  %2025 = vrot.lane.b32.xlu0 %v1960, 104
  %v2026 = vpop.permute.xlu0 %2025
  %vm2028 = vcmask 915269
  %2029 = vst.msk [vmem:[%s12 - $0x5] sm:$0x20] %vm2028, %v2026
  %2030 = vrot.lane.b32.xlu0 %v1960, 112
  %v2031 = vpop.permute.xlu0 %2030
  %vm2033 = vcmask 981894
  %2034 = vst.msk [vmem:[%s12 - $0x6] sm:$0x40] %vm2033, %v2031
  %2035 = vrot.lane.b32.xlu0 %v1960, 120
  %v2036 = vpop.permute.xlu0 %2035
  %vm2038 = vcmask 1048519
  %2039 = vst.msk [vmem:[%s12 - $0x7] sm:$0x80] %vm2038, %v2036
  %s2040 = scalar_lea.vmem %s0, 32
  %v2041 = vld [vmem:[%s2040] sm:$0xff]
  %v2042 = vld [vmem:[%s2040 + $0x8] sm:$0xff]
  %v2043 = vld [vmem:[%s2040 + $0x10] sm:$0xff]
  %v2044 = vld [vmem:[%s2040 + $0x18] sm:$0xff]
  %v2045 = vld [vmem:[%s1] sm:$0xff]
  %v2046 = vld [vmem:[%s1 + $0x8] sm:$0xff]
  %v2047 = vld [vmem:[%s1 + $0x10] sm:$0xff]
  %v2048 = vld [vmem:[%s1 + $0x18] sm:$0xff]
  %v2049 = vld [vmem:[%s2] sm:$0xff]
  %v2050 = vld [vmem:[%s2 + $0x8] sm:$0xff]
  %v2051 = vld [vmem:[%s2 + $0x10] sm:$0xff]
  %v2052 = vld [vmem:[%s2 + $0x18] sm:$0xff]
  %v2053 = vsel %vm879, %v2041, 0.0
  %v2054 = vsel %vm879, %v2042, 0.0
  %v2055 = vadd.f32 %v2053, %v2054
  %v2056 = vsel %vm879, %v2043, 0.0
  %v2057 = vadd.f32 %v2055, %v2056
  %v2058 = vsel %vm879, %v2044, 0.0
  %v2059 = vadd.f32 %v2057, %v2058
  %2060 = vadd.xlane.f32.xlu0 %v2059
  %v2061 = vpop.xlane.xlu0 %2060
  %v2062 = vrot.slane %v2061, 4
  %v2063 = vadd.f32 %v2061, %v2062
  %v2064 = vrot.slane %v2063, 2
  %v2065 = vadd.f32 %v2063, %v2064
  %v2066 = vrot.slane %v2065, 1
  %v2067 = vadd.f32 %v2065, %v2066
  %s2068 = vtos %v2067
  %v2069 = vrcp.pop 256.0
  %s2070 = vtos %v2069
  %s2071 = smul.f32 %s2068, %s2070
  %v2072 = vstv %s2071
  %v2073 = vsub.f32 %v2041, %v2072
  %v2074 = vsub.f32 %v2042, %v2072
  %v2075 = vsub.f32 %v2043, %v2072
  %v2076 = vsub.f32 %v2044, %v2072
  %v2077 = vmul.f32 %v2073, %v2073
  %v2078 = vmul.f32 %v2074, %v2074
  %v2079 = vmul.f32 %v2075, %v2075
  %v2080 = vmul.f32 %v2076, %v2076
  %v2081 = vsel %vm879, %v2077, 0.0
  %v2082 = vsel %vm879, %v2078, 0.0
  %v2083 = vadd.f32 %v2081, %v2082
  %v2084 = vsel %vm879, %v2079, 0.0
  %v2085 = vadd.f32 %v2083, %v2084
  %v2086 = vsel %vm879, %v2080, 0.0
  %v2087 = vadd.f32 %v2085, %v2086
  %2088 = vadd.xlane.f32.xlu0 %v2087
  %v2089 = vpop.xlane.xlu0 %2088
  %v2090 = vrot.slane %v2089, 4
  %v2091 = vadd.f32 %v2089, %v2090
  %v2092 = vrot.slane %v2091, 2
  %v2093 = vadd.f32 %v2091, %v2092
  %v2094 = vrot.slane %v2093, 1
  %v2095 = vadd.f32 %v2093, %v2094
  %s2096 = vtos %v2095
  %v2097 = vrcp.pop 256.0
  %s2098 = vtos %v2097
  %s2099 = smul.f32 %s2096, %s2098
  %s2100 = sadd.f32 %s2099, 1e-05
  %v2101 = vstv %s2100
  %v2102 = vrsqrt.pop %v2101
  %s2103 = vtos %v2102
  %v2104 = vstv %s2103
  %v2105 = vmul.f32 %v2073, %v2104
  %v2106 = vmul.f32 %v2074, %v2104
  %v2107 = vmul.f32 %v2075, %v2104
  %v2108 = vmul.f32 %v2076, %v2104
  %v2109 = vmul.f32 %v2105, %v2045
  %v2110 = vmul.f32 %v2106, %v2046
  %v2111 = vmul.f32 %v2107, %v2047
  %v2112 = vmul.f32 %v2108, %v2048
  %v2113 = vadd.f32 %v2109, %v2049
  %v2114 = vadd.f32 %v2110, %v2050
  %v2115 = vadd.f32 %v2111, %v2051
  %v2116 = vadd.f32 %v2112, %v2052
  %v2117 = vld [vmem:[%s3] sm:$0xff]
  %v2118 = vld [vmem:[%s4] sm:$0x1]
  %v2120 = vlaneseq
  %v2121 = vshrl.u32 %v2120, 7
  %v2122 = vsub.s32 0, %v2121
  %v2123 = vrot.slane %v2118, %v2122
  %v2126 = vsel %vm879, %v2113, 0
  %v2129 = vsel %vm879, %v2114, 0
  %v2132 = vsel %vm879, %v2115, 0
  %v2135 = vsel %vm879, %v2116, 0
  %2137 = vmatprep.subr.mxu0 0.0
  %2138 = vmatpush1.msra.mxu0 %v2117
  %2139 = vmatprep.subr.mxu0 0.0
  %2140 = vmatpush1.msra.mxu0 0.0
  %2141 = vmatprep.subr.mxu0 0.0
  %2142 = vmatpush1.msra.mxu0 0.0
  %2143 = vmatprep.subr.mxu0 0.0
  %2144 = vmatpush1.msra.mxu0 0.0
  %2145 = vmatprep.subr.mxu0 0.0
  %2146 = vmatpush1.msra.mxu0 0.0
  %2147 = vmatprep.subr.mxu0 0.0
  %2148 = vmatpush1.msra.mxu0 0.0
  %2149 = vmatprep.subr.mxu0 0.0
  %2150 = vmatpush1.msra.mxu0 0.0
  %2151 = vmatprep.subr.mxu0 0.0
  %2152 = vmatpush1.msra.mxu0 0.0
  %2153 = vmatprep.subr.mxu0 0.0
  %2154 = vmatpush1.msra.mxu0 0.0
  %2155 = vmatprep.subr.mxu0 0.0
  %2156 = vmatpush1.msra.mxu0 0.0
  %2157 = vmatprep.subr.mxu0 0.0
  %2158 = vmatpush1.msra.mxu0 0.0
  %2159 = vmatprep.subr.mxu0 0.0
  %2160 = vmatpush1.msra.mxu0 0.0
  %2161 = vmatprep.subr.mxu0 0.0
  %2162 = vmatpush1.msra.mxu0 0.0
  %2163 = vmatprep.subr.mxu0 0.0
  %2164 = vmatpush1.msra.mxu0 0.0
  %2165 = vmatprep.subr.mxu0 0.0
  %2166 = vmatpush1.msra.mxu0 0.0
  %2167 = vmatprep.subr.mxu0 0.0
  %2168 = vmatpush1.msra.mxu0 0.0
  %2169 = vmatprep.subr.mxu0 0.0
  %2170 = vmatpush1.msra.mxu0 0.0
  %2171 = vmatprep.subr.mxu0 0.0
  %2172 = vmatpush1.msra.mxu0 0.0
  %2173 = vmatprep.subr.mxu0 0.0
  %2174 = vmatpush1.msra.mxu0 0.0
  %2175 = vmatprep.subr.mxu0 0.0
  %2176 = vmatpush1.msra.mxu0 0.0
  %2177 = vmatprep.subr.mxu0 0.0
  %2178 = vmatpush1.msra.mxu0 0.0
  %2179 = vmatprep.subr.mxu0 0.0
  %2180 = vmatpush1.msra.mxu0 0.0
  %2181 = vmatprep.subr.mxu0 0.0
  %2182 = vmatpush1.msra.mxu0 0.0
  %2183 = vmatprep.subr.mxu0 0.0
  %2184 = vmatpush1.msra.mxu0 0.0
  %2185 = vmatprep.subr.mxu0 0.0
  %2186 = vmatpush1.msra.mxu0 0.0
  %2187 = vmatprep.subr.mxu0 0.0
  %2188 = vmatpush1.msra.mxu0 0.0
  %2189 = vmatprep.subr.mxu0 0.0
  %2190 = vmatpush1.msra.mxu0 0.0
  %2191 = vmatprep.subr.mxu0 0.0
  %2192 = vmatpush1.msra.mxu0 0.0
  %2193 = vmatprep.subr.mxu0 0.0
  %2194 = vmatpush1.msra.mxu0 0.0
  %2195 = vmatprep.subr.mxu0 0.0
  %2196 = vmatpush1.msra.mxu0 0.0
  %2197 = vmatprep.subr.mxu0 0.0
  %2198 = vmatpush1.msra.mxu0 0.0
  %2199 = vmatprep.subr.mxu0 0.0
  %2200 = vmatpush1.msra.mxu0 0.0
  %2201 = vmatprep.mubr.f32.mxu0 0.0
  %2202 = vmatmul.mubr.f32.gmra.mrb[0].mxu0 %v2126
  %v2203 = vpop.f32.mrb[0].mxu0
  %v2204 = vadd.f32 %v2123, %v2203
  %v2205 = vpop.f32.mrb[0].mxu0
  %2206 = vmatprep.mubr.f32.mxu0 0.0
  %2207 = vmatmul.mubr.f32.gmra.mrb[0].mxu0 %v2129
  %v2208 = vpop.f32.mrb[0].mxu0
  %v2209 = vadd.f32 %v2123, %v2208
  %v2210 = vpop.f32.mrb[0].mxu0
  %2211 = vmatprep.mubr.f32.mxu0 0.0
  %2212 = vmatmul.mubr.f32.gmra.mrb[0].mxu0 %v2132
  %v2213 = vpop.f32.mrb[0].mxu0
  %v2214 = vadd.f32 %v2123, %v2213
  %v2215 = vpop.f32.mrb[0].mxu0
  %2216 = vmatprep.mubr.f32.mxu0 0.0
  %2217 = vmatmul.mubr.f32.gmra.mrb[0].mxu0 %v2135
  %v2218 = vpop.f32.mrb[0].mxu0
  %v2219 = vadd.f32 %v2123, %v2218
  %v2220 = vpop.f32.mrb[0].mxu0
  %2221 = vdwg.mxu0
  %2226 = vrot.lane.b32.xlu0 %v2204, 112
  %v2227 = vpop.permute.xlu0 %2226
  %2228 = vrot.lane.b32.xlu0 %v2209, 112
  %v2229 = vpop.permute.xlu0 %2228
  %2230 = vrot.lane.b32.xlu0 %v2214, 112
  %v2231 = vpop.permute.xlu0 %2230
  %2232 = vrot.lane.b32.xlu0 %v2219, 112
  %v2233 = vpop.permute.xlu0 %2232
  %2234 = vrot.lane.b32.xlu0 %v2204, 104
  %v2235 = vpop.permute.xlu0 %2234
  %2236 = vrot.lane.b32.xlu0 %v2209, 104
  %v2237 = vpop.permute.xlu0 %2236
  %2238 = vrot.lane.b32.xlu0 %v2214, 104
  %v2239 = vpop.permute.xlu0 %2238
  %2240 = vrot.lane.b32.xlu0 %v2219, 104
  %v2241 = vpop.permute.xlu0 %2240
  %v2242 = vsel %vm879, %v2227, 0
  %v2244 = vsel %vm879, %v2229, 0
  %v2246 = vsel %vm879, %v2231, 0
  %v2248 = vsel %vm879, %v2233, 0
  %v2250 = vsel %vm879, %v2235, 0
  %v2252 = vsel %vm879, %v2237, 0
  %v2254 = vsel %vm879, %v2239, 0
  %v2256 = vsel %vm879, %v2241, 0
  %2258 = vmatprep.subr.mxu0 0.0
  %2259 = vmatpush1.xpose.msra.mxu0 %v2250
  %2260 = vmatprep.subr.mxu0 0.0
  %2261 = vmatpush1.xpose.msra.mxu0 %v2252
  %2262 = vmatprep.subr.mxu0 0.0
  %2263 = vmatpush1.xpose.msra.mxu0 %v2254
  %2264 = vmatprep.subr.mxu0 0.0
  %2265 = vmatpush1.xpose.msra.mxu0 %v2256
  %2266 = vmatprep.subr.mxu0 0.0
  %2267 = vmatpush1.xpose.msra.mxu0 0.0
  %2268 = vmatprep.subr.mxu0 0.0
  %2269 = vmatpush1.xpose.msra.mxu0 0.0
  %2270 = vmatprep.subr.mxu0 0.0
  %2271 = vmatpush1.xpose.msra.mxu0 0.0
  %2272 = vmatprep.subr.mxu0 0.0
  %2273 = vmatpush1.xpose.msra.mxu0 0.0
  %2274 = vmatprep.subr.mxu0 0.0
  %2275 = vmatpush1.xpose.msra.mxu0 0.0
  %2276 = vmatprep.subr.mxu0 0.0
  %2277 = vmatpush1.xpose.msra.mxu0 0.0
  %2278 = vmatprep.subr.mxu0 0.0
  %2279 = vmatpush1.xpose.msra.mxu0 0.0
  %2280 = vmatprep.subr.mxu0 0.0
  %2281 = vmatpush1.xpose.msra.mxu0 0.0
  %2282 = vmatprep.subr.mxu0 0.0
  %2283 = vmatpush1.xpose.msra.mxu0 0.0
  %2284 = vmatprep.subr.mxu0 0.0
  %2285 = vmatpush1.xpose.msra.mxu0 0.0
  %2286 = vmatprep.subr.mxu0 0.0
  %2287 = vmatpush1.xpose.msra.mxu0 0.0
  %2288 = vmatprep.subr.mxu0 0.0
  %2289 = vmatpush1.xpose.msra.mxu0 0.0
  %2290 = vmatprep.subr.mxu0 0.0
  %2291 = vmatpush1.xpose.msra.mxu0 0.0
  %2292 = vmatprep.subr.mxu0 0.0
  %2293 = vmatpush1.xpose.msra.mxu0 0.0
  %2294 = vmatprep.subr.mxu0 0.0
  %2295 = vmatpush1.xpose.msra.mxu0 0.0
  %2296 = vmatprep.subr.mxu0 0.0
  %2297 = vmatpush1.xpose.msra.mxu0 0.0
  %2298 = vmatprep.subr.mxu0 0.0
  %2299 = vmatpush1.xpose.msra.mxu0 0.0
  %2300 = vmatprep.subr.mxu0 0.0
  %2301 = vmatpush1.xpose.msra.mxu0 0.0
  %2302 = vmatprep.subr.mxu0 0.0
  %2303 = vmatpush1.xpose.msra.mxu0 0.0
  %2304 = vmatprep.subr.mxu0 0.0
  %2305 = vmatpush1.xpose.msra.mxu0 0.0
  %2306 = vmatprep.subr.mxu0 0.0
  %2307 = vmatpush1.xpose.msra.mxu0 0.0
  %2308 = vmatprep.subr.mxu0 0.0
  %2309 = vmatpush1.xpose.msra.mxu0 0.0
  %2310 = vmatprep.subr.mxu0 0.0
  %2311 = vmatpush1.xpose.msra.mxu0 0.0
  %2312 = vmatprep.subr.mxu0 0.0
  %2313 = vmatpush1.xpose.msra.mxu0 0.0
  %2314 = vmatprep.subr.mxu0 0.0
  %2315 = vmatpush1.xpose.msra.mxu0 0.0
  %2316 = vmatprep.subr.mxu0 0.0
  %2317 = vmatpush1.xpose.msra.mxu0 0.0
  %2318 = vmatprep.subr.mxu0 0.0
  %2319 = vmatpush1.xpose.msra.mxu0 0.0
  %2320 = vmatprep.subr.mxu0 0.0
  %2321 = vmatpush1.xpose.msra.mxu0 0.0
  %2322 = vmatprep.mubr.f32.mxu0 0.0
  %2323 = vmatmul.mubr.f32.gmra.mrb[0].mxu0 %v2242
  %v2324 = vpop.f32.mrb[0].mxu0
  %v2325 = vadd.f32 0.0, %v2324
  %v2326 = vpop.f32.mrb[0].mxu0
  %2327 = vmatprep.mubr.f32.mxu0 0.0
  %2328 = vmatmul.mubr.f32.gmra.mrb[0].mxu0 %v2244
  %v2329 = vpop.f32.mrb[0].mxu0
  %v2330 = vadd.f32 0.0, %v2329
  %v2331 = vpop.f32.mrb[0].mxu0
  %2332 = vmatprep.mubr.f32.mxu0 0.0
  %2333 = vmatmul.mubr.f32.gmra.mrb[0].mxu0 %v2246
  %v2334 = vpop.f32.mrb[0].mxu0
  %v2335 = vadd.f32 0.0, %v2334
  %v2336 = vpop.f32.mrb[0].mxu0
  %2337 = vmatprep.mubr.f32.mxu0 0.0
  %2338 = vmatmul.mubr.f32.gmra.mrb[0].mxu0 %v2248
  %v2339 = vpop.f32.mrb[0].mxu0
  %v2340 = vadd.f32 0.0, %v2339
  %v2341 = vpop.f32.mrb[0].mxu0
  %2342 = vdwg.mxu0
  %2343 = vrot.lane.b32.xlu0 %v2204, 120
  %v2344 = vpop.permute.xlu0 %2343
  %2345 = vrot.lane.b32.xlu0 %v2209, 120
  %v2346 = vpop.permute.xlu0 %2345
  %2347 = vrot.lane.b32.xlu0 %v2214, 120
  %v2348 = vpop.permute.xlu0 %2347
  %2349 = vrot.lane.b32.xlu0 %v2219, 120
  %v2350 = vpop.permute.xlu0 %2349
  %v2351 = vsel %vm879, %v2204, 0
  %v2353 = vsel %vm879, %v2209, 0
  %v2355 = vsel %vm879, %v2214, 0
  %v2357 = vsel %vm879, %v2219, 0
  %v2359 = vsel %vm879, %v2344, 0
  %v2361 = vsel %vm879, %v2346, 0
  %v2363 = vsel %vm879, %v2348, 0
  %v2365 = vsel %vm879, %v2350, 0
  %2367 = vmatprep.subr.mxu0 0.0
  %2368 = vmatpush1.xpose.msra.mxu0 %v2359
  %2369 = vmatprep.subr.mxu0 0.0
  %2370 = vmatpush1.xpose.msra.mxu0 %v2361
  %2371 = vmatprep.subr.mxu0 0.0
  %2372 = vmatpush1.xpose.msra.mxu0 %v2363
  %2373 = vmatprep.subr.mxu0 0.0
  %2374 = vmatpush1.xpose.msra.mxu0 %v2365
  %2375 = vmatprep.subr.mxu0 0.0
  %2376 = vmatpush1.xpose.msra.mxu0 0.0
  %2377 = vmatprep.subr.mxu0 0.0
  %2378 = vmatpush1.xpose.msra.mxu0 0.0
  %2379 = vmatprep.subr.mxu0 0.0
  %2380 = vmatpush1.xpose.msra.mxu0 0.0
  %2381 = vmatprep.subr.mxu0 0.0
  %2382 = vmatpush1.xpose.msra.mxu0 0.0
  %2383 = vmatprep.subr.mxu0 0.0
  %2384 = vmatpush1.xpose.msra.mxu0 0.0
  %2385 = vmatprep.subr.mxu0 0.0
  %2386 = vmatpush1.xpose.msra.mxu0 0.0
  %2387 = vmatprep.subr.mxu0 0.0
  %2388 = vmatpush1.xpose.msra.mxu0 0.0
  %2389 = vmatprep.subr.mxu0 0.0
  %2390 = vmatpush1.xpose.msra.mxu0 0.0
  %2391 = vmatprep.subr.mxu0 0.0
  %2392 = vmatpush1.xpose.msra.mxu0 0.0
  %2393 = vmatprep.subr.mxu0 0.0
  %2394 = vmatpush1.xpose.msra.mxu0 0.0
  %2395 = vmatprep.subr.mxu0 0.0
  %2396 = vmatpush1.xpose.msra.mxu0 0.0
  %2397 = vmatprep.subr.mxu0 0.0
  %2398 = vmatpush1.xpose.msra.mxu0 0.0
  %2399 = vmatprep.subr.mxu0 0.0
  %2400 = vmatpush1.xpose.msra.mxu0 0.0
  %2401 = vmatprep.subr.mxu0 0.0
  %2402 = vmatpush1.xpose.msra.mxu0 0.0
  %2403 = vmatprep.subr.mxu0 0.0
  %2404 = vmatpush1.xpose.msra.mxu0 0.0
  %2405 = vmatprep.subr.mxu0 0.0
  %2406 = vmatpush1.xpose.msra.mxu0 0.0
  %2407 = vmatprep.subr.mxu0 0.0
  %2408 = vmatpush1.xpose.msra.mxu0 0.0
  %2409 = vmatprep.subr.mxu0 0.0
  %2410 = vmatpush1.xpose.msra.mxu0 0.0
  %2411 = vmatprep.subr.mxu0 0.0
  %2412 = vmatpush1.xpose.msra.mxu0 0.0
  %2413 = vmatprep.subr.mxu0 0.0
  %2414 = vmatpush1.xpose.msra.mxu0 0.0
  %2415 = vmatprep.subr.mxu0 0.0
  %2416 = vmatpush1.xpose.msra.mxu0 0.0
  %2417 = vmatprep.subr.mxu0 0.0
  %2418 = vmatpush1.xpose.msra.mxu0 0.0
  %2419 = vmatprep.subr.mxu0 0.0
  %2420 = vmatpush1.xpose.msra.mxu0 0.0
  %2421 = vmatprep.subr.mxu0 0.0
  %2422 = vmatpush1.xpose.msra.mxu0 0.0
  %2423 = vmatprep.subr.mxu0 0.0
  %2424 = vmatpush1.xpose.msra.mxu0 0.0
  %2425 = vmatprep.subr.mxu0 0.0
  %2426 = vmatpush1.xpose.msra.mxu0 0.0
  %2427 = vmatprep.subr.mxu0 0.0
  %2428 = vmatpush1.xpose.msra.mxu0 0.0
  %2429 = vmatprep.subr.mxu0 0.0
  %2430 = vmatpush1.xpose.msra.mxu0 0.0
  %2431 = vmatprep.mubr.f32.mxu0 0.0
  %2432 = vmatmul.mubr.f32.gmra.mrb[0].mxu0 %v2351
  %v2433 = vpop.f32.mrb[0].mxu0
  %v2434 = vadd.f32 %v2325, %v2433
  %v2435 = vpop.f32.mrb[0].mxu0
  %2436 = vmatprep.mubr.f32.mxu0 0.0
  %2437 = vmatmul.mubr.f32.gmra.mrb[0].mxu0 %v2353
  %v2438 = vpop.f32.mrb[0].mxu0
  %v2439 = vadd.f32 %v2330, %v2438
  %v2440 = vpop.f32.mrb[0].mxu0
  %2441 = vmatprep.mubr.f32.mxu0 0.0
  %2442 = vmatmul.mubr.f32.gmra.mrb[0].mxu0 %v2355
  %v2443 = vpop.f32.mrb[0].mxu0
  %v2444 = vadd.f32 %v2335, %v2443
  %v2445 = vpop.f32.mrb[0].mxu0
  %2446 = vmatprep.mubr.f32.mxu0 0.0
  %2447 = vmatmul.mubr.f32.gmra.mrb[0].mxu0 %v2357
  %v2448 = vpop.f32.mrb[0].mxu0
  %v2449 = vadd.f32 %v2340, %v2448
  %v2450 = vpop.f32.mrb[0].mxu0
  %2451 = vdwg.mxu0
  %v2453 = vsel %vm1279, %v2434, 0
  %v2456 = vsel %vm1279, %v2439, 0
  %v2459 = vsel %vm1279, %v2444, 0
  %v2462 = vsel %vm1279, %v2449, 0
  %2464 = vmatprep.subr.mxu0 0.0
  %2465 = vmatpush1.msra.mxu0 %v2113
  %2466 = vmatprep.subr.mxu0 0.0
  %2467 = vmatpush1.msra.mxu0 %v2114
  %2468 = vmatprep.subr.mxu0 0.0
  %2469 = vmatpush1.msra.mxu0 %v2115
  %2470 = vmatprep.subr.mxu0 0.0
  %2471 = vmatpush1.msra.mxu0 %v2116
  %2472 = vmatprep.subr.mxu0 0.0
  %2473 = vmatpush1.msra.mxu0 0.0
  %2474 = vmatprep.subr.mxu0 0.0
  %2475 = vmatpush1.msra.mxu0 0.0
  %2476 = vmatprep.subr.mxu0 0.0
  %2477 = vmatpush1.msra.mxu0 0.0
  %2478 = vmatprep.subr.mxu0 0.0
  %2479 = vmatpush1.msra.mxu0 0.0
  %2480 = vmatprep.subr.mxu0 0.0
  %2481 = vmatpush1.msra.mxu0 0.0
  %2482 = vmatprep.subr.mxu0 0.0
  %2483 = vmatpush1.msra.mxu0 0.0
  %2484 = vmatprep.subr.mxu0 0.0
  %2485 = vmatpush1.msra.mxu0 0.0
  %2486 = vmatprep.subr.mxu0 0.0
  %2487 = vmatpush1.msra.mxu0 0.0
  %2488 = vmatprep.subr.mxu0 0.0
  %2489 = vmatpush1.msra.mxu0 0.0
  %2490 = vmatprep.subr.mxu0 0.0
  %2491 = vmatpush1.msra.mxu0 0.0
  %2492 = vmatprep.subr.mxu0 0.0
  %2493 = vmatpush1.msra.mxu0 0.0
  %2494 = vmatprep.subr.mxu0 0.0
  %2495 = vmatpush1.msra.mxu0 0.0
  %2496 = vmatprep.subr.mxu0 0.0
  %2497 = vmatpush1.msra.mxu0 0.0
  %2498 = vmatprep.subr.mxu0 0.0
  %2499 = vmatpush1.msra.mxu0 0.0
  %2500 = vmatprep.subr.mxu0 0.0
  %2501 = vmatpush1.msra.mxu0 0.0
  %2502 = vmatprep.subr.mxu0 0.0
  %2503 = vmatpush1.msra.mxu0 0.0
  %2504 = vmatprep.subr.mxu0 0.0
  %2505 = vmatpush1.msra.mxu0 0.0
  %2506 = vmatprep.subr.mxu0 0.0
  %2507 = vmatpush1.msra.mxu0 0.0
  %2508 = vmatprep.subr.mxu0 0.0
  %2509 = vmatpush1.msra.mxu0 0.0
  %2510 = vmatprep.subr.mxu0 0.0
  %2511 = vmatpush1.msra.mxu0 0.0
  %2512 = vmatprep.subr.mxu0 0.0
  %2513 = vmatpush1.msra.mxu0 0.0
  %2514 = vmatprep.subr.mxu0 0.0
  %2515 = vmatpush1.msra.mxu0 0.0
  %2516 = vmatprep.subr.mxu0 0.0
  %2517 = vmatpush1.msra.mxu0 0.0
  %2518 = vmatprep.subr.mxu0 0.0
  %2519 = vmatpush1.msra.mxu0 0.0
  %2520 = vmatprep.subr.mxu0 0.0
  %2521 = vmatpush1.msra.mxu0 0.0
  %2522 = vmatprep.subr.mxu0 0.0
  %2523 = vmatpush1.msra.mxu0 0.0
  %2524 = vmatprep.subr.mxu0 0.0
  %2525 = vmatpush1.msra.mxu0 0.0
  %2526 = vmatprep.subr.mxu0 0.0
  %2527 = vmatpush1.msra.mxu0 0.0
  %2528 = vmatprep.mubr.f32.mxu0 0.0
  %2529 = vmatmul.mubr.f32.gmra.mrb[0].mxu0 %v2453
  %v2530 = vpop.f32.mrb[0].mxu0
  %v2531 = vadd.f32 0.0, %v2530
  %v2532 = vpop.f32.mrb[0].mxu0
  %2533 = vmatprep.mubr.f32.mxu0 0.0
  %2534 = vmatmul.mubr.f32.gmra.mrb[0].mxu0 %v2456
  %v2535 = vpop.f32.mrb[0].mxu0
  %v2536 = vadd.f32 0.0, %v2535
  %v2537 = vpop.f32.mrb[0].mxu0
  %2538 = vmatprep.mubr.f32.mxu0 0.0
  %2539 = vmatmul.mubr.f32.gmra.mrb[0].mxu0 %v2459
  %v2540 = vpop.f32.mrb[0].mxu0
  %v2541 = vadd.f32 0.0, %v2540
  %v2542 = vpop.f32.mrb[0].mxu0
  %2543 = vmatprep.mubr.f32.mxu0 0.0
  %2544 = vmatmul.mubr.f32.gmra.mrb[0].mxu0 %v2462
  %v2545 = vpop.f32.mrb[0].mxu0
  %v2546 = vadd.f32 0.0, %v2545
  %v2547 = vpop.f32.mrb[0].mxu0
  %2548 = vdwg.mxu0
  %v2549 = vmul.f32 %v2531, 0.15713482
  %v2550 = vmul.f32 %v2536, 0.15713482
  %v2551 = vmul.f32 %v2541, 0.15713482
  %v2552 = vmul.f32 %v2546, 0.15713482
  %v2553 = vld [vmem:[%s1381] sm:$0xff]
  %v2554 = vld [vmem:[%s1381 + $0x8] sm:$0xff]
  %v2555 = vld [vmem:[%s1381 + $0x10] sm:$0xff]
  %v2556 = vld [vmem:[%s1381 + $0x18] sm:$0xff]
  %v2557 = vld [vmem:[%s1386] sm:$0xff]
  %v2558 = vld [vmem:[%s1386 + $0x8] sm:$0xff]
  %v2559 = vld [vmem:[%s1386 + $0x10] sm:$0xff]
  %v2560 = vld [vmem:[%s1386 + $0x18] sm:$0xff]
  %v2561 = vsel %vm879, %v2549, 0.0
  %v2562 = vsel %vm879, %v2550, 0.0
  %v2563 = vadd.f32 %v2561, %v2562
  %v2564 = vsel %vm879, %v2551, 0.0
  %v2565 = vadd.f32 %v2563, %v2564
  %v2566 = vsel %vm879, %v2552, 0.0
  %v2567 = vadd.f32 %v2565, %v2566
  %2568 = vadd.xlane.f32.xlu0 %v2567
  %v2569 = vpop.xlane.xlu0 %2568
  %v2570 = vrot.slane %v2569, 4
  %v2571 = vadd.f32 %v2569, %v2570
  %v2572 = vrot.slane %v2571, 2
  %v2573 = vadd.f32 %v2571, %v2572
  %v2574 = vrot.slane %v2573, 1
  %v2575 = vadd.f32 %v2573, %v2574
  %s2576 = vtos %v2575
  %v2577 = vrcp.pop 256.0
  %s2578 = vtos %v2577
  %s2579 = smul.f32 %s2576, %s2578
  %v2580 = vstv %s2579
  %v2581 = vsub.f32 %v2549, %v2580
  %v2582 = vsub.f32 %v2550, %v2580
  %v2583 = vsub.f32 %v2551, %v2580
  %v2584 = vsub.f32 %v2552, %v2580
  %v2585 = vmul.f32 %v2581, %v2581
  %v2586 = vmul.f32 %v2582, %v2582
  %v2587 = vmul.f32 %v2583, %v2583
  %v2588 = vmul.f32 %v2584, %v2584
  %v2589 = vsel %vm879, %v2585, 0.0
  %v2590 = vsel %vm879, %v2586, 0.0
  %v2591 = vadd.f32 %v2589, %v2590
  %v2592 = vsel %vm879, %v2587, 0.0
  %v2593 = vadd.f32 %v2591, %v2592
  %v2594 = vsel %vm879, %v2588, 0.0
  %v2595 = vadd.f32 %v2593, %v2594
  %2596 = vadd.xlane.f32.xlu0 %v2595
  %v2597 = vpop.xlane.xlu0 %2596
  %v2598 = vrot.slane %v2597, 4
  %v2599 = vadd.f32 %v2597, %v2598
  %v2600 = vrot.slane %v2599, 2
  %v2601 = vadd.f32 %v2599, %v2600
  %v2602 = vrot.slane %v2601, 1
  %v2603 = vadd.f32 %v2601, %v2602
  %s2604 = vtos %v2603
  %v2605 = vrcp.pop 256.0
  %s2606 = vtos %v2605
  %s2607 = smul.f32 %s2604, %s2606
  %s2608 = sadd.f32 %s2607, 1e-05
  %v2609 = vstv %s2608
  %v2610 = vrsqrt.pop %v2609
  %s2611 = vtos %v2610
  %v2612 = vstv %s2611
  %v2613 = vmul.f32 %v2581, %v2612
  %v2614 = vmul.f32 %v2582, %v2612
  %v2615 = vmul.f32 %v2583, %v2612
  %v2616 = vmul.f32 %v2584, %v2612
  %v2617 = vmul.f32 %v2613, %v2553
  %v2618 = vmul.f32 %v2614, %v2554
  %v2619 = vmul.f32 %v2615, %v2555
  %v2620 = vmul.f32 %v2616, %v2556
  %v2621 = vadd.f32 %v2617, %v2557
  %v2622 = vadd.f32 %v2618, %v2558
  %v2623 = vadd.f32 %v2619, %v2559
  %v2624 = vadd.f32 %v2620, %v2560
  %v2625 = vadd.f32 %v2621, %v2113
  %v2626 = vadd.f32 %v2622, %v2114
  %v2627 = vadd.f32 %v2623, %v2115
  %v2628 = vadd.f32 %v2624, %v2116
  %v2629 = vld [vmem:[%s1459] sm:$0xff]
  %v2630 = vld [vmem:[%s1461] sm:$0x1]
  %v2632 = vlaneseq
  %v2633 = vshrl.u32 %v2632, 7
  %v2634 = vsub.s32 0, %v2633
  %v2635 = vrot.slane %v2630, %v2634
  %v2638 = vsel %vm879, %v2625, 0
  %v2641 = vsel %vm879, %v2626, 0
  %v2644 = vsel %vm879, %v2627, 0
  %v2647 = vsel %vm879, %v2628, 0
  %2649 = vmatprep.subr.mxu0 0.0
  %2650 = vmatpush1.msra.mxu0 %v2629
  %2651 = vmatprep.subr.mxu0 0.0
  %2652 = vmatpush1.msra.mxu0 0.0
  %2653 = vmatprep.subr.mxu0 0.0
  %2654 = vmatpush1.msra.mxu0 0.0
  %2655 = vmatprep.subr.mxu0 0.0
  %2656 = vmatpush1.msra.mxu0 0.0
  %2657 = vmatprep.subr.mxu0 0.0
  %2658 = vmatpush1.msra.mxu0 0.0
  %2659 = vmatprep.subr.mxu0 0.0
  %2660 = vmatpush1.msra.mxu0 0.0
  %2661 = vmatprep.subr.mxu0 0.0
  %2662 = vmatpush1.msra.mxu0 0.0
  %2663 = vmatprep.subr.mxu0 0.0
  %2664 = vmatpush1.msra.mxu0 0.0
  %2665 = vmatprep.subr.mxu0 0.0
  %2666 = vmatpush1.msra.mxu0 0.0
  %2667 = vmatprep.subr.mxu0 0.0
  %2668 = vmatpush1.msra.mxu0 0.0
  %2669 = vmatprep.subr.mxu0 0.0
  %2670 = vmatpush1.msra.mxu0 0.0
  %2671 = vmatprep.subr.mxu0 0.0
  %2672 = vmatpush1.msra.mxu0 0.0
  %2673 = vmatprep.subr.mxu0 0.0
  %2674 = vmatpush1.msra.mxu0 0.0
  %2675 = vmatprep.subr.mxu0 0.0
  %2676 = vmatpush1.msra.mxu0 0.0
  %2677 = vmatprep.subr.mxu0 0.0
  %2678 = vmatpush1.msra.mxu0 0.0
  %2679 = vmatprep.subr.mxu0 0.0
  %2680 = vmatpush1.msra.mxu0 0.0
  %2681 = vmatprep.subr.mxu0 0.0
  %2682 = vmatpush1.msra.mxu0 0.0
  %2683 = vmatprep.subr.mxu0 0.0
  %2684 = vmatpush1.msra.mxu0 0.0
  %2685 = vmatprep.subr.mxu0 0.0
  %2686 = vmatpush1.msra.mxu0 0.0
  %2687 = vmatprep.subr.mxu0 0.0
  %2688 = vmatpush1.msra.mxu0 0.0
  %2689 = vmatprep.subr.mxu0 0.0
  %2690 = vmatpush1.msra.mxu0 0.0
  %2691 = vmatprep.subr.mxu0 0.0
  %2692 = vmatpush1.msra.mxu0 0.0
  %2693 = vmatprep.subr.mxu0 0.0
  %2694 = vmatpush1.msra.mxu0 0.0
  %2695 = vmatprep.subr.mxu0 0.0
  %2696 = vmatpush1.msra.mxu0 0.0
  %2697 = vmatprep.subr.mxu0 0.0
  %2698 = vmatpush1.msra.mxu0 0.0
  %2699 = vmatprep.subr.mxu0 0.0
  %2700 = vmatpush1.msra.mxu0 0.0
  %2701 = vmatprep.subr.mxu0 0.0
  %2702 = vmatpush1.msra.mxu0 0.0
  %2703 = vmatprep.subr.mxu0 0.0
  %2704 = vmatpush1.msra.mxu0 0.0
  %2705 = vmatprep.subr.mxu0 0.0
  %2706 = vmatpush1.msra.mxu0 0.0
  %2707 = vmatprep.subr.mxu0 0.0
  %2708 = vmatpush1.msra.mxu0 0.0
  %2709 = vmatprep.subr.mxu0 0.0
  %2710 = vmatpush1.msra.mxu0 0.0
  %2711 = vmatprep.subr.mxu0 0.0
  %2712 = vmatpush1.msra.mxu0 0.0
  %2713 = vmatprep.mubr.f32.mxu0 0.0
  %2714 = vmatmul.mubr.f32.gmra.mrb[0].mxu0 %v2638
  %v2715 = vpop.f32.mrb[0].mxu0
  %v2716 = vadd.f32 %v2635, %v2715
  %v2717 = vpop.f32.mrb[0].mxu0
  %2718 = vmatprep.mubr.f32.mxu0 0.0
  %2719 = vmatmul.mubr.f32.gmra.mrb[0].mxu0 %v2641
  %v2720 = vpop.f32.mrb[0].mxu0
  %v2721 = vadd.f32 %v2635, %v2720
  %v2722 = vpop.f32.mrb[0].mxu0
  %2723 = vmatprep.mubr.f32.mxu0 0.0
  %2724 = vmatmul.mubr.f32.gmra.mrb[0].mxu0 %v2644
  %v2725 = vpop.f32.mrb[0].mxu0
  %v2726 = vadd.f32 %v2635, %v2725
  %v2727 = vpop.f32.mrb[0].mxu0
  %2728 = vmatprep.mubr.f32.mxu0 0.0
  %2729 = vmatmul.mubr.f32.gmra.mrb[0].mxu0 %v2647
  %v2730 = vpop.f32.mrb[0].mxu0
  %v2731 = vadd.f32 %v2635, %v2730
  %v2732 = vpop.f32.mrb[0].mxu0
  %2733 = vdwg.mxu0
  %2738 = vrot.lane.b32.xlu0 %v2716, 112
  %v2739 = vpop.permute.xlu0 %2738
  %2740 = vrot.lane.b32.xlu0 %v2721, 112
  %v2741 = vpop.permute.xlu0 %2740
  %2742 = vrot.lane.b32.xlu0 %v2726, 112
  %v2743 = vpop.permute.xlu0 %2742
  %2744 = vrot.lane.b32.xlu0 %v2731, 112
  %v2745 = vpop.permute.xlu0 %2744
  %2746 = vrot.lane.b32.xlu0 %v2716, 104
  %v2747 = vpop.permute.xlu0 %2746
  %2748 = vrot.lane.b32.xlu0 %v2721, 104
  %v2749 = vpop.permute.xlu0 %2748
  %v2750 = vsel %vm879, %v2739, 0
  %v2752 = vsel %vm879, %v2741, 0
  %v2754 = vsel %vm879, %v2743, 0
  %v2756 = vsel %vm879, %v2745, 0
  %v2758 = vsel %vm879, %v2747, 0
  %v2760 = vsel %vm879, %v2749, 0
  %2762 = vmatprep.subr.mxu0 0.0
  %2763 = vmatpush1.xpose.msra.mxu0 %v2758
  %2764 = vmatprep.subr.mxu0 0.0
  %2765 = vmatpush1.xpose.msra.mxu0 %v2760
  %2766 = vmatprep.subr.mxu0 0.0
  %2767 = vmatpush1.xpose.msra.mxu0 0.0
  %2768 = vmatprep.subr.mxu0 0.0
  %2769 = vmatpush1.xpose.msra.mxu0 0.0
  %2770 = vmatprep.subr.mxu0 0.0
  %2771 = vmatpush1.xpose.msra.mxu0 0.0
  %2772 = vmatprep.subr.mxu0 0.0
  %2773 = vmatpush1.xpose.msra.mxu0 0.0
  %2774 = vmatprep.subr.mxu0 0.0
  %2775 = vmatpush1.xpose.msra.mxu0 0.0
  %2776 = vmatprep.subr.mxu0 0.0
  %2777 = vmatpush1.xpose.msra.mxu0 0.0
  %2778 = vmatprep.subr.mxu0 0.0
  %2779 = vmatpush1.xpose.msra.mxu0 0.0
  %2780 = vmatprep.subr.mxu0 0.0
  %2781 = vmatpush1.xpose.msra.mxu0 0.0
  %2782 = vmatprep.subr.mxu0 0.0
  %2783 = vmatpush1.xpose.msra.mxu0 0.0
  %2784 = vmatprep.subr.mxu0 0.0
  %2785 = vmatpush1.xpose.msra.mxu0 0.0
  %2786 = vmatprep.subr.mxu0 0.0
  %2787 = vmatpush1.xpose.msra.mxu0 0.0
  %2788 = vmatprep.subr.mxu0 0.0
  %2789 = vmatpush1.xpose.msra.mxu0 0.0
  %2790 = vmatprep.subr.mxu0 0.0
  %2791 = vmatpush1.xpose.msra.mxu0 0.0
  %2792 = vmatprep.subr.mxu0 0.0
  %2793 = vmatpush1.xpose.msra.mxu0 0.0
  %2794 = vmatprep.subr.mxu0 0.0
  %2795 = vmatpush1.xpose.msra.mxu0 0.0
  %2796 = vmatprep.subr.mxu0 0.0
  %2797 = vmatpush1.xpose.msra.mxu0 0.0
  %2798 = vmatprep.subr.mxu0 0.0
  %2799 = vmatpush1.xpose.msra.mxu0 0.0
  %2800 = vmatprep.subr.mxu0 0.0
  %2801 = vmatpush1.xpose.msra.mxu0 0.0
  %2802 = vmatprep.subr.mxu0 0.0
  %2803 = vmatpush1.xpose.msra.mxu0 0.0
  %2804 = vmatprep.subr.mxu0 0.0
  %2805 = vmatpush1.xpose.msra.mxu0 0.0
  %2806 = vmatprep.subr.mxu0 0.0
  %2807 = vmatpush1.xpose.msra.mxu0 0.0
  %2808 = vmatprep.subr.mxu0 0.0
  %2809 = vmatpush1.xpose.msra.mxu0 0.0
  %2810 = vmatprep.subr.mxu0 0.0
  %2811 = vmatpush1.xpose.msra.mxu0 0.0
  %2812 = vmatprep.subr.mxu0 0.0
  %2813 = vmatpush1.xpose.msra.mxu0 0.0
  %2814 = vmatprep.subr.mxu0 0.0
  %2815 = vmatpush1.xpose.msra.mxu0 0.0
  %2816 = vmatprep.subr.mxu0 0.0
  %2817 = vmatpush1.xpose.msra.mxu0 0.0
  %2818 = vmatprep.subr.mxu0 0.0
  %2819 = vmatpush1.xpose.msra.mxu0 0.0
  %2820 = vmatprep.subr.mxu0 0.0
  %2821 = vmatpush1.xpose.msra.mxu0 0.0
  %2822 = vmatprep.subr.mxu0 0.0
  %2823 = vmatpush1.xpose.msra.mxu0 0.0
  %2824 = vmatprep.subr.mxu0 0.0
  %2825 = vmatpush1.xpose.msra.mxu0 0.0
  %2826 = vmatprep.mubr.f32.mxu0 0.0
  %2827 = vmatmul.mubr.f32.gmra.mrb[0].mxu0 %v2750
  %v2828 = vpop.f32.mrb[0].mxu0
  %v2829 = vadd.f32 0.0, %v2828
  %v2830 = vpop.f32.mrb[0].mxu0
  %2831 = vmatprep.mubr.f32.mxu0 0.0
  %2832 = vmatmul.mubr.f32.gmra.mrb[0].mxu0 %v2752
  %v2833 = vpop.f32.mrb[0].mxu0
  %v2834 = vadd.f32 0.0, %v2833
  %v2835 = vpop.f32.mrb[0].mxu0
  %2836 = vmatprep.mubr.f32.mxu0 0.0
  %2837 = vmatmul.mubr.f32.gmra.mrb[0].mxu0 %v2754
  %v2838 = vpop.f32.mrb[0].mxu0
  %v2839 = vadd.f32 0.0, %v2838
  %v2840 = vpop.f32.mrb[0].mxu0
  %2841 = vmatprep.mubr.f32.mxu0 0.0
  %2842 = vmatmul.mubr.f32.gmra.mrb[0].mxu0 %v2756
  %v2843 = vpop.f32.mrb[0].mxu0
  %v2844 = vadd.f32 0.0, %v2843
  %v2845 = vpop.f32.mrb[0].mxu0
  %2846 = vdwg.mxu0
  %2847 = vrot.lane.b32.xlu0 %v2716, 120
  %v2848 = vpop.permute.xlu0 %2847
  %2849 = vrot.lane.b32.xlu0 %v2721, 120
  %v2850 = vpop.permute.xlu0 %2849
  %v2851 = vsel %vm879, %v2716, 0
  %v2853 = vsel %vm879, %v2721, 0
  %v2855 = vsel %vm879, %v2726, 0
  %v2857 = vsel %vm879, %v2731, 0
  %v2859 = vsel %vm879, %v2848, 0
  %v2861 = vsel %vm879, %v2850, 0
  %2863 = vmatprep.subr.mxu0 0.0
  %2864 = vmatpush1.xpose.msra.mxu0 %v2859
  %2865 = vmatprep.subr.mxu0 0.0
  %2866 = vmatpush1.xpose.msra.mxu0 %v2861
  %2867 = vmatprep.subr.mxu0 0.0
  %2868 = vmatpush1.xpose.msra.mxu0 0.0
  %2869 = vmatprep.subr.mxu0 0.0
  %2870 = vmatpush1.xpose.msra.mxu0 0.0
  %2871 = vmatprep.subr.mxu0 0.0
  %2872 = vmatpush1.xpose.msra.mxu0 0.0
  %2873 = vmatprep.subr.mxu0 0.0
  %2874 = vmatpush1.xpose.msra.mxu0 0.0
  %2875 = vmatprep.subr.mxu0 0.0
  %2876 = vmatpush1.xpose.msra.mxu0 0.0
  %2877 = vmatprep.subr.mxu0 0.0
  %2878 = vmatpush1.xpose.msra.mxu0 0.0
  %2879 = vmatprep.subr.mxu0 0.0
  %2880 = vmatpush1.xpose.msra.mxu0 0.0
  %2881 = vmatprep.subr.mxu0 0.0
  %2882 = vmatpush1.xpose.msra.mxu0 0.0
  %2883 = vmatprep.subr.mxu0 0.0
  %2884 = vmatpush1.xpose.msra.mxu0 0.0
  %2885 = vmatprep.subr.mxu0 0.0
  %2886 = vmatpush1.xpose.msra.mxu0 0.0
  %2887 = vmatprep.subr.mxu0 0.0
  %2888 = vmatpush1.xpose.msra.mxu0 0.0
  %2889 = vmatprep.subr.mxu0 0.0
  %2890 = vmatpush1.xpose.msra.mxu0 0.0
  %2891 = vmatprep.subr.mxu0 0.0
  %2892 = vmatpush1.xpose.msra.mxu0 0.0
  %2893 = vmatprep.subr.mxu0 0.0
  %2894 = vmatpush1.xpose.msra.mxu0 0.0
  %2895 = vmatprep.subr.mxu0 0.0
  %2896 = vmatpush1.xpose.msra.mxu0 0.0
  %2897 = vmatprep.subr.mxu0 0.0
  %2898 = vmatpush1.xpose.msra.mxu0 0.0
  %2899 = vmatprep.subr.mxu0 0.0
  %2900 = vmatpush1.xpose.msra.mxu0 0.0
  %2901 = vmatprep.subr.mxu0 0.0
  %2902 = vmatpush1.xpose.msra.mxu0 0.0
  %2903 = vmatprep.subr.mxu0 0.0
  %2904 = vmatpush1.xpose.msra.mxu0 0.0
  %2905 = vmatprep.subr.mxu0 0.0
  %2906 = vmatpush1.xpose.msra.mxu0 0.0
  %2907 = vmatprep.subr.mxu0 0.0
  %2908 = vmatpush1.xpose.msra.mxu0 0.0
  %2909 = vmatprep.subr.mxu0 0.0
  %2910 = vmatpush1.xpose.msra.mxu0 0.0
  %2911 = vmatprep.subr.mxu0 0.0
  %2912 = vmatpush1.xpose.msra.mxu0 0.0
  %2913 = vmatprep.subr.mxu0 0.0
  %2914 = vmatpush1.xpose.msra.mxu0 0.0
  %2915 = vmatprep.subr.mxu0 0.0
  %2916 = vmatpush1.xpose.msra.mxu0 0.0
  %2917 = vmatprep.subr.mxu0 0.0
  %2918 = vmatpush1.xpose.msra.mxu0 0.0
  %2919 = vmatprep.subr.mxu0 0.0
  %2920 = vmatpush1.xpose.msra.mxu0 0.0
  %2921 = vmatprep.subr.mxu0 0.0
  %2922 = vmatpush1.xpose.msra.mxu0 0.0
  %2923 = vmatprep.subr.mxu0 0.0
  %2924 = vmatpush1.xpose.msra.mxu0 0.0
  %2925 = vmatprep.subr.mxu0 0.0
  %2926 = vmatpush1.xpose.msra.mxu0 0.0
  %2927 = vmatprep.mubr.f32.mxu0 0.0
  %2928 = vmatmul.mubr.f32.gmra.mrb[0].mxu0 %v2851
  %v2929 = vpop.f32.mrb[0].mxu0
  %v2930 = vadd.f32 %v2829, %v2929
  %v2931 = vpop.f32.mrb[0].mxu0
  %2932 = vmatprep.mubr.f32.mxu0 0.0
  %2933 = vmatmul.mubr.f32.gmra.mrb[0].mxu0 %v2853
  %v2934 = vpop.f32.mrb[0].mxu0
  %v2935 = vadd.f32 %v2834, %v2934
  %v2936 = vpop.f32.mrb[0].mxu0
  %2937 = vmatprep.mubr.f32.mxu0 0.0
  %2938 = vmatmul.mubr.f32.gmra.mrb[0].mxu0 %v2855
  %v2939 = vpop.f32.mrb[0].mxu0
  %v2940 = vadd.f32 %v2839, %v2939
  %v2941 = vpop.f32.mrb[0].mxu0
  %2942 = vmatprep.mubr.f32.mxu0 0.0
  %2943 = vmatmul.mubr.f32.gmra.mrb[0].mxu0 %v2857
  %v2944 = vpop.f32.mrb[0].mxu0
  %v2945 = vadd.f32 %v2844, %v2944
  %v2946 = vpop.f32.mrb[0].mxu0
  %2947 = vdwg.mxu0
  %v2949 = vsel %vm1780, %v2930, 0
  %v2952 = vsel %vm1780, %v2935, 0
  %v2955 = vsel %vm1780, %v2940, 0
  %v2958 = vsel %vm1780, %v2945, 0
  %2960 = vmatprep.subr.mxu0 0.0
  %2961 = vmatpush1.msra.mxu0 %v2041
  %2962 = vmatprep.subr.mxu0 0.0
  %2963 = vmatpush1.msra.mxu0 %v2042
  %2964 = vmatprep.subr.mxu0 0.0
  %2965 = vmatpush1.msra.mxu0 0.0
  %2966 = vmatprep.subr.mxu0 0.0
  %2967 = vmatpush1.msra.mxu0 0.0
  %2968 = vmatprep.subr.mxu0 0.0
  %2969 = vmatpush1.msra.mxu0 0.0
  %2970 = vmatprep.subr.mxu0 0.0
  %2971 = vmatpush1.msra.mxu0 0.0
  %2972 = vmatprep.subr.mxu0 0.0
  %2973 = vmatpush1.msra.mxu0 0.0
  %2974 = vmatprep.subr.mxu0 0.0
  %2975 = vmatpush1.msra.mxu0 0.0
  %2976 = vmatprep.subr.mxu0 0.0
  %2977 = vmatpush1.msra.mxu0 0.0
  %2978 = vmatprep.subr.mxu0 0.0
  %2979 = vmatpush1.msra.mxu0 0.0
  %2980 = vmatprep.subr.mxu0 0.0
  %2981 = vmatpush1.msra.mxu0 0.0
  %2982 = vmatprep.subr.mxu0 0.0
  %2983 = vmatpush1.msra.mxu0 0.0
  %2984 = vmatprep.subr.mxu0 0.0
  %2985 = vmatpush1.msra.mxu0 0.0
  %2986 = vmatprep.subr.mxu0 0.0
  %2987 = vmatpush1.msra.mxu0 0.0
  %2988 = vmatprep.subr.mxu0 0.0
  %2989 = vmatpush1.msra.mxu0 0.0
  %2990 = vmatprep.subr.mxu0 0.0
  %2991 = vmatpush1.msra.mxu0 0.0
  %2992 = vmatprep.subr.mxu0 0.0
  %2993 = vmatpush1.msra.mxu0 0.0
  %2994 = vmatprep.subr.mxu0 0.0
  %2995 = vmatpush1.msra.mxu0 0.0
  %2996 = vmatprep.subr.mxu0 0.0
  %2997 = vmatpush1.msra.mxu0 0.0
  %2998 = vmatprep.subr.mxu0 0.0
  %2999 = vmatpush1.msra.mxu0 0.0
  %3000 = vmatprep.subr.mxu0 0.0
  %3001 = vmatpush1.msra.mxu0 0.0
  %3002 = vmatprep.subr.mxu0 0.0
  %3003 = vmatpush1.msra.mxu0 0.0
  %3004 = vmatprep.subr.mxu0 0.0
  %3005 = vmatpush1.msra.mxu0 0.0
  %3006 = vmatprep.subr.mxu0 0.0
  %3007 = vmatpush1.msra.mxu0 0.0
  %3008 = vmatprep.subr.mxu0 0.0
  %3009 = vmatpush1.msra.mxu0 0.0
  %3010 = vmatprep.subr.mxu0 0.0
  %3011 = vmatpush1.msra.mxu0 0.0
  %3012 = vmatprep.subr.mxu0 0.0
  %3013 = vmatpush1.msra.mxu0 0.0
  %3014 = vmatprep.subr.mxu0 0.0
  %3015 = vmatpush1.msra.mxu0 0.0
  %3016 = vmatprep.subr.mxu0 0.0
  %3017 = vmatpush1.msra.mxu0 0.0
  %3018 = vmatprep.subr.mxu0 0.0
  %3019 = vmatpush1.msra.mxu0 0.0
  %3020 = vmatprep.subr.mxu0 0.0
  %3021 = vmatpush1.msra.mxu0 0.0
  %3022 = vmatprep.subr.mxu0 0.0
  %3023 = vmatpush1.msra.mxu0 0.0
  %3024 = vmatprep.mubr.f32.mxu0 0.0
  %3025 = vmatmul.mubr.f32.gmra.mrb[0].mxu0 %v2949
  %v3026 = vpop.f32.mrb[0].mxu0
  %v3027 = vadd.f32 0.0, %v3026
  %v3028 = vpop.f32.mrb[0].mxu0
  %3029 = vmatprep.mubr.f32.mxu0 0.0
  %3030 = vmatmul.mubr.f32.gmra.mrb[0].mxu0 %v2952
  %v3031 = vpop.f32.mrb[0].mxu0
  %v3032 = vadd.f32 0.0, %v3031
  %v3033 = vpop.f32.mrb[0].mxu0
  %3034 = vmatprep.mubr.f32.mxu0 0.0
  %3035 = vmatmul.mubr.f32.gmra.mrb[0].mxu0 %v2955
  %v3036 = vpop.f32.mrb[0].mxu0
  %v3037 = vadd.f32 0.0, %v3036
  %v3038 = vpop.f32.mrb[0].mxu0
  %3039 = vmatprep.mubr.f32.mxu0 0.0
  %3040 = vmatmul.mubr.f32.gmra.mrb[0].mxu0 %v2958
  %v3041 = vpop.f32.mrb[0].mxu0
  %v3042 = vadd.f32 0.0, %v3041
  %v3043 = vpop.f32.mrb[0].mxu0
  %3044 = vdwg.mxu0
  %3045 = vmatprep.subr.mxu0 0.0
  %3046 = vmatpush1.msra.mxu0 %v3027
  %3047 = vmatprep.subr.mxu0 0.0
  %3048 = vmatpush1.msra.mxu0 %v3032
  %3049 = vmatprep.subr.mxu0 0.0
  %3050 = vmatpush1.msra.mxu0 %v3037
  %3051 = vmatprep.subr.mxu0 0.0
  %3052 = vmatpush1.msra.mxu0 %v3042
  %3053 = vmatprep.subr.mxu0 0.0
  %3054 = vmatpush1.msra.mxu0 0.0
  %3055 = vmatprep.subr.mxu0 0.0
  %3056 = vmatpush1.msra.mxu0 0.0
  %3057 = vmatprep.subr.mxu0 0.0
  %3058 = vmatpush1.msra.mxu0 0.0
  %3059 = vmatprep.subr.mxu0 0.0
  %3060 = vmatpush1.msra.mxu0 0.0
  %3061 = vmatprep.subr.mxu0 0.0
  %3062 = vmatpush1.msra.mxu0 0.0
  %3063 = vmatprep.subr.mxu0 0.0
  %3064 = vmatpush1.msra.mxu0 0.0
  %3065 = vmatprep.subr.mxu0 0.0
  %3066 = vmatpush1.msra.mxu0 0.0
  %3067 = vmatprep.subr.mxu0 0.0
  %3068 = vmatpush1.msra.mxu0 0.0
  %3069 = vmatprep.subr.mxu0 0.0
  %3070 = vmatpush1.msra.mxu0 0.0
  %3071 = vmatprep.subr.mxu0 0.0
  %3072 = vmatpush1.msra.mxu0 0.0
  %3073 = vmatprep.subr.mxu0 0.0
  %3074 = vmatpush1.msra.mxu0 0.0
  %3075 = vmatprep.subr.mxu0 0.0
  %3076 = vmatpush1.msra.mxu0 0.0
  %3077 = vmatprep.subr.mxu0 0.0
  %3078 = vmatpush1.msra.mxu0 0.0
  %3079 = vmatprep.subr.mxu0 0.0
  %3080 = vmatpush1.msra.mxu0 0.0
  %3081 = vmatprep.subr.mxu0 0.0
  %3082 = vmatpush1.msra.mxu0 0.0
  %3083 = vmatprep.subr.mxu0 0.0
  %3084 = vmatpush1.msra.mxu0 0.0
  %3085 = vmatprep.subr.mxu0 0.0
  %3086 = vmatpush1.msra.mxu0 0.0
  %3087 = vmatprep.subr.mxu0 0.0
  %3088 = vmatpush1.msra.mxu0 0.0
  %3089 = vmatprep.subr.mxu0 0.0
  %3090 = vmatpush1.msra.mxu0 0.0
  %3091 = vmatprep.subr.mxu0 0.0
  %3092 = vmatpush1.msra.mxu0 0.0
  %3093 = vmatprep.subr.mxu0 0.0
  %3094 = vmatpush1.msra.mxu0 0.0
  %3095 = vmatprep.subr.mxu0 0.0
  %3096 = vmatpush1.msra.mxu0 0.0
  %3097 = vmatprep.subr.mxu0 0.0
  %3098 = vmatpush1.msra.mxu0 0.0
  %3099 = vmatprep.subr.mxu0 0.0
  %3100 = vmatpush1.msra.mxu0 0.0
  %3101 = vmatprep.subr.mxu0 0.0
  %3102 = vmatpush1.msra.mxu0 0.0
  %3103 = vmatprep.subr.mxu0 0.0
  %3104 = vmatpush1.msra.mxu0 0.0
  %3105 = vmatprep.subr.mxu0 0.0
  %3106 = vmatpush1.msra.mxu0 0.0
  %3107 = vmatprep.subr.mxu0 0.0
  %3108 = vmatpush1.msra.mxu0 0.0
  %3109 = vmatprep.mubr.f32.mxu0 0.0
  %3110 = vmatmul.mubr.f32.gmra.mrb[0].mxu0 %v1879
  %v3111 = vpop.f32.mrb[0].mxu0
  %v3112 = vadd.f32 0.0, %v3111
  %v3113 = vpop.f32.mrb[0].mxu0
  %3114 = vmatprep.mubr.f32.mxu0 0.0
  %3115 = vmatmul.mubr.f32.gmra.mrb[0].mxu0 %v1882
  %v3116 = vpop.f32.mrb[0].mxu0
  %v3117 = vadd.f32 0.0, %v3116
  %v3118 = vpop.f32.mrb[0].mxu0
  %3119 = vdwg.mxu0
  %v3120 = vmul.f32 %v3112, 0.06983769
  %v3121 = vmul.f32 %v3117, 0.06983769
  %3122 = vst.msk [vmem:[%s12 + $0x1] sm:$0x1] %vm1961, %v3120
  %3124 = vrot.lane.b32.xlu0 %v3120, 8
  %v3125 = vpop.permute.xlu0 %3124
  %3127 = vst.msk [vmem:[%s12] sm:$0x2] %vm1967, %v3125
  %3128 = vrot.lane.b32.xlu0 %v3120, 16
  %v3129 = vpop.permute.xlu0 %3128
  %3131 = vst.msk [vmem:[%s12 - $0x1] sm:$0x4] %vm1972, %v3129
  %3132 = vrot.lane.b32.xlu0 %v3120, 24
  %v3133 = vpop.permute.xlu0 %3132
  %3135 = vst.msk [vmem:[%s12 - $0x2] sm:$0x8] %vm1977, %v3133
  %3136 = vrot.lane.b32.xlu0 %v3120, 32
  %v3137 = vpop.permute.xlu0 %3136
  %3139 = vst.msk [vmem:[%s12 - $0x3] sm:$0x10] %vm1982, %v3137
  %3140 = vrot.lane.b32.xlu0 %v3120, 40
  %v3141 = vpop.permute.xlu0 %3140
  %3143 = vst.msk [vmem:[%s12 - $0x4] sm:$0x20] %vm1987, %v3141
  %3144 = vrot.lane.b32.xlu0 %v3120, 48
  %v3145 = vpop.permute.xlu0 %3144
  %3147 = vst.msk [vmem:[%s12 - $0x5] sm:$0x40] %vm1992, %v3145
  %3148 = vrot.lane.b32.xlu0 %v3120, 56
  %v3149 = vpop.permute.xlu0 %3148
  %3151 = vst.msk [vmem:[%s12 - $0x6] sm:$0x80] %vm1997, %v3149
  %3153 = vrot.lane.b32.xlu0 %v3121, 64
  %v3154 = vpop.permute.xlu0 %3153
  %3156 = vst.msk [vmem:[%s12 + $0x1] sm:$0x1] %vm2003, %v3154
  %3157 = vrot.lane.b32.xlu0 %v3121, 72
  %v3158 = vpop.permute.xlu0 %3157
  %3160 = vst.msk [vmem:[%s12] sm:$0x2] %vm2008, %v3158
  %3161 = vrot.lane.b32.xlu0 %v3121, 80
  %v3162 = vpop.permute.xlu0 %3161
  %3164 = vst.msk [vmem:[%s12 - $0x1] sm:$0x4] %vm2013, %v3162
  %3165 = vrot.lane.b32.xlu0 %v3121, 88
  %v3166 = vpop.permute.xlu0 %3165
  %3168 = vst.msk [vmem:[%s12 - $0x2] sm:$0x8] %vm2018, %v3166
  %3169 = vrot.lane.b32.xlu0 %v3121, 96
  %v3170 = vpop.permute.xlu0 %3169
  %3172 = vst.msk [vmem:[%s12 - $0x3] sm:$0x10] %vm2023, %v3170
  %3173 = vrot.lane.b32.xlu0 %v3121, 104
  %v3174 = vpop.permute.xlu0 %3173
  %3176 = vst.msk [vmem:[%s12 - $0x4] sm:$0x20] %vm2028, %v3174
  %3177 = vrot.lane.b32.xlu0 %v3121, 112
  %v3178 = vpop.permute.xlu0 %3177
  %3180 = vst.msk [vmem:[%s12 - $0x5] sm:$0x40] %vm2033, %v3178
  %3181 = vrot.lane.b32.xlu0 %v3121, 120
  %v3182 = vpop.permute.xlu0 %3181
  %3184 = vst.msk [vmem:[%s12 - $0x6] sm:$0x80] %vm2038, %v3182
  // Predicated region
  $region50: #{_lambda_.1} parent=0 // pred_check
    _
  $region51: #{_lambda_.1} parent=0 // pred_check_branch
    %3186 = sbr.rel (0) target = $region53
  $region52: #{_lambda_.1} parent=0 // pred_region
    _
  $region53: #{_lambda_.1} parent=0 // pred_fallthru
    _
  // Predicated region
  $region54: #{_lambda_.1} parent=0 // pred_check
    _
  $region55: #{_lambda_.1} parent=0 // pred_check_branch
    %3188 = sbr.rel (0) target = $region57
  $region56: #{_lambda_.1} parent=0 // pred_region
    _
  $region57: #{_lambda_.1} parent=0 // pred_fallthru
    _

</llo_original>
